<compile_context>
chip_gen: v7x
topology: tpu7x:2x2x1
jax: 0.10.0
libtpu: 0.0.40
codegen_flags: <defaults>
</compile_context>

<pallas_src>
import numpy as np
import jax
import jax.numpy as jnp
from jax import lax
from jax.experimental import pallas as pl
from jax.experimental.pallas import tpu as pltpu

_BN_EPS = 1e-5
_C1, _C2 = 16, 32                 # real channel counts of the PyTorch module
_TILE_ROWS = 8                    # pooled output rows per conv grid step
_FC_TILE_K = 32768                # FC reduction tile (large -> few grid steps)
_VMEM_LIMIT = 48 * 1024 * 1024    # <= v7x physical 64 MiB, > v5e/v6e defaults


def _round_up(x, m):
    return ((x + m - 1) // m) * m


# ----------------------------------------------------------------------------
# Kernel 1: fused 3x3 conv (as one im2col matmul) + folded BatchNorm + ReLU +
#           2x2 max-pool.  grid = (batch, row_tile), both parallel.
# ----------------------------------------------------------------------------
def _conv_bn_relu_pool_kernel(x_ref, w_ref, scale_ref, bias_ref, o_ref):
    # x_ref:     (1, 2*TR, W, K)   im2col'd input rows of this tile, K = 9*Cin
    # w_ref:     (K, Cout) bf16    conv weight with all 9 taps merged into K
    # scale_ref: (1, Cout) f32     gamma / sqrt(var + eps)
    # bias_ref:  (1, Cout) f32     (conv_bias - mean) * scale + beta
    # o_ref:     (1, TR, W//2, Cout) pooled output tile (bf16)
    TR, Wh, Cout = o_ref.shape[1], o_ref.shape[2], o_ref.shape[3]
    rows, W = 2 * TR, 2 * Wh
    K = x_ref.shape[3]
    M = rows * W

    # Single MXU matmul per tile: contraction depth = 9 * real Cin (27 / 144),
    # no in-kernel halo handling or concatenation needed.
    lhs = x_ref[0].reshape(M, K)
    acc = jnp.dot(lhs, w_ref[...], preferred_element_type=jnp.float32)

    # Folded BatchNorm + ReLU (f32, VPU).
    y = jnp.maximum(acc * scale_ref[...] + bias_ref[...], 0.0)

    # 2x2 max-pool: row pairs, then column pairs (channel dim untouched).
    y = jnp.max(y.reshape(TR, 2, W, Cout), axis=1)       # (TR, W, Cout)
    y = jnp.max(y.reshape(TR, Wh, 2, Cout), axis=2)      # (TR, Wh, Cout)
    o_ref[0] = y.astype(o_ref.dtype)


def _im2col_3x3(x_nhwc, h_proc, w_proc):
    """Expand 3x3 SAME-padded windows into the channel dim (host side / XLA).

    x_nhwc: (N, H, W, Cin)  ->  (N, h_proc, w_proc, 9*Cin), with
    out[n, r, c, (3*dy+dx)*Cin + ci] == x_zero_padded[n, r+dy, c+dx, ci].
    h_proc/w_proc >= H/W also provide the row/width processing padding.
    """
    N, H, W, Cin = x_nhwc.shape
    xp = jnp.pad(x_nhwc,
                 ((0, 0), (1, 1 + h_proc - H), (1, 1 + w_proc - W), (0, 0)))
    taps = [xp[:, dy:dy + h_proc, dx:dx + w_proc, :]
            for dy in range(3) for dx in range(3)]
    return jnp.concatenate(taps, axis=-1)


def conv_bn_relu_pool(x_nhwc, w_k, scale, bias, *, tile_rows=_TILE_ROWS):
    """Fused 3x3 conv (stride 1, SAME) + folded BN + ReLU + 2x2 max-pool."""
    N, H, W, Cin = x_nhwc.shape
    assert H % 2 == 0 and W % 2 == 0
    K, Cout = w_k.shape
    assert K == 9 * Cin
    Hh, Wh = H // 2, W // 2

    tr = min(tile_rows, Hh)
    hh_proc = _round_up(Hh, tr)          # pooled rows: multiple of the tile
    h_proc = 2 * hh_proc
    w_proc = _round_up(W, 16)            # sublane/lane friendly width
    wh_proc = w_proc // 2
    num_tiles = hh_proc // tr

    x_cols = _im2col_3x3(x_nhwc.astype(jnp.bfloat16), h_proc, w_proc)

    out = pl.pallas_call(
        _conv_bn_relu_pool_kernel,
        out_shape=jax.ShapeDtypeStruct((N, hh_proc, wh_proc, Cout),
                                       jnp.bfloat16),
        grid=(N, num_tiles),
        in_specs=[
            pl.BlockSpec((1, 2 * tr, w_proc, K), lambda n, r: (n, r, 0, 0)),
            pl.BlockSpec((K, Cout), lambda n, r: (0, 0)),
            pl.BlockSpec((1, Cout), lambda n, r: (0, 0)),
            pl.BlockSpec((1, Cout), lambda n, r: (0, 0)),
        ],
        out_specs=pl.BlockSpec((1, tr, wh_proc, Cout),
                               lambda n, r: (n, r, 0, 0)),
        compiler_params=pltpu.CompilerParams(
            dimension_semantics=("parallel", "parallel"),
            vmem_limit_bytes=_VMEM_LIMIT),
    )(x_cols, w_k, scale, bias)

    return out[:, :Hh, :Wh, :]           # drop the processing padding


# ----------------------------------------------------------------------------
# Kernel 2: K-tiled Linear   y = x @ W.T + b   (f32 accumulator in VMEM).
# The weight stays (out_dim, K): unpadded output dim, K lane-dense.
# ----------------------------------------------------------------------------
def _linear_kernel(x_ref, w_ref, b_ref, o_ref, acc_ref):
    @pl.when(pl.program_id(0) == 0)
    def _():
        acc_ref[...] = jnp.zeros_like(acc_ref)

    # NT contraction: x (N, TK) . w (out_dim, TK) over the minor (lane) dim.
    acc_ref[...] += lax.dot_general(
        x_ref[...], w_ref[...],
        dimension_numbers=(((1,), (1,)), ((), ())),
        preferred_element_type=jnp.float32)

    @pl.when(pl.program_id(0) == pl.num_programs(0) - 1)
    def _():
        o_ref[...] = (acc_ref[...] + b_ref[...]).astype(o_ref.dtype)


def linear(x, w, b_row, tile_k):
    """y = x @ w.T + b with x:(N,Kp) bf16, w:(out_dim,Kp) bf16, b:(1,out) f32."""
    N, k_pad = x.shape
    out_dim = w.shape[0]
    assert w.shape[1] == k_pad and k_pad % tile_k == 0
    return pl.pallas_call(
        _linear_kernel,
        out_shape=jax.ShapeDtypeStruct((N, out_dim), jnp.float32),
        grid=(k_pad // tile_k,),
        in_specs=[
            pl.BlockSpec((N, tile_k), lambda k: (0, k)),
            pl.BlockSpec((out_dim, tile_k), lambda k: (0, k)),
            pl.BlockSpec((1, out_dim), lambda k: (0, 0)),
        ],
        out_specs=pl.BlockSpec((N, out_dim), lambda k: (0, 0)),
        scratch_shapes=[pltpu.VMEM((N, out_dim), jnp.float32)],
        compiler_params=pltpu.CompilerParams(
            dimension_semantics=("arbitrary",),
            vmem_limit_bytes=_VMEM_LIMIT),
    )(x, w, b_row)


def _fc_tiling(k, target=_FC_TILE_K):
    tile_k = target if k >= target else _round_up(k, 512)
    return tile_k, _round_up(k, tile_k)


# ----------------------------------------------------------------------------
# Parameter preparation (done once, outside the jitted forward)
# ----------------------------------------------------------------------------
def _prep_conv_w(w_oihw, dtype=jnp.bfloat16):
    cout, cin = w_oihw.shape[0], w_oihw.shape[1]
    # (Cout, Cin, ky, kx) -> (ky, kx, Cin, Cout) -> (9*Cin, Cout); the row
    # order (3*ky+kx)*Cin + ci matches _im2col_3x3's channel ordering.
    w = jnp.transpose(w_oihw, (2, 3, 1, 0)).reshape(9 * cin, cout)
    return w.astype(dtype)


def _fold_bn(conv_b, g, b, m, v):
    s = g / jnp.sqrt(v + _BN_EPS)
    return (s.reshape(1, -1).astype(jnp.float32),
            ((conv_b - m) * s + b).reshape(1, -1).astype(jnp.float32))


def _prep_fc(wf, bf, c, h2, w2):
    # Permute the NCHW-flatten FC weight into NHWC-flatten order so the kernel
    # consumes the conv output directly; keep it (out_dim, K) row-major (K on
    # lanes, no out-dim padding), zero-padded along K to the reduction tile.
    out_dim = wf.shape[0]
    w = wf.reshape(out_dim, c, h2, w2).transpose(0, 2, 3, 1)
    w = w.reshape(out_dim, h2 * w2 * c)
    k = w.shape[1]
    _, k_pad = _fc_tiling(k)
    w = jnp.pad(w, ((0, 0), (0, k_pad - k))).astype(jnp.bfloat16)
    return w, bf.reshape(1, out_dim).astype(jnp.float32)


def prepare_params(p, H, W):
    prep = {'w1': _prep_conv_w(p['w1']), 'w2': _prep_conv_w(p['w2'])}
    prep['s1'], prep['bb1'] = _fold_bn(p['cb1'], p['g1'], p['b1'],
                                       p['m1'], p['v1'])
    prep['s2'], prep['bb2'] = _fold_bn(p['cb2'], p['g2'], p['b2'],
                                       p['m2'], p['v2'])
    prep['wf'], prep['bf'] = _prep_fc(p['wf'], p['bf'], _C2, H // 4, W // 4)
    return prep


# ----------------------------------------------------------------------------
# Full forward pass (matches CNNModel.forward with BN in eval mode)
# ----------------------------------------------------------------------------
def cnn_forward(x_nchw, prep):
    N, _, H, W = x_nchw.shape
    assert H % 4 == 0 and W % 4 == 0

    x = jnp.transpose(x_nchw, (0, 2, 3, 1))                 # NCHW -> NHWC
    y = conv_bn_relu_pool(x, prep['w1'], prep['s1'], prep['bb1'])
    y = conv_bn_relu_pool(y, prep['w2'], prep['s2'], prep['bb2'])

    flat = y.reshape(N, -1)                                 # NHWC flatten
    tile_k, k_pad = _fc_tiling(flat.shape[1])
    if k_pad != flat.shape[1]:
        flat = jnp.pad(flat, ((0, 0), (0, k_pad - flat.shape[1])))
    return linear(flat, prep['wf'], prep['bf'], tile_k)


# ----------------------------------------------------------------------------
# Pure-JAX (f32) reference for correctness checking
# ----------------------------------------------------------------------------
def reference(x_nchw, p):
    def bn(y, g, b, m, v):
        inv = (g / jnp.sqrt(v + _BN_EPS))[None, :, None, None]
        return (y - m[None, :, None, None]) * inv + b[None, :, None, None]

    def pool(y):
        n, c, h, w = y.shape
        return y.reshape(n, c, h // 2, 2, w // 2, 2).max(axis=(3, 5))

    dn = ('NCHW', 'OIHW', 'NCHW')
    y = lax.conv_general_dilated(x_nchw, p['w1'], (1, 1), 'SAME',
                                 dimension_numbers=dn)
    y = y + p['cb1'][None, :, None, None]
    y = pool(jnp.maximum(bn(y, p['g1'], p['b1'], p['m1'], p['v1']), 0.0))
    y = lax.conv_general_dilated(y, p['w2'], (1, 1), 'SAME',
                                 dimension_numbers=dn)
    y = y + p['cb2'][None, :, None, None]
    y = pool(jnp.maximum(bn(y, p['g2'], p['b2'], p['m2'], p['v2']), 0.0))
    flat = y.reshape(y.shape[0], -1)                # NCHW flatten, like PyTorch
    return flat @ p['wf'].T + p['bf']


# ----------------------------------------------------------------------------
# Deterministic synthetic parameters
# ----------------------------------------------------------------------------
def init_params(key, out_dim, fc_in):
    ks = jax.random.split(key, 14)

    def conv_w(k, cout, cin):
        return jax.random.normal(k, (cout, cin, 3, 3),
                                 jnp.float32) / np.sqrt(cin * 9.0)

    def bn_params(kg, kb, km, kv, c):
        g = 1.0 + 0.1 * jax.random.normal(kg, (c,), jnp.float32)
        b = 0.1 * jax.random.normal(kb, (c,), jnp.float32)
        m = 0.1 * jax.random.normal(km, (c,), jnp.float32)
        v = 1.0 + 0.1 * jnp.abs(jax.random.normal(kv, (c,), jnp.float32))
        return g, b, m, v

    p = {}
    p['w1'] = conv_w(ks[0], _C1, 3)
    p['cb1'] = 0.1 * jax.random.normal(ks[1], (_C1,), jnp.float32)
    p['g1'], p['b1'], p['m1'], p['v1'] = bn_params(ks[2], ks[3], ks[4], ks[5], _C1)
    p['w2'] = conv_w(ks[6], _C2, _C1)
    p['cb2'] = 0.1 * jax.random.normal(ks[7], (_C2,), jnp.float32)
    p['g2'], p['b2'], p['m2'], p['v2'] = bn_params(ks[8], ks[9], ks[10], ks[11], _C2)
    p['wf'] = jax.random.normal(ks[12], (out_dim, fc_in),
                                jnp.float32) / np.sqrt(float(fc_in))
    p['bf'] = 0.1 * jax.random.normal(ks[13], (out_dim,), jnp.float32)
    return p


if __name__ == "__main__":
    key = jax.random.PRNGKey(0)
    kx, kp = jax.random.split(key)

    N, H, W = 2, 32, 32            # small stand-in for the 424x424 original
    out_feature_dim = 16
    fc_in = _C2 * (H // 4) * (W // 4)

    x = jax.random.normal(kx, (N, 3, H, W), jnp.float32)   # NCHW like PyTorch
    params = init_params(kp, out_feature_dim, fc_in)
    prep = prepare_params(params, H, W)

    fwd = jax.jit(cnn_forward)
    y = jax.block_until_ready(fwd(x, prep))

    y_ref = reference(x, params)
    assert y.shape == (N, out_feature_dim)
    # conv1 / conv2 / fc matmuls all run in bf16 (f32 accumulation) -> loose tol.
    np.testing.assert_allclose(np.asarray(y), np.asarray(y_ref),
                               rtol=5e-2, atol=8e-2)
    print("KERNEL_OK")
</pallas_src>

<mosaic_0001>
module attributes {stable_mosaic.version = 11 : i64} {
  func.func @_conv_bn_relu_pool_kernel(%arg0: i32, %arg1: i32, %arg2: memref<1x16x32x27xbf16, #tpu.memory_space<vmem>>, %arg3: memref<27x16xbf16, #tpu.memory_space<vmem>>, %arg4: memref<1x16xf32, #tpu.memory_space<vmem>>, %arg5: memref<1x16xf32, #tpu.memory_space<vmem>>, %arg6: memref<1x8x16x16xbf16, #tpu.memory_space<vmem>>) attributes {dimension_semantics = [#tpu.dimension_semantics<parallel>, #tpu.dimension_semantics<parallel>], iteration_bounds = array<i64: 2, 2>, scalar_prefetch = 0 : i64, scratch_operands = 0 : i64, tpu.core_type = #tpu.core_type<tc>, window_params = [{transform_indices = @transform_0, window_bounds = array<i64: 1, 16, 32, 27>}, {pipeline_mode = #tpu.pipeline_mode<synchronous>, transform_indices = @transform_1, window_bounds = array<i64: 27, 16>}, {pipeline_mode = #tpu.pipeline_mode<synchronous>, transform_indices = @transform_2, window_bounds = array<i64: 1, 16>}, {pipeline_mode = #tpu.pipeline_mode<synchronous>, transform_indices = @transform_3, window_bounds = array<i64: 1, 16>}, {transform_indices = @transform_4, window_bounds = array<i64: 1, 8, 16, 16>}]} {
    %c0 = arith.constant 0 : index
    %c0_0 = arith.constant 0 : index
    %c0_1 = arith.constant 0 : index
    %c0_2 = arith.constant 0 : index
    %0 = vector.load %arg2[%c0, %c0_0, %c0_1, %c0_2] : memref<1x16x32x27xbf16, #tpu.memory_space<vmem>>, vector<1x16x32x27xbf16>
    %1 = vector.shape_cast %0 : vector<1x16x32x27xbf16> to vector<16x32x27xbf16>
    %2 = vector.shape_cast %1 : vector<16x32x27xbf16> to vector<512x27xbf16>
    %c0_3 = arith.constant 0 : index
    %c0_4 = arith.constant 0 : index
    %3 = vector.load %arg3[%c0_3, %c0_4] : memref<27x16xbf16, #tpu.memory_space<vmem>>, vector<27x16xbf16>
    %cst = arith.constant dense<0.000000e+00> : vector<512x16xf32>
    %4 = tpu.matmul %2, %3, %cst {dimension_numbers = #tpu.dot_dimension_numbers<[1], [0], [0], [1], [0, 0, 1, 1], [], []>} : vector<512x27xbf16>, vector<27x16xbf16>, vector<512x16xf32> -> vector<512x16xf32>
    %c0_5 = arith.constant 0 : index
    %c0_6 = arith.constant 0 : index
    %5 = vector.load %arg4[%c0_5, %c0_6] : memref<1x16xf32, #tpu.memory_space<vmem>>, vector<1x16xf32>
    %6 = vector.broadcast %5 : vector<1x16xf32> to vector<512x16xf32>
    %7 = arith.mulf %4, %6 : vector<512x16xf32>
    %c0_7 = arith.constant 0 : index
    %c0_8 = arith.constant 0 : index
    %8 = vector.load %arg5[%c0_7, %c0_8] : memref<1x16xf32, #tpu.memory_space<vmem>>, vector<1x16xf32>
    %9 = vector.broadcast %8 : vector<1x16xf32> to vector<512x16xf32>
    %10 = arith.addf %7, %9 : vector<512x16xf32>
    %cst_9 = arith.constant 0.000000e+00 : f32
    %11 = vector.broadcast %cst_9 : f32 to vector<512x16xf32>
    %12 = arith.maximumf %10, %11 : vector<512x16xf32>
    %13 = vector.shape_cast %12 : vector<512x16xf32> to vector<8x2x32x16xf32>
    %cst_10 = arith.constant dense<0xFF800000> : vector<8x32x16xf32>
    %14 = vector.multi_reduction <maximumf>, %13, %cst_10 [1] : vector<8x2x32x16xf32> to vector<8x32x16xf32>
    %15 = vector.shape_cast %14 : vector<8x32x16xf32> to vector<8x16x2x16xf32>
    %cst_11 = arith.constant dense<0xFF800000> : vector<8x16x16xf32>
    %16 = vector.multi_reduction <maximumf>, %15, %cst_11 [2] : vector<8x16x2x16xf32> to vector<8x16x16xf32>
    %17 = arith.truncf %16 : vector<8x16x16xf32> to vector<8x16x16xbf16>
    %c0_12 = arith.constant 0 : index
    %c0_13 = arith.constant 0 : index
    %c0_14 = arith.constant 0 : index
    %c0_15 = arith.constant 0 : index
    %18 = vector.load %arg6[%c0_12, %c0_13, %c0_14, %c0_15] : memref<1x8x16x16xbf16, #tpu.memory_space<vmem>>, vector<1x8x16x16xbf16>
    %19 = vector.shape_cast %18 : vector<1x8x16x16xbf16> to vector<8x16x16xbf16>
    %20 = vector.shape_cast %17 : vector<8x16x16xbf16> to vector<1x8x16x16xbf16>
    tpu.vector_store %arg6[%c0_12, %c0_13, %c0_14, %c0_15], %20 {strides = array<i32>} : memref<1x8x16x16xbf16, #tpu.memory_space<vmem>>, vector<1x8x16x16xbf16>,
    return
  }
  func.func @transform_0(%arg0: i32, %arg1: i32) -> (i32, i32, i32, i32) {
    %c0_i32 = arith.constant 0 : i32
    %c0_i32_0 = arith.constant 0 : i32
    %c0_i32_1 = arith.constant 0 : i32
    return %arg0, %arg1, %c0_i32, %c0_i32_0 : i32, i32, i32, i32
  }
  func.func @transform_1(%arg0: i32, %arg1: i32) -> (i32, i32) {
    %c0_i32 = arith.constant 0 : i32
    %c0_i32_0 = arith.constant 0 : i32
    %c0_i32_1 = arith.constant 0 : i32
    return %c0_i32, %c0_i32_0 : i32, i32
  }
  func.func @transform_2(%arg0: i32, %arg1: i32) -> (i32, i32) {
    %c0_i32 = arith.constant 0 : i32
    %c0_i32_0 = arith.constant 0 : i32
    %c0_i32_1 = arith.constant 0 : i32
    return %c0_i32, %c0_i32_0 : i32, i32
  }
  func.func @transform_3(%arg0: i32, %arg1: i32) -> (i32, i32) {
    %c0_i32 = arith.constant 0 : i32
    %c0_i32_0 = arith.constant 0 : i32
    %c0_i32_1 = arith.constant 0 : i32
    return %c0_i32, %c0_i32_0 : i32, i32
  }
  func.func @transform_4(%arg0: i32, %arg1: i32) -> (i32, i32, i32, i32) {
    %c0_i32 = arith.constant 0 : i32
    %c0_i32_0 = arith.constant 0 : i32
    %c0_i32_1 = arith.constant 0 : i32
    return %arg0, %arg1, %c0_i32, %c0_i32_0 : i32, i32, i32, i32
  }
}

module attributes {stable_mosaic.version = 11 : i64} {
  func.func @_conv_bn_relu_pool_kernel(%arg0: i32, %arg1: i32, %arg2: memref<1x16x16x144xbf16, #tpu.memory_space<vmem>>, %arg3: memref<144x32xbf16, #tpu.memory_space<vmem>>, %arg4: memref<1x32xf32, #tpu.memory_space<vmem>>, %arg5: memref<1x32xf32, #tpu.memory_space<vmem>>, %arg6: memref<1x8x8x32xbf16, #tpu.memory_space<vmem>>) attributes {dimension_semantics = [#tpu.dimension_semantics<parallel>, #tpu.dimension_semantics<parallel>], iteration_bounds = array<i64: 2, 1>, scalar_prefetch = 0 : i64, scratch_operands = 0 : i64, tpu.core_type = #tpu.core_type<tc>, window_params = [{transform_indices = @transform_0, window_bounds = array<i64: 1, 16, 16, 144>}, {pipeline_mode = #tpu.pipeline_mode<synchronous>, transform_indices = @transform_1, window_bounds = array<i64: 144, 32>}, {pipeline_mode = #tpu.pipeline_mode<synchronous>, transform_indices = @transform_2, window_bounds = array<i64: 1, 32>}, {pipeline_mode = #tpu.pipeline_mode<synchronous>, transform_indices = @transform_3, window_bounds = array<i64: 1, 32>}, {transform_indices = @transform_4, window_bounds = array<i64: 1, 8, 8, 32>}]} {
    %c0 = arith.constant 0 : index
    %c0_0 = arith.constant 0 : index
    %c0_1 = arith.constant 0 : index
    %c0_2 = arith.constant 0 : index
    %0 = vector.load %arg2[%c0, %c0_0, %c0_1, %c0_2] : memref<1x16x16x144xbf16, #tpu.memory_space<vmem>>, vector<1x16x16x144xbf16>
    %1 = vector.shape_cast %0 : vector<1x16x16x144xbf16> to vector<16x16x144xbf16>
    %2 = vector.shape_cast %1 : vector<16x16x144xbf16> to vector<256x144xbf16>
    %c0_3 = arith.constant 0 : index
    %c0_4 = arith.constant 0 : index
    %3 = vector.load %arg3[%c0_3, %c0_4] : memref<144x32xbf16, #tpu.memory_space<vmem>>, vector<144x32xbf16>
    %cst = arith.constant dense<0.000000e+00> : vector<256x32xf32>
    %4 = tpu.matmul %2, %3, %cst {dimension_numbers = #tpu.dot_dimension_numbers<[1], [0], [0], [1], [0, 0, 1, 1], [], []>} : vector<256x144xbf16>, vector<144x32xbf16>, vector<256x32xf32> -> vector<256x32xf32>
    %c0_5 = arith.constant 0 : index
    %c0_6 = arith.constant 0 : index
    %5 = vector.load %arg4[%c0_5, %c0_6] : memref<1x32xf32, #tpu.memory_space<vmem>>, vector<1x32xf32>
    %6 = vector.broadcast %5 : vector<1x32xf32> to vector<256x32xf32>
    %7 = arith.mulf %4, %6 : vector<256x32xf32>
    %c0_7 = arith.constant 0 : index
    %c0_8 = arith.constant 0 : index
    %8 = vector.load %arg5[%c0_7, %c0_8] : memref<1x32xf32, #tpu.memory_space<vmem>>, vector<1x32xf32>
    %9 = vector.broadcast %8 : vector<1x32xf32> to vector<256x32xf32>
    %10 = arith.addf %7, %9 : vector<256x32xf32>
    %cst_9 = arith.constant 0.000000e+00 : f32
    %11 = vector.broadcast %cst_9 : f32 to vector<256x32xf32>
    %12 = arith.maximumf %10, %11 : vector<256x32xf32>
    %13 = vector.shape_cast %12 : vector<256x32xf32> to vector<8x2x16x32xf32>
    %cst_10 = arith.constant dense<0xFF800000> : vector<8x16x32xf32>
    %14 = vector.multi_reduction <maximumf>, %13, %cst_10 [1] : vector<8x2x16x32xf32> to vector<8x16x32xf32>
    %15 = vector.shape_cast %14 : vector<8x16x32xf32> to vector<8x8x2x32xf32>
    %cst_11 = arith.constant dense<0xFF800000> : vector<8x8x32xf32>
    %16 = vector.multi_reduction <maximumf>, %15, %cst_11 [2] : vector<8x8x2x32xf32> to vector<8x8x32xf32>
    %17 = arith.truncf %16 : vector<8x8x32xf32> to vector<8x8x32xbf16>
    %c0_12 = arith.constant 0 : index
    %c0_13 = arith.constant 0 : index
    %c0_14 = arith.constant 0 : index
    %c0_15 = arith.constant 0 : index
    %18 = vector.load %arg6[%c0_12, %c0_13, %c0_14, %c0_15] : memref<1x8x8x32xbf16, #tpu.memory_space<vmem>>, vector<1x8x8x32xbf16>
    %19 = vector.shape_cast %18 : vector<1x8x8x32xbf16> to vector<8x8x32xbf16>
    %20 = vector.shape_cast %17 : vector<8x8x32xbf16> to vector<1x8x8x32xbf16>
    tpu.vector_store %arg6[%c0_12, %c0_13, %c0_14, %c0_15], %20 {strides = array<i32>} : memref<1x8x8x32xbf16, #tpu.memory_space<vmem>>, vector<1x8x8x32xbf16>,
    return
  }
  func.func @transform_0(%arg0: i32, %arg1: i32) -> (i32, i32, i32, i32) {
    %c0_i32 = arith.constant 0 : i32
    %c0_i32_0 = arith.constant 0 : i32
    %c0_i32_1 = arith.constant 0 : i32
    return %arg0, %arg1, %c0_i32, %c0_i32_0 : i32, i32, i32, i32
  }
  func.func @transform_1(%arg0: i32, %arg1: i32) -> (i32, i32) {
    %c0_i32 = arith.constant 0 : i32
    %c0_i32_0 = arith.constant 0 : i32
    %c0_i32_1 = arith.constant 0 : i32
    return %c0_i32, %c0_i32_0 : i32, i32
  }
  func.func @transform_2(%arg0: i32, %arg1: i32) -> (i32, i32) {
    %c0_i32 = arith.constant 0 : i32
    %c0_i32_0 = arith.constant 0 : i32
    %c0_i32_1 = arith.constant 0 : i32
    return %c0_i32, %c0_i32_0 : i32, i32
  }
  func.func @transform_3(%arg0: i32, %arg1: i32) -> (i32, i32) {
    %c0_i32 = arith.constant 0 : i32
    %c0_i32_0 = arith.constant 0 : i32
    %c0_i32_1 = arith.constant 0 : i32
    return %c0_i32, %c0_i32_0 : i32, i32
  }
  func.func @transform_4(%arg0: i32, %arg1: i32) -> (i32, i32, i32, i32) {
    %c0_i32 = arith.constant 0 : i32
    %c0_i32_0 = arith.constant 0 : i32
    %c0_i32_1 = arith.constant 0 : i32
    return %arg0, %arg1, %c0_i32, %c0_i32_0 : i32, i32, i32, i32
  }
}

module attributes {stable_mosaic.version = 11 : i64} {
  func.func @_linear_kernel(%arg0: i32, %arg1: memref<2x2048xbf16, #tpu.memory_space<vmem>>, %arg2: memref<16x2048xbf16, #tpu.memory_space<vmem>>, %arg3: memref<1x16xf32, #tpu.memory_space<vmem>>, %arg4: memref<2x16xf32, #tpu.memory_space<vmem>>, %arg5: memref<2x16xf32, #tpu.memory_space<vmem>>) attributes {dimension_semantics = [#tpu.dimension_semantics<arbitrary>], iteration_bounds = array<i64: 1>, scalar_prefetch = 0 : i64, scratch_operands = 1 : i64, tpu.core_type = #tpu.core_type<tc>, window_params = [{transform_indices = @transform_0, window_bounds = array<i64: 2, 2048>}, {transform_indices = @transform_1, window_bounds = array<i64: 16, 2048>}, {pipeline_mode = #tpu.pipeline_mode<synchronous>, transform_indices = @transform_2, window_bounds = array<i64: 1, 16>}, {pipeline_mode = #tpu.pipeline_mode<synchronous>, transform_indices = @transform_3, window_bounds = array<i64: 2, 16>}]} {
    %c0_i32 = arith.constant 0 : i32
    %0 = arith.cmpi eq, %arg0, %c0_i32 : i32
    %1 = arith.extui %0 : i1 to i32
    %c0_i32_0 = arith.constant 0 : i32
    %2 = arith.cmpi ne, %1, %c0_i32_0 : i32
    scf.if %2 {
      %cst_10 = arith.constant 0.000000e+00 : f32
      %12 = vector.broadcast %cst_10 : f32 to vector<2x16xf32>
      %c0_11 = arith.constant 0 : index
      %c0_12 = arith.constant 0 : index
      %13 = vector.load %arg5[%c0_11, %c0_12] : memref<2x16xf32, #tpu.memory_space<vmem>>, vector<2x16xf32>
      tpu.vector_store %arg5[%c0_11, %c0_12], %12 {strides = array<i32>} : memref<2x16xf32, #tpu.memory_space<vmem>>, vector<2x16xf32>,
    } else {
    }
    %c0 = arith.constant 0 : index
    %c0_1 = arith.constant 0 : index
    %3 = vector.load %arg5[%c0, %c0_1] : memref<2x16xf32, #tpu.memory_space<vmem>>, vector<2x16xf32>
    %c0_2 = arith.constant 0 : index
    %c0_3 = arith.constant 0 : index
    %4 = vector.load %arg1[%c0_2, %c0_3] : memref<2x2048xbf16, #tpu.memory_space<vmem>>, vector<2x2048xbf16>
    %c0_4 = arith.constant 0 : index
    %c0_5 = arith.constant 0 : index
    %5 = vector.load %arg2[%c0_4, %c0_5] : memref<16x2048xbf16, #tpu.memory_space<vmem>>, vector<16x2048xbf16>
    %cst = arith.constant dense<0.000000e+00> : vector<2x16xf32>
    %6 = tpu.matmul %4, %5, %cst {dimension_numbers = #tpu.dot_dimension_numbers<[1], [1], [0], [0], [0, 0, 1, 0], [], []>} : vector<2x2048xbf16>, vector<16x2048xbf16>, vector<2x16xf32> -> vector<2x16xf32>
    %7 = arith.addf %3, %6 : vector<2x16xf32>
    %c0_6 = arith.constant 0 : index
    %c0_7 = arith.constant 0 : index
    %8 = vector.load %arg5[%c0_6, %c0_7] : memref<2x16xf32, #tpu.memory_space<vmem>>, vector<2x16xf32>
    tpu.vector_store %arg5[%c0_6, %c0_7], %7 {strides = array<i32>} : memref<2x16xf32, #tpu.memory_space<vmem>>, vector<2x16xf32>,
    %c0_i32_8 = arith.constant 0 : i32
    %9 = arith.cmpi eq, %arg0, %c0_i32_8 : i32
    %10 = arith.extui %9 : i1 to i32
    %c0_i32_9 = arith.constant 0 : i32
    %11 = arith.cmpi ne, %10, %c0_i32_9 : i32
    scf.if %11 {
      %c0_10 = arith.constant 0 : index
      %c0_11 = arith.constant 0 : index
      %12 = vector.load %arg5[%c0_10, %c0_11] : memref<2x16xf32, #tpu.memory_space<vmem>>, vector<2x16xf32>
      %c0_12 = arith.constant 0 : index
      %c0_13 = arith.constant 0 : index
      %13 = vector.load %arg3[%c0_12, %c0_13] : memref<1x16xf32, #tpu.memory_space<vmem>>, vector<1x16xf32>
      %14 = vector.broadcast %13 : vector<1x16xf32> to vector<2x16xf32>
      %15 = arith.addf %12, %14 : vector<2x16xf32>
      %c0_14 = arith.constant 0 : index
      %c0_15 = arith.constant 0 : index
      %16 = vector.load %arg4[%c0_14, %c0_15] : memref<2x16xf32, #tpu.memory_space<vmem>>, vector<2x16xf32>
      tpu.vector_store %arg4[%c0_14, %c0_15], %15 {strides = array<i32>} : memref<2x16xf32, #tpu.memory_space<vmem>>, vector<2x16xf32>,
    } else {
    }
    return
  }
  func.func @transform_0(%arg0: i32) -> (i32, i32) {
    %c0_i32 = arith.constant 0 : i32
    %c0_i32_0 = arith.constant 0 : i32
    return %c0_i32, %arg0 : i32, i32
  }
  func.func @transform_1(%arg0: i32) -> (i32, i32) {
    %c0_i32 = arith.constant 0 : i32
    %c0_i32_0 = arith.constant 0 : i32
    return %c0_i32, %arg0 : i32, i32
  }
  func.func @transform_2(%arg0: i32) -> (i32, i32) {
    %c0_i32 = arith.constant 0 : i32
    %c0_i32_0 = arith.constant 0 : i32
    %c0_i32_1 = arith.constant 0 : i32
    return %c0_i32, %c0_i32_0 : i32, i32
  }
  func.func @transform_3(%arg0: i32) -> (i32, i32) {
    %c0_i32 = arith.constant 0 : i32
    %c0_i32_0 = arith.constant 0 : i32
    %c0_i32_1 = arith.constant 0 : i32
    return %c0_i32, %c0_i32_0 : i32, i32
  }
}

</mosaic_0001>

<llo_original>
// kernel: cnn_forward.3
$region0: #{cnn_forward.3}
  #allocation0 [shape = 'u32[]', space=smem, size = 0x4, offset = 0x4, fixed_abs, tag = 'smem constant byte address 0x4 - core index']
  #allocation1 [shape = 'u32[144,128]{1,0:T(1,128)}', space=vmem, size = 0x12000, scoped, tag = 'internal scratch']
  %s0 = inlined_call_operand.vmem [shape: bf16[2,32,32,27], index: 0, kind: input, shape index: {}]
  %s1 = inlined_call_operand.vmem [shape: bf16[27,16], index: 1, kind: input, shape index: {}]
  %s2 = inlined_call_operand.vmem [shape: f32[1,16], index: 2, kind: input, shape index: {}]
  %s3 = inlined_call_operand.vmem [shape: f32[1,16], index: 3, kind: input, shape index: {}]
  %s4 = inlined_call_operand.vmem [shape: bf16[2,16,16,16], index: 4, kind: output, shape index: {}]
  %s5 = sld [smem:[#allocation0]]
  $region49: #{cnn_forward.3} parent=0
    _
  %s7 = ssub.s32 1, %s5
  %s8 = scalar_select 0, %s7, %s5
  loop: start=0, step=1, limit=6
  $region2: #{cnn_forward.3} parent=0 // loop_pre_header
    _
  $region3: #{cnn_forward.3} parent=0 // loop_header
    %s10 = sphi 0, %s14
    %p11 = scmp.ge.s32.totalorder %s10, 6
    %s17 = sphi 0, %s29
    %s18 = sphi 0, %s25
    %s19 = sphi 0, %s17
    %s20 = sphi 0, %s18
    %s21 = sphi 0, %s19
    %s22 = sphi 0, %s20
    %s34 = sphi 0, %s36
    %s37 = sphi 0, %s34
    %s38 = sphi 0, %s37
    %s54 = sphi 0, %s38
    %s58 = sphi 0, %s58
    %s60 = sphi 0, %s58
    %s61 = sphi 0, %s60
    %s75 = sphi 0, %s61
    %s79 = sphi 0, %s79
    %s81 = sphi 0, %s79
    %s82 = sphi 0, %s81
    %s96 = sphi 0, %s82
    %s100 = sphi 0, %s100
    %s102 = sphi 0, %s100
    %s103 = sphi 0, %s102
    %s117 = sphi 0, %s103
    %s125 = sphi 0, %s127
    %s128 = sphi 0, %s125
    %s129 = sphi 0, %s128
    %s145 = sphi 0, %s129
  $region4: #{cnn_forward.3} parent=0 // loop_header_branch
    %13 = sbr.rel (%p11) target = $region8
  $region5: #{cnn_forward.3} parent=0 // loop_body
    %s15 = ssub.s32 %s10, 1
    %s16 = ssub.s32 %s10, 2
    %s23 = sadd.s32 1, %s18
    %p24 = scmp.ge.s32.totalorder %s23, 2
    %s25 = scalar_select %p24, 0, %s23
    %s26 = sadd.s32 1, %s17
    %s27 = scalar_select %p24, %s26, %s17
    %p28 = scmp.ge.s32.totalorder %s27, 2
    %s29 = scalar_select %p28, 0, %s27
    %s30 = ssub.s32 %s17, %s29
    %s31 = ssub.s32 %s18, %s25
    %s32 = sor.u32 %s30, %s31
    %p33 = scmp.eq.s32.totalorder %s32, 0
    %s35 = sadd.s32 %s34, 1
    %s36 = scalar_select %p33, %s34, %s35
    %p39 = pneg %p33
    %p40 = scmp.eq.s32.totalorder %s10, 3
    %p41 = por %p39, %p40
    %p42 = scmp.ne.s32.totalorder %s34, %s37
    %p43 = scmp.eq.s32.totalorder %s10, 0
    %p44 = por %p42, %p43
    %p45 = scmp.ne.s32.totalorder %s34, %s37
    %p46 = scmp.eq.s32.totalorder %s15, 3
    %p47 = por %p45, %p46
    %p48 = scmp.ne.s32.totalorder %s37, %s38
    %p49 = scmp.eq.s32.totalorder %s15, 0
    %p50 = por %p48, %p49
    %p51 = scmp.ne.s32.totalorder %s37, %s38
    %p52 = scmp.eq.s32.totalorder %s16, 3
    %p53 = por %p51, %p52
    %p55 = scmp.ne.s32.totalorder %s38, %s54
    %p56 = scmp.eq.s32.totalorder %s16, 0
    %p57 = por %p55, %p56
    %s59 = sadd.s32 %s58, 1
    %p62 = scmp.eq.s32.totalorder %s10, 3
    %p63 = scmp.ne.s32.totalorder %s58, %s60
    %p64 = scmp.eq.s32.totalorder %s10, 0
    %p65 = por %p63, %p64
    %p66 = scmp.ne.s32.totalorder %s58, %s60
    %p67 = scmp.eq.s32.totalorder %s15, 3
    %p68 = por %p66, %p67
    %p69 = scmp.ne.s32.totalorder %s60, %s61
    %p70 = scmp.eq.s32.totalorder %s15, 0
    %p71 = por %p69, %p70
    %p72 = scmp.ne.s32.totalorder %s60, %s61
    %p73 = scmp.eq.s32.totalorder %s16, 3
    %p74 = por %p72, %p73
    %p76 = scmp.ne.s32.totalorder %s61, %s75
    %p77 = scmp.eq.s32.totalorder %s16, 0
    %p78 = por %p76, %p77
    %s80 = sadd.s32 %s79, 1
    %p83 = scmp.eq.s32.totalorder %s10, 3
    %p84 = scmp.ne.s32.totalorder %s79, %s81
    %p85 = scmp.eq.s32.totalorder %s10, 0
    %p86 = por %p84, %p85
    %p87 = scmp.ne.s32.totalorder %s79, %s81
    %p88 = scmp.eq.s32.totalorder %s15, 3
    %p89 = por %p87, %p88
    %p90 = scmp.ne.s32.totalorder %s81, %s82
    %p91 = scmp.eq.s32.totalorder %s15, 0
    %p92 = por %p90, %p91
    %p93 = scmp.ne.s32.totalorder %s81, %s82
    %p94 = scmp.eq.s32.totalorder %s16, 3
    %p95 = por %p93, %p94
    %p97 = scmp.ne.s32.totalorder %s82, %s96
    %p98 = scmp.eq.s32.totalorder %s16, 0
    %p99 = por %p97, %p98
    %s101 = sadd.s32 %s100, 1
    %p104 = scmp.eq.s32.totalorder %s10, 3
    %p105 = scmp.ne.s32.totalorder %s100, %s102
    %p106 = scmp.eq.s32.totalorder %s10, 0
    %p107 = por %p105, %p106
    %p108 = scmp.ne.s32.totalorder %s100, %s102
    %p109 = scmp.eq.s32.totalorder %s15, 3
    %p110 = por %p108, %p109
    %p111 = scmp.ne.s32.totalorder %s102, %s103
    %p112 = scmp.eq.s32.totalorder %s15, 0
    %p113 = por %p111, %p112
    %p114 = scmp.ne.s32.totalorder %s102, %s103
    %p115 = scmp.eq.s32.totalorder %s16, 3
    %p116 = por %p114, %p115
    %p118 = scmp.ne.s32.totalorder %s103, %s117
    %p119 = scmp.eq.s32.totalorder %s16, 0
    %p120 = por %p118, %p119
    %s121 = ssub.s32 %s17, %s29
    %s122 = ssub.s32 %s18, %s25
    %s123 = sor.u32 %s121, %s122
    %p124 = scmp.eq.s32.totalorder %s123, 0
    %s126 = sadd.s32 %s125, 1
    %s127 = scalar_select %p124, %s125, %s126
    %p130 = pneg %p124
    %p131 = scmp.eq.s32.totalorder %s10, 3
    %p132 = por %p130, %p131
    %p133 = scmp.ne.s32.totalorder %s125, %s128
    %p134 = scmp.eq.s32.totalorder %s10, 0
    %p135 = por %p133, %p134
    %p136 = scmp.ne.s32.totalorder %s125, %s128
    %p137 = scmp.eq.s32.totalorder %s15, 3
    %p138 = por %p136, %p137
    %p139 = scmp.ne.s32.totalorder %s128, %s129
    %p140 = scmp.eq.s32.totalorder %s15, 0
    %p141 = por %p139, %p140
    %p142 = scmp.ne.s32.totalorder %s128, %s129
    %p143 = scmp.eq.s32.totalorder %s16, 3
    %p144 = por %p142, %p143
    %p146 = scmp.ne.s32.totalorder %s129, %s145
    %p147 = scmp.eq.s32.totalorder %s16, 0
    %p148 = por %p146, %p147
    %p149 = scmp.le.s32.totalorder 1, %s10
    %p150 = scmp.lt.s32.totalorder %s10, 5
    %p151 = pnand %p149, %p150
    %p152 = pneg %p151
    // Predicated region
    $region9: #{cnn_forward.3} parent=5 // pred_check
      _
    $region10: #{cnn_forward.3} parent=5 // pred_check_branch
      %154 = sbr.rel (%p151) target = $region12
    $region11: #{cnn_forward.3} parent=5 // pred_region
      %s155 = ssub.s32 %s10, 1
      // Predicated region
      $region13: #{cnn_forward.3} parent=11 // pred_check
        %p156 = pneg %p71
      $region14: #{cnn_forward.3} parent=11 // pred_check_branch
        %158 = sbr.rel (%p156) target = $region16
      $region15: #{cnn_forward.3} parent=11 // pred_region
        _
      $region16: #{cnn_forward.3} parent=11 // pred_fallthru
        _
      // Predicated region
      $region17: #{cnn_forward.3} parent=11 // pred_check
        %p159 = pneg %p92
      $region18: #{cnn_forward.3} parent=11 // pred_check_branch
        %161 = sbr.rel (%p159) target = $region20
      $region19: #{cnn_forward.3} parent=11 // pred_region
        _
      $region20: #{cnn_forward.3} parent=11 // pred_fallthru
        _
      // Predicated region
      $region21: #{cnn_forward.3} parent=11 // pred_check
        %p162 = pneg %p113
      $region22: #{cnn_forward.3} parent=11 // pred_check_branch
        %164 = sbr.rel (%p162) target = $region24
      $region23: #{cnn_forward.3} parent=11 // pred_region
        _
      $region24: #{cnn_forward.3} parent=11 // pred_fallthru
        _
    $region12: #{cnn_forward.3} parent=5 // pred_fallthru
      _
    %p165 = scmp.lt.s32.totalorder %s10, 4
    // Predicated region
    $region25: #{cnn_forward.3} parent=5 // pred_check
      %p166 = pneg %p165
    $region26: #{cnn_forward.3} parent=5 // pred_check_branch
      %168 = sbr.rel (%p166) target = $region28
    $region27: #{cnn_forward.3} parent=5 // pred_region
      // Predicated region
      $region29: #{cnn_forward.3} parent=27 // pred_check
        %p169 = pneg %p44
      $region30: #{cnn_forward.3} parent=27 // pred_check_branch
        %171 = sbr.rel (%p169) target = $region32
      $region31: #{cnn_forward.3} parent=27 // pred_region
        %s172 = smul.u32 16, %s18
        %p173 = scmp.lt.s32.totalorder %s17, 1
        %s174 = scalar_select %p173, %s17, 1
        %p175 = scmp.lt.s32.totalorder %s172, 31
        %s176 = scalar_select %p175, %s172, 31
        %s177 = smul.addr %s176, 4
        %s178 = smul.addr %s174, 128
        %s179 = sadd.s32 %s177, %s178
        %s180 = smul.addr %s179, 4
        %s181 = scalar_lea.vmem %s0, %s180
        %s182 = smul.u32 16, %s18
      $region32: #{cnn_forward.3} parent=27 // pred_fallthru
        _
    $region28: #{cnn_forward.3} parent=5 // pred_fallthru
      _
    %p183 = scmp.le.s32.totalorder 1, %s10
    %p184 = scmp.lt.s32.totalorder %s10, 5
    %p185 = pnand %p183, %p184
    %p186 = pneg %p185
    // Predicated region
    $region33: #{cnn_forward.3} parent=5 // pred_check
      _
    $region34: #{cnn_forward.3} parent=5 // pred_check_branch
      %188 = sbr.rel (%p185) target = $region36
    $region35: #{cnn_forward.3} parent=5 // pred_region
      %s189 = ssub.s32 %s10, 1
      %s190 = smul.u32 16, %s20
      %p191 = scmp.lt.s32.totalorder %s19, 1
      %s192 = scalar_select %p191, %s19, 1
      %p193 = scmp.lt.s32.totalorder %s190, 31
      %s194 = scalar_select %p193, %s190, 31
      %s195 = smul.addr %s194, 4
      %s196 = smul.addr %s192, 128
      %s197 = sadd.s32 %s195, %s196
      %s198 = smul.addr %s197, 4
      %s199 = scalar_lea.vmem %s0, %s198
      %p200 = pneg %p50
      %p201 = pneg %p47
      %p202 = pneg %p71
      %p203 = pneg %p68
      %p204 = pneg %p92
      %p205 = pneg %p89
      %p206 = pneg %p113
      %p207 = pneg %p110
      %p208 = pneg %p141
      %p209 = pneg %p138
      %s210 = smul.u32 8, %s20
      %p211 = scmp.lt.s32.totalorder %s19, 1
      %s212 = scalar_select %p211, %s19, 1
      %p213 = scmp.lt.s32.totalorder %s210, 15
      %s214 = scalar_select %p213, %s210, 15
      %s215 = smul.addr %s214, 2
      %s216 = smul.addr %s212, 32
      %s217 = sadd.s32 %s215, %s216
      %s218 = smul.addr %s217, 4
      %s219 = scalar_lea.vmem %s4, %s218
      %s220 = smul.u32 16, %s20
      %p221 = scmp.lt.s32.totalorder %s19, 1
      %s222 = scalar_select %p221, %s19, 1
      %p223 = scmp.lt.s32.totalorder %s220, 31
      %s224 = scalar_select %p223, %s220, 31
      %s225 = smul.addr %s224, 4
      %s226 = smul.addr %s222, 128
      %s227 = sadd.s32 %s225, %s226
      %s228 = smul.addr %s227, 4
      %s229 = scalar_lea.vmem %s0, %s228
      %s230 = smul.u32 16, %s20
      %s231 = smul.u32 8, %s20
      %p232 = scmp.lt.s32.totalorder %s19, 1
      %s233 = scalar_select %p232, %s19, 1
      %p234 = scmp.lt.s32.totalorder %s231, 15
      %s235 = scalar_select %p234, %s231, 15
      %s236 = smul.addr %s235, 2
      %s237 = smul.addr %s233, 32
      %s238 = sadd.s32 %s236, %s237
      %s239 = smul.addr %s238, 4
      %s240 = scalar_lea.vmem %s4, %s239
      %s241 = smul.u32 8, %s20
      %v243 = vld [vmem:[%s229] sm:$0xf]
      %v244 = vld [vmem:[%s229 + $0x4] sm:$0xf]
      %v245 = vld [vmem:[%s229 + $0x8] sm:$0xf]
      %v246 = vld [vmem:[%s229 + $0xc] sm:$0xf]
      %v247 = vld [vmem:[%s229 + $0x10] sm:$0xf]
      %v248 = vld [vmem:[%s229 + $0x14] sm:$0xf]
      %v249 = vld [vmem:[%s229 + $0x18] sm:$0xf]
      %v250 = vld [vmem:[%s229 + $0x1c] sm:$0xf]
      %v251 = vld [vmem:[%s229 + $0x20] sm:$0xf]
      %v252 = vld [vmem:[%s229 + $0x24] sm:$0xf]
      %v253 = vld [vmem:[%s229 + $0x28] sm:$0xf]
      %v254 = vld [vmem:[%s229 + $0x2c] sm:$0xf]
      %v255 = vld [vmem:[%s229 + $0x30] sm:$0xf]
      %v256 = vld [vmem:[%s229 + $0x34] sm:$0xf]
      %v257 = vld [vmem:[%s229 + $0x38] sm:$0xf]
      %v258 = vld [vmem:[%s229 + $0x3c] sm:$0xf]
      %v259 = vld [vmem:[%s229 + $0x40] sm:$0xf]
      %v260 = vld [vmem:[%s229 + $0x44] sm:$0xf]
      %v261 = vld [vmem:[%s229 + $0x48] sm:$0xf]
      %v262 = vld [vmem:[%s229 + $0x4c] sm:$0xf]
      %v263 = vld [vmem:[%s229 + $0x50] sm:$0xf]
      %v264 = vld [vmem:[%s229 + $0x54] sm:$0xf]
      %v265 = vld [vmem:[%s229 + $0x58] sm:$0xf]
      %v266 = vld [vmem:[%s229 + $0x5c] sm:$0xf]
      %v267 = vld [vmem:[%s229 + $0x60] sm:$0xf]
      %v268 = vld [vmem:[%s229 + $0x64] sm:$0xf]
      %v269 = vld [vmem:[%s229 + $0x68] sm:$0xf]
      %v270 = vld [vmem:[%s229 + $0x6c] sm:$0xf]
      %v271 = vld [vmem:[%s229 + $0x70] sm:$0xf]
      %v272 = vld [vmem:[%s229 + $0x74] sm:$0xf]
      %v273 = vld [vmem:[%s229 + $0x78] sm:$0xf]
      %v274 = vld [vmem:[%s229 + $0x7c] sm:$0xf]
      %v275 = vld [vmem:[%s229 + $0x80] sm:$0xf]
      %v276 = vld [vmem:[%s229 + $0x84] sm:$0xf]
      %v277 = vld [vmem:[%s229 + $0x88] sm:$0xf]
      %v278 = vld [vmem:[%s229 + $0x8c] sm:$0xf]
      %v279 = vld [vmem:[%s229 + $0x90] sm:$0xf]
      %v280 = vld [vmem:[%s229 + $0x94] sm:$0xf]
      %v281 = vld [vmem:[%s229 + $0x98] sm:$0xf]
      %v282 = vld [vmem:[%s229 + $0x9c] sm:$0xf]
      %v283 = vld [vmem:[%s229 + $0xa0] sm:$0xf]
      %v284 = vld [vmem:[%s229 + $0xa4] sm:$0xf]
      %v285 = vld [vmem:[%s229 + $0xa8] sm:$0xf]
      %v286 = vld [vmem:[%s229 + $0xac] sm:$0xf]
      %v287 = vld [vmem:[%s229 + $0xb0] sm:$0xf]
      %v288 = vld [vmem:[%s229 + $0xb4] sm:$0xf]
      %v289 = vld [vmem:[%s229 + $0xb8] sm:$0xf]
      %v290 = vld [vmem:[%s229 + $0xbc] sm:$0xf]
      %v291 = vld [vmem:[%s229 + $0xc0] sm:$0xf]
      %v292 = vld [vmem:[%s229 + $0xc4] sm:$0xf]
      %v293 = vld [vmem:[%s229 + $0xc8] sm:$0xf]
      %v294 = vld [vmem:[%s229 + $0xcc] sm:$0xf]
      %v295 = vld [vmem:[%s229 + $0xd0] sm:$0xf]
      %v296 = vld [vmem:[%s229 + $0xd4] sm:$0xf]
      %v297 = vld [vmem:[%s229 + $0xd8] sm:$0xf]
      %v298 = vld [vmem:[%s229 + $0xdc] sm:$0xf]
      %v299 = vld [vmem:[%s229 + $0xe0] sm:$0xf]
      %v300 = vld [vmem:[%s229 + $0xe4] sm:$0xf]
      %v301 = vld [vmem:[%s229 + $0xe8] sm:$0xf]
      %v302 = vld [vmem:[%s229 + $0xec] sm:$0xf]
      %v303 = vld [vmem:[%s229 + $0xf0] sm:$0xf]
      %v304 = vld [vmem:[%s229 + $0xf4] sm:$0xf]
      %v305 = vld [vmem:[%s229 + $0xf8] sm:$0xf]
      %v306 = vld [vmem:[%s229 + $0xfc] sm:$0xf]
      %v307 = vld [vmem:[%s1] sm:$0xf]
      %v308 = vld [vmem:[%s1 + $0x4] sm:$0xf]
      %v309 = vld [vmem:[%s1 + $0x8] sm:$0xf]
      %v310 = vld [vmem:[%s1 + $0xc] sm:$0x3]
      %v375 = vunpack.c.l.b16 %v243
      %v376 = vunpack.c.l.b16 %v244
      %v377 = vunpack.c.l.b16 %v245
      %v378 = vunpack.c.l.b16 %v246
      %v379 = vunpack.c.l.b16 %v247
      %v380 = vunpack.c.l.b16 %v248
      %v381 = vunpack.c.l.b16 %v249
      %v382 = vunpack.c.l.b16 %v250
      %v383 = vunpack.c.l.b16 %v251
      %v384 = vunpack.c.l.b16 %v252
      %v385 = vunpack.c.l.b16 %v253
      %v386 = vunpack.c.l.b16 %v254
      %v387 = vunpack.c.l.b16 %v255
      %v388 = vunpack.c.l.b16 %v256
      %v389 = vunpack.c.l.b16 %v257
      %v390 = vunpack.c.l.b16 %v258
      %v391 = vunpack.c.l.b16 %v259
      %v392 = vunpack.c.l.b16 %v260
      %v393 = vunpack.c.l.b16 %v261
      %v394 = vunpack.c.l.b16 %v262
      %v395 = vunpack.c.l.b16 %v263
      %v396 = vunpack.c.l.b16 %v264
      %v397 = vunpack.c.l.b16 %v265
      %v398 = vunpack.c.l.b16 %v266
      %v399 = vunpack.c.l.b16 %v267
      %v400 = vunpack.c.l.b16 %v268
      %v401 = vunpack.c.l.b16 %v269
      %v402 = vunpack.c.l.b16 %v270
      %v403 = vunpack.c.l.b16 %v271
      %v404 = vunpack.c.l.b16 %v272
      %v405 = vunpack.c.l.b16 %v273
      %v406 = vunpack.c.l.b16 %v274
      %v407 = vunpack.c.l.b16 %v275
      %v408 = vunpack.c.l.b16 %v276
      %v409 = vunpack.c.l.b16 %v277
      %v410 = vunpack.c.l.b16 %v278
      %v411 = vunpack.c.l.b16 %v279
      %v412 = vunpack.c.l.b16 %v280
      %v413 = vunpack.c.l.b16 %v281
      %v414 = vunpack.c.l.b16 %v282
      %v415 = vunpack.c.l.b16 %v283
      %v416 = vunpack.c.l.b16 %v284
      %v417 = vunpack.c.l.b16 %v285
      %v418 = vunpack.c.l.b16 %v286
      %v419 = vunpack.c.l.b16 %v287
      %v420 = vunpack.c.l.b16 %v288
      %v421 = vunpack.c.l.b16 %v289
      %v422 = vunpack.c.l.b16 %v290
      %v423 = vunpack.c.l.b16 %v291
      %v424 = vunpack.c.l.b16 %v292
      %v425 = vunpack.c.l.b16 %v293
      %v426 = vunpack.c.l.b16 %v294
      %v427 = vunpack.c.l.b16 %v295
      %v428 = vunpack.c.l.b16 %v296
      %v429 = vunpack.c.l.b16 %v297
      %v430 = vunpack.c.l.b16 %v298
      %v431 = vunpack.c.l.b16 %v299
      %v432 = vunpack.c.l.b16 %v300
      %v433 = vunpack.c.l.b16 %v301
      %v434 = vunpack.c.l.b16 %v302
      %v435 = vunpack.c.l.b16 %v303
      %v436 = vunpack.c.l.b16 %v304
      %v437 = vunpack.c.l.b16 %v305
      %v438 = vunpack.c.l.b16 %v306
      %v439 = vpack.c.b16 %v376, %v375
      %v440 = vpack.c.b16 %v378, %v377
      %v441 = vpack.c.b16 %v380, %v379
      %v442 = vpack.c.b16 %v382, %v381
      %v443 = vpack.c.b16 %v384, %v383
      %v444 = vpack.c.b16 %v386, %v385
      %v445 = vpack.c.b16 %v388, %v387
      %v446 = vpack.c.b16 %v390, %v389
      %v447 = vpack.c.b16 %v392, %v391
      %v448 = vpack.c.b16 %v394, %v393
      %v449 = vpack.c.b16 %v396, %v395
      %v450 = vpack.c.b16 %v398, %v397
      %v451 = vpack.c.b16 %v400, %v399
      %v452 = vpack.c.b16 %v402, %v401
      %v453 = vpack.c.b16 %v404, %v403
      %v454 = vpack.c.b16 %v406, %v405
      %v455 = vpack.c.b16 %v408, %v407
      %v456 = vpack.c.b16 %v410, %v409
      %v457 = vpack.c.b16 %v412, %v411
      %v458 = vpack.c.b16 %v414, %v413
      %v459 = vpack.c.b16 %v416, %v415
      %v460 = vpack.c.b16 %v418, %v417
      %v461 = vpack.c.b16 %v420, %v419
      %v462 = vpack.c.b16 %v422, %v421
      %v463 = vpack.c.b16 %v424, %v423
      %v464 = vpack.c.b16 %v426, %v425
      %v465 = vpack.c.b16 %v428, %v427
      %v466 = vpack.c.b16 %v430, %v429
      %v467 = vpack.c.b16 %v432, %v431
      %v468 = vpack.c.b16 %v434, %v433
      %v469 = vpack.c.b16 %v436, %v435
      %v470 = vpack.c.b16 %v438, %v437
      %v475 = vunpack.c.l.b16 %v307
      %v476 = vunpack.c.l.b16 %v308
      %v477 = vunpack.c.l.b16 %v309
      %v478 = vunpack.c.l.b16 %v310
      %v479 = vpack.c.b16 %v476, %v475
      %v480 = vpack.c.b16 %v478, %v477
      %vm482 = vcmask 220160
      %v484 = vsel %vm482, %v439, 0
      %v487 = vsel %vm482, %v440, 0
      %v490 = vsel %vm482, %v441, 0
      %v493 = vsel %vm482, %v442, 0
      %v496 = vsel %vm482, %v443, 0
      %v499 = vsel %vm482, %v444, 0
      %v502 = vsel %vm482, %v445, 0
      %v505 = vsel %vm482, %v446, 0
      %v508 = vsel %vm482, %v447, 0
      %v511 = vsel %vm482, %v448, 0
      %v514 = vsel %vm482, %v449, 0
      %v517 = vsel %vm482, %v450, 0
      %v520 = vsel %vm482, %v451, 0
      %v523 = vsel %vm482, %v452, 0
      %v526 = vsel %vm482, %v453, 0
      %v529 = vsel %vm482, %v454, 0
      %v532 = vsel %vm482, %v455, 0
      %v535 = vsel %vm482, %v456, 0
      %v538 = vsel %vm482, %v457, 0
      %v541 = vsel %vm482, %v458, 0
      %v544 = vsel %vm482, %v459, 0
      %v547 = vsel %vm482, %v460, 0
      %v550 = vsel %vm482, %v461, 0
      %v553 = vsel %vm482, %v462, 0
      %v556 = vsel %vm482, %v463, 0
      %v559 = vsel %vm482, %v464, 0
      %v562 = vsel %vm482, %v465, 0
      %v565 = vsel %vm482, %v466, 0
      %v568 = vsel %vm482, %v467, 0
      %v571 = vsel %vm482, %v468, 0
      %v574 = vsel %vm482, %v469, 0
      %v577 = vsel %vm482, %v470, 0
      %vm579 = vcmask 1044480
      %vm580 = vcmask 1045504
      %v581 = vsel %vm579, 4294967295, 65535
      %v582 = vsel %vm580, %v581, 0
      %v584 = vand.u32 %v480, %v582
      %586 = vmatprep.subr.bf16.mxu0 0
      %587 = vmatpush1.bf16.msra.mxu0 %v479
      %588 = vmatprep.subr.bf16.mxu0 0
      %589 = vmatpush1.bf16.msra.mxu0 %v584
      %590 = vmatprep.subr.bf16.mxu0 0
      %591 = vmatpush1.bf16.msra.mxu0 0
      %592 = vmatprep.subr.bf16.mxu0 0
      %593 = vmatpush1.bf16.msra.mxu0 0
      %594 = vmatprep.subr.bf16.mxu0 0
      %595 = vmatpush1.bf16.msra.mxu0 0
      %596 = vmatprep.subr.bf16.mxu0 0
      %597 = vmatpush1.bf16.msra.mxu0 0
      %598 = vmatprep.subr.bf16.mxu0 0
      %599 = vmatpush1.bf16.msra.mxu0 0
      %600 = vmatprep.subr.bf16.mxu0 0
      %601 = vmatpush1.bf16.msra.mxu0 0
      %602 = vmatprep.subr.bf16.mxu0 0
      %603 = vmatpush1.bf16.msra.mxu0 0
      %604 = vmatprep.subr.bf16.mxu0 0
      %605 = vmatpush1.bf16.msra.mxu0 0
      %606 = vmatprep.subr.bf16.mxu0 0
      %607 = vmatpush1.bf16.msra.mxu0 0
      %608 = vmatprep.subr.bf16.mxu0 0
      %609 = vmatpush1.bf16.msra.mxu0 0
      %610 = vmatprep.subr.bf16.mxu0 0
      %611 = vmatpush1.bf16.msra.mxu0 0
      %612 = vmatprep.subr.bf16.mxu0 0
      %613 = vmatpush1.bf16.msra.mxu0 0
      %614 = vmatprep.subr.bf16.mxu0 0
      %615 = vmatpush1.bf16.msra.mxu0 0
      %616 = vmatprep.subr.bf16.mxu0 0
      %617 = vmatpush1.bf16.msra.mxu0 0
      %618 = vmatprep.mubr.bf16.mxu0 0
      %619 = vmatmul.mubr.bf16.gmra.mrb[0].mxu0 %v484
      %v620 = vpop.f32.mrb[0].mxu0
      %v621 = vadd.f32 0.0, %v620
      %v622 = vpop.f32.mrb[0].mxu0
      %v623 = vpop.f32.mrb[0].mxu0
      %v624 = vadd.f32 0.0, %v623
      %v625 = vpop.f32.mrb[0].mxu0
      %626 = vmatprep.mubr.bf16.mxu0 0
      %627 = vmatmul.mubr.bf16.gmra.mrb[0].mxu0 %v487
      %v628 = vpop.f32.mrb[0].mxu0
      %v629 = vadd.f32 0.0, %v628
      %v630 = vpop.f32.mrb[0].mxu0
      %v631 = vpop.f32.mrb[0].mxu0
      %v632 = vadd.f32 0.0, %v631
      %v633 = vpop.f32.mrb[0].mxu0
      %634 = vmatprep.mubr.bf16.mxu0 0
      %635 = vmatmul.mubr.bf16.gmra.mrb[0].mxu0 %v490
      %v636 = vpop.f32.mrb[0].mxu0
      %v637 = vadd.f32 0.0, %v636
      %v638 = vpop.f32.mrb[0].mxu0
      %v639 = vpop.f32.mrb[0].mxu0
      %v640 = vadd.f32 0.0, %v639
      %v641 = vpop.f32.mrb[0].mxu0
      %642 = vmatprep.mubr.bf16.mxu0 0
      %643 = vmatmul.mubr.bf16.gmra.mrb[0].mxu0 %v493
      %v644 = vpop.f32.mrb[0].mxu0
      %v645 = vadd.f32 0.0, %v644
      %v646 = vpop.f32.mrb[0].mxu0
      %v647 = vpop.f32.mrb[0].mxu0
      %v648 = vadd.f32 0.0, %v647
      %v649 = vpop.f32.mrb[0].mxu0
      %650 = vmatprep.mubr.bf16.mxu0 0
      %651 = vmatmul.mubr.bf16.gmra.mrb[0].mxu0 %v496
      %v652 = vpop.f32.mrb[0].mxu0
      %v653 = vadd.f32 0.0, %v652
      %v654 = vpop.f32.mrb[0].mxu0
      %v655 = vpop.f32.mrb[0].mxu0
      %v656 = vadd.f32 0.0, %v655
      %v657 = vpop.f32.mrb[0].mxu0
      %658 = vmatprep.mubr.bf16.mxu0 0
      %659 = vmatmul.mubr.bf16.gmra.mrb[0].mxu0 %v499
      %v660 = vpop.f32.mrb[0].mxu0
      %v661 = vadd.f32 0.0, %v660
      %v662 = vpop.f32.mrb[0].mxu0
      %v663 = vpop.f32.mrb[0].mxu0
      %v664 = vadd.f32 0.0, %v663
      %v665 = vpop.f32.mrb[0].mxu0
      %666 = vmatprep.mubr.bf16.mxu0 0
      %667 = vmatmul.mubr.bf16.gmra.mrb[0].mxu0 %v502
      %v668 = vpop.f32.mrb[0].mxu0
      %v669 = vadd.f32 0.0, %v668
      %v670 = vpop.f32.mrb[0].mxu0
      %v671 = vpop.f32.mrb[0].mxu0
      %v672 = vadd.f32 0.0, %v671
      %v673 = vpop.f32.mrb[0].mxu0
      %674 = vmatprep.mubr.bf16.mxu0 0
      %675 = vmatmul.mubr.bf16.gmra.mrb[0].mxu0 %v505
      %v676 = vpop.f32.mrb[0].mxu0
      %v677 = vadd.f32 0.0, %v676
      %v678 = vpop.f32.mrb[0].mxu0
      %v679 = vpop.f32.mrb[0].mxu0
      %v680 = vadd.f32 0.0, %v679
      %v681 = vpop.f32.mrb[0].mxu0
      %682 = vmatprep.mubr.bf16.mxu0 0
      %683 = vmatmul.mubr.bf16.gmra.mrb[0].mxu0 %v508
      %v684 = vpop.f32.mrb[0].mxu0
      %v685 = vadd.f32 0.0, %v684
      %v686 = vpop.f32.mrb[0].mxu0
      %v687 = vpop.f32.mrb[0].mxu0
      %v688 = vadd.f32 0.0, %v687
      %v689 = vpop.f32.mrb[0].mxu0
      %690 = vmatprep.mubr.bf16.mxu0 0
      %691 = vmatmul.mubr.bf16.gmra.mrb[0].mxu0 %v511
      %v692 = vpop.f32.mrb[0].mxu0
      %v693 = vadd.f32 0.0, %v692
      %v694 = vpop.f32.mrb[0].mxu0
      %v695 = vpop.f32.mrb[0].mxu0
      %v696 = vadd.f32 0.0, %v695
      %v697 = vpop.f32.mrb[0].mxu0
      %698 = vmatprep.mubr.bf16.mxu0 0
      %699 = vmatmul.mubr.bf16.gmra.mrb[0].mxu0 %v514
      %v700 = vpop.f32.mrb[0].mxu0
      %v701 = vadd.f32 0.0, %v700
      %v702 = vpop.f32.mrb[0].mxu0
      %v703 = vpop.f32.mrb[0].mxu0
      %v704 = vadd.f32 0.0, %v703
      %v705 = vpop.f32.mrb[0].mxu0
      %706 = vmatprep.mubr.bf16.mxu0 0
      %707 = vmatmul.mubr.bf16.gmra.mrb[0].mxu0 %v517
      %v708 = vpop.f32.mrb[0].mxu0
      %v709 = vadd.f32 0.0, %v708
      %v710 = vpop.f32.mrb[0].mxu0
      %v711 = vpop.f32.mrb[0].mxu0
      %v712 = vadd.f32 0.0, %v711
      %v713 = vpop.f32.mrb[0].mxu0
      %714 = vmatprep.mubr.bf16.mxu0 0
      %715 = vmatmul.mubr.bf16.gmra.mrb[0].mxu0 %v520
      %v716 = vpop.f32.mrb[0].mxu0
      %v717 = vadd.f32 0.0, %v716
      %v718 = vpop.f32.mrb[0].mxu0
      %v719 = vpop.f32.mrb[0].mxu0
      %v720 = vadd.f32 0.0, %v719
      %v721 = vpop.f32.mrb[0].mxu0
      %722 = vmatprep.mubr.bf16.mxu0 0
      %723 = vmatmul.mubr.bf16.gmra.mrb[0].mxu0 %v523
      %v724 = vpop.f32.mrb[0].mxu0
      %v725 = vadd.f32 0.0, %v724
      %v726 = vpop.f32.mrb[0].mxu0
      %v727 = vpop.f32.mrb[0].mxu0
      %v728 = vadd.f32 0.0, %v727
      %v729 = vpop.f32.mrb[0].mxu0
      %730 = vmatprep.mubr.bf16.mxu0 0
      %731 = vmatmul.mubr.bf16.gmra.mrb[0].mxu0 %v526
      %v732 = vpop.f32.mrb[0].mxu0
      %v733 = vadd.f32 0.0, %v732
      %v734 = vpop.f32.mrb[0].mxu0
      %v735 = vpop.f32.mrb[0].mxu0
      %v736 = vadd.f32 0.0, %v735
      %v737 = vpop.f32.mrb[0].mxu0
      %738 = vmatprep.mubr.bf16.mxu0 0
      %739 = vmatmul.mubr.bf16.gmra.mrb[0].mxu0 %v529
      %v740 = vpop.f32.mrb[0].mxu0
      %v741 = vadd.f32 0.0, %v740
      %v742 = vpop.f32.mrb[0].mxu0
      %v743 = vpop.f32.mrb[0].mxu0
      %v744 = vadd.f32 0.0, %v743
      %v745 = vpop.f32.mrb[0].mxu0
      %746 = vmatprep.mubr.bf16.mxu0 0
      %747 = vmatmul.mubr.bf16.gmra.mrb[0].mxu0 %v532
      %v748 = vpop.f32.mrb[0].mxu0
      %v749 = vadd.f32 0.0, %v748
      %v750 = vpop.f32.mrb[0].mxu0
      %v751 = vpop.f32.mrb[0].mxu0
      %v752 = vadd.f32 0.0, %v751
      %v753 = vpop.f32.mrb[0].mxu0
      %754 = vmatprep.mubr.bf16.mxu0 0
      %755 = vmatmul.mubr.bf16.gmra.mrb[0].mxu0 %v535
      %v756 = vpop.f32.mrb[0].mxu0
      %v757 = vadd.f32 0.0, %v756
      %v758 = vpop.f32.mrb[0].mxu0
      %v759 = vpop.f32.mrb[0].mxu0
      %v760 = vadd.f32 0.0, %v759
      %v761 = vpop.f32.mrb[0].mxu0
      %762 = vmatprep.mubr.bf16.mxu0 0
      %763 = vmatmul.mubr.bf16.gmra.mrb[0].mxu0 %v538
      %v764 = vpop.f32.mrb[0].mxu0
      %v765 = vadd.f32 0.0, %v764
      %v766 = vpop.f32.mrb[0].mxu0
      %v767 = vpop.f32.mrb[0].mxu0
      %v768 = vadd.f32 0.0, %v767
      %v769 = vpop.f32.mrb[0].mxu0
      %770 = vmatprep.mubr.bf16.mxu0 0
      %771 = vmatmul.mubr.bf16.gmra.mrb[0].mxu0 %v541
      %v772 = vpop.f32.mrb[0].mxu0
      %v773 = vadd.f32 0.0, %v772
      %v774 = vpop.f32.mrb[0].mxu0
      %v775 = vpop.f32.mrb[0].mxu0
      %v776 = vadd.f32 0.0, %v775
      %v777 = vpop.f32.mrb[0].mxu0
      %778 = vmatprep.mubr.bf16.mxu0 0
      %779 = vmatmul.mubr.bf16.gmra.mrb[0].mxu0 %v544
      %v780 = vpop.f32.mrb[0].mxu0
      %v781 = vadd.f32 0.0, %v780
      %v782 = vpop.f32.mrb[0].mxu0
      %v783 = vpop.f32.mrb[0].mxu0
      %v784 = vadd.f32 0.0, %v783
      %v785 = vpop.f32.mrb[0].mxu0
      %786 = vmatprep.mubr.bf16.mxu0 0
      %787 = vmatmul.mubr.bf16.gmra.mrb[0].mxu0 %v547
      %v788 = vpop.f32.mrb[0].mxu0
      %v789 = vadd.f32 0.0, %v788
      %v790 = vpop.f32.mrb[0].mxu0
      %v791 = vpop.f32.mrb[0].mxu0
      %v792 = vadd.f32 0.0, %v791
      %v793 = vpop.f32.mrb[0].mxu0
      %794 = vmatprep.mubr.bf16.mxu0 0
      %795 = vmatmul.mubr.bf16.gmra.mrb[0].mxu0 %v550
      %v796 = vpop.f32.mrb[0].mxu0
      %v797 = vadd.f32 0.0, %v796
      %v798 = vpop.f32.mrb[0].mxu0
      %v799 = vpop.f32.mrb[0].mxu0
      %v800 = vadd.f32 0.0, %v799
      %v801 = vpop.f32.mrb[0].mxu0
      %802 = vmatprep.mubr.bf16.mxu0 0
      %803 = vmatmul.mubr.bf16.gmra.mrb[0].mxu0 %v553
      %v804 = vpop.f32.mrb[0].mxu0
      %v805 = vadd.f32 0.0, %v804
      %v806 = vpop.f32.mrb[0].mxu0
      %v807 = vpop.f32.mrb[0].mxu0
      %v808 = vadd.f32 0.0, %v807
      %v809 = vpop.f32.mrb[0].mxu0
      %810 = vmatprep.mubr.bf16.mxu0 0
      %811 = vmatmul.mubr.bf16.gmra.mrb[0].mxu0 %v556
      %v812 = vpop.f32.mrb[0].mxu0
      %v813 = vadd.f32 0.0, %v812
      %v814 = vpop.f32.mrb[0].mxu0
      %v815 = vpop.f32.mrb[0].mxu0
      %v816 = vadd.f32 0.0, %v815
      %v817 = vpop.f32.mrb[0].mxu0
      %818 = vmatprep.mubr.bf16.mxu0 0
      %819 = vmatmul.mubr.bf16.gmra.mrb[0].mxu0 %v559
      %v820 = vpop.f32.mrb[0].mxu0
      %v821 = vadd.f32 0.0, %v820
      %v822 = vpop.f32.mrb[0].mxu0
      %v823 = vpop.f32.mrb[0].mxu0
      %v824 = vadd.f32 0.0, %v823
      %v825 = vpop.f32.mrb[0].mxu0
      %826 = vmatprep.mubr.bf16.mxu0 0
      %827 = vmatmul.mubr.bf16.gmra.mrb[0].mxu0 %v562
      %v828 = vpop.f32.mrb[0].mxu0
      %v829 = vadd.f32 0.0, %v828
      %v830 = vpop.f32.mrb[0].mxu0
      %v831 = vpop.f32.mrb[0].mxu0
      %v832 = vadd.f32 0.0, %v831
      %v833 = vpop.f32.mrb[0].mxu0
      %834 = vmatprep.mubr.bf16.mxu0 0
      %835 = vmatmul.mubr.bf16.gmra.mrb[0].mxu0 %v565
      %v836 = vpop.f32.mrb[0].mxu0
      %v837 = vadd.f32 0.0, %v836
      %v838 = vpop.f32.mrb[0].mxu0
      %v839 = vpop.f32.mrb[0].mxu0
      %v840 = vadd.f32 0.0, %v839
      %v841 = vpop.f32.mrb[0].mxu0
      %842 = vmatprep.mubr.bf16.mxu0 0
      %843 = vmatmul.mubr.bf16.gmra.mrb[0].mxu0 %v568
      %v844 = vpop.f32.mrb[0].mxu0
      %v845 = vadd.f32 0.0, %v844
      %v846 = vpop.f32.mrb[0].mxu0
      %v847 = vpop.f32.mrb[0].mxu0
      %v848 = vadd.f32 0.0, %v847
      %v849 = vpop.f32.mrb[0].mxu0
      %850 = vmatprep.mubr.bf16.mxu0 0
      %851 = vmatmul.mubr.bf16.gmra.mrb[0].mxu0 %v571
      %v852 = vpop.f32.mrb[0].mxu0
      %v853 = vadd.f32 0.0, %v852
      %v854 = vpop.f32.mrb[0].mxu0
      %v855 = vpop.f32.mrb[0].mxu0
      %v856 = vadd.f32 0.0, %v855
      %v857 = vpop.f32.mrb[0].mxu0
      %858 = vmatprep.mubr.bf16.mxu0 0
      %859 = vmatmul.mubr.bf16.gmra.mrb[0].mxu0 %v574
      %v860 = vpop.f32.mrb[0].mxu0
      %v861 = vadd.f32 0.0, %v860
      %v862 = vpop.f32.mrb[0].mxu0
      %v863 = vpop.f32.mrb[0].mxu0
      %v864 = vadd.f32 0.0, %v863
      %v865 = vpop.f32.mrb[0].mxu0
      %866 = vmatprep.mubr.bf16.mxu0 0
      %867 = vmatmul.mubr.bf16.gmra.mrb[0].mxu0 %v577
      %v868 = vpop.f32.mrb[0].mxu0
      %v869 = vadd.f32 0.0, %v868
      %v870 = vpop.f32.mrb[0].mxu0
      %v871 = vpop.f32.mrb[0].mxu0
      %v872 = vadd.f32 0.0, %v871
      %v873 = vpop.f32.mrb[0].mxu0
      %874 = vdwg.mxu0
      %v875 = vld [vmem:[%s2] sm:$0x1]
      %v877 = vlaneseq
      %v878 = vshrl.u32 %v877, 7
      %v879 = vsub.s32 0, %v878
      %v880 = vrot.slane %v875, %v879
      %v882 = vmul.f32 %v621, %v880
      %v883 = vmul.f32 %v624, %v880
      %v884 = vmul.f32 %v629, %v880
      %v885 = vmul.f32 %v632, %v880
      %v886 = vmul.f32 %v637, %v880
      %v887 = vmul.f32 %v640, %v880
      %v888 = vmul.f32 %v645, %v880
      %v889 = vmul.f32 %v648, %v880
      %v890 = vmul.f32 %v653, %v880
      %v891 = vmul.f32 %v656, %v880
      %v892 = vmul.f32 %v661, %v880
      %v893 = vmul.f32 %v664, %v880
      %v894 = vmul.f32 %v669, %v880
      %v895 = vmul.f32 %v672, %v880
      %v896 = vmul.f32 %v677, %v880
      %v897 = vmul.f32 %v680, %v880
      %v898 = vmul.f32 %v685, %v880
      %v899 = vmul.f32 %v688, %v880
      %v900 = vmul.f32 %v693, %v880
      %v901 = vmul.f32 %v696, %v880
      %v902 = vmul.f32 %v701, %v880
      %v903 = vmul.f32 %v704, %v880
      %v904 = vmul.f32 %v709, %v880
      %v905 = vmul.f32 %v712, %v880
      %v906 = vmul.f32 %v717, %v880
      %v907 = vmul.f32 %v720, %v880
      %v908 = vmul.f32 %v725, %v880
      %v909 = vmul.f32 %v728, %v880
      %v910 = vmul.f32 %v733, %v880
      %v911 = vmul.f32 %v736, %v880
      %v912 = vmul.f32 %v741, %v880
      %v913 = vmul.f32 %v744, %v880
      %v914 = vmul.f32 %v749, %v880
      %v915 = vmul.f32 %v752, %v880
      %v916 = vmul.f32 %v757, %v880
      %v917 = vmul.f32 %v760, %v880
      %v918 = vmul.f32 %v765, %v880
      %v919 = vmul.f32 %v768, %v880
      %v920 = vmul.f32 %v773, %v880
      %v921 = vmul.f32 %v776, %v880
      %v922 = vmul.f32 %v781, %v880
      %v923 = vmul.f32 %v784, %v880
      %v924 = vmul.f32 %v789, %v880
      %v925 = vmul.f32 %v792, %v880
      %v926 = vmul.f32 %v797, %v880
      %v927 = vmul.f32 %v800, %v880
      %v928 = vmul.f32 %v805, %v880
      %v929 = vmul.f32 %v808, %v880
      %v930 = vmul.f32 %v813, %v880
      %v931 = vmul.f32 %v816, %v880
      %v932 = vmul.f32 %v821, %v880
      %v933 = vmul.f32 %v824, %v880
      %v934 = vmul.f32 %v829, %v880
      %v935 = vmul.f32 %v832, %v880
      %v936 = vmul.f32 %v837, %v880
      %v937 = vmul.f32 %v840, %v880
      %v938 = vmul.f32 %v845, %v880
      %v939 = vmul.f32 %v848, %v880
      %v940 = vmul.f32 %v853, %v880
      %v941 = vmul.f32 %v856, %v880
      %v942 = vmul.f32 %v861, %v880
      %v943 = vmul.f32 %v864, %v880
      %v944 = vmul.f32 %v869, %v880
      %v945 = vmul.f32 %v872, %v880
      %v946 = vld [vmem:[%s3] sm:$0x1]
      %v948 = vlaneseq
      %v949 = vshrl.u32 %v948, 7
      %v950 = vsub.s32 0, %v949
      %v951 = vrot.slane %v946, %v950
      %v953 = vadd.f32 %v882, %v951
      %v954 = vadd.f32 %v883, %v951
      %v955 = vadd.f32 %v884, %v951
      %v956 = vadd.f32 %v885, %v951
      %v957 = vadd.f32 %v886, %v951
      %v958 = vadd.f32 %v887, %v951
      %v959 = vadd.f32 %v888, %v951
      %v960 = vadd.f32 %v889, %v951
      %v961 = vadd.f32 %v890, %v951
      %v962 = vadd.f32 %v891, %v951
      %v963 = vadd.f32 %v892, %v951
      %v964 = vadd.f32 %v893, %v951
      %v965 = vadd.f32 %v894, %v951
      %v966 = vadd.f32 %v895, %v951
      %v967 = vadd.f32 %v896, %v951
      %v968 = vadd.f32 %v897, %v951
      %v969 = vadd.f32 %v898, %v951
      %v970 = vadd.f32 %v899, %v951
      %v971 = vadd.f32 %v900, %v951
      %v972 = vadd.f32 %v901, %v951
      %v973 = vadd.f32 %v902, %v951
      %v974 = vadd.f32 %v903, %v951
      %v975 = vadd.f32 %v904, %v951
      %v976 = vadd.f32 %v905, %v951
      %v977 = vadd.f32 %v906, %v951
      %v978 = vadd.f32 %v907, %v951
      %v979 = vadd.f32 %v908, %v951
      %v980 = vadd.f32 %v909, %v951
      %v981 = vadd.f32 %v910, %v951
      %v982 = vadd.f32 %v911, %v951
      %v983 = vadd.f32 %v912, %v951
      %v984 = vadd.f32 %v913, %v951
      %v985 = vadd.f32 %v914, %v951
      %v986 = vadd.f32 %v915, %v951
      %v987 = vadd.f32 %v916, %v951
      %v988 = vadd.f32 %v917, %v951
      %v989 = vadd.f32 %v918, %v951
      %v990 = vadd.f32 %v919, %v951
      %v991 = vadd.f32 %v920, %v951
      %v992 = vadd.f32 %v921, %v951
      %v993 = vadd.f32 %v922, %v951
      %v994 = vadd.f32 %v923, %v951
      %v995 = vadd.f32 %v924, %v951
      %v996 = vadd.f32 %v925, %v951
      %v997 = vadd.f32 %v926, %v951
      %v998 = vadd.f32 %v927, %v951
      %v999 = vadd.f32 %v928, %v951
      %v1000 = vadd.f32 %v929, %v951
      %v1001 = vadd.f32 %v930, %v951
      %v1002 = vadd.f32 %v931, %v951
      %v1003 = vadd.f32 %v932, %v951
      %v1004 = vadd.f32 %v933, %v951
      %v1005 = vadd.f32 %v934, %v951
      %v1006 = vadd.f32 %v935, %v951
      %v1007 = vadd.f32 %v936, %v951
      %v1008 = vadd.f32 %v937, %v951
      %v1009 = vadd.f32 %v938, %v951
      %v1010 = vadd.f32 %v939, %v951
      %v1011 = vadd.f32 %v940, %v951
      %v1012 = vadd.f32 %v941, %v951
      %v1013 = vadd.f32 %v942, %v951
      %v1014 = vadd.f32 %v943, %v951
      %v1015 = vadd.f32 %v944, %v951
      %v1016 = vadd.f32 %v945, %v951
      %v1017 = vmax.f32 %v953, 0.0
      %v1018 = vmax.f32 %v954, 0.0
      %v1019 = vmax.f32 %v955, 0.0
      %v1020 = vmax.f32 %v956, 0.0
      %v1021 = vmax.f32 %v957, 0.0
      %v1022 = vmax.f32 %v958, 0.0
      %v1023 = vmax.f32 %v959, 0.0
      %v1024 = vmax.f32 %v960, 0.0
      %v1025 = vmax.f32 %v961, 0.0
      %v1026 = vmax.f32 %v962, 0.0
      %v1027 = vmax.f32 %v963, 0.0
      %v1028 = vmax.f32 %v964, 0.0
      %v1029 = vmax.f32 %v965, 0.0
      %v1030 = vmax.f32 %v966, 0.0
      %v1031 = vmax.f32 %v967, 0.0
      %v1032 = vmax.f32 %v968, 0.0
      %v1033 = vmax.f32 %v969, 0.0
      %v1034 = vmax.f32 %v970, 0.0
      %v1035 = vmax.f32 %v971, 0.0
      %v1036 = vmax.f32 %v972, 0.0
      %v1037 = vmax.f32 %v973, 0.0
      %v1038 = vmax.f32 %v974, 0.0
      %v1039 = vmax.f32 %v975, 0.0
      %v1040 = vmax.f32 %v976, 0.0
      %v1041 = vmax.f32 %v977, 0.0
      %v1042 = vmax.f32 %v978, 0.0
      %v1043 = vmax.f32 %v979, 0.0
      %v1044 = vmax.f32 %v980, 0.0
      %v1045 = vmax.f32 %v981, 0.0
      %v1046 = vmax.f32 %v982, 0.0
      %v1047 = vmax.f32 %v983, 0.0
      %v1048 = vmax.f32 %v984, 0.0
      %v1049 = vmax.f32 %v985, 0.0
      %v1050 = vmax.f32 %v986, 0.0
      %v1051 = vmax.f32 %v987, 0.0
      %v1052 = vmax.f32 %v988, 0.0
      %v1053 = vmax.f32 %v989, 0.0
      %v1054 = vmax.f32 %v990, 0.0
      %v1055 = vmax.f32 %v991, 0.0
      %v1056 = vmax.f32 %v992, 0.0
      %v1057 = vmax.f32 %v993, 0.0
      %v1058 = vmax.f32 %v994, 0.0
      %v1059 = vmax.f32 %v995, 0.0
      %v1060 = vmax.f32 %v996, 0.0
      %v1061 = vmax.f32 %v997, 0.0
      %v1062 = vmax.f32 %v998, 0.0
      %v1063 = vmax.f32 %v999, 0.0
      %v1064 = vmax.f32 %v1000, 0.0
      %v1065 = vmax.f32 %v1001, 0.0
      %v1066 = vmax.f32 %v1002, 0.0
      %v1067 = vmax.f32 %v1003, 0.0
      %v1068 = vmax.f32 %v1004, 0.0
      %v1069 = vmax.f32 %v1005, 0.0
      %v1070 = vmax.f32 %v1006, 0.0
      %v1071 = vmax.f32 %v1007, 0.0
      %v1072 = vmax.f32 %v1008, 0.0
      %v1073 = vmax.f32 %v1009, 0.0
      %v1074 = vmax.f32 %v1010, 0.0
      %v1075 = vmax.f32 %v1011, 0.0
      %v1076 = vmax.f32 %v1012, 0.0
      %v1077 = vmax.f32 %v1013, 0.0
      %v1078 = vmax.f32 %v1014, 0.0
      %v1079 = vmax.f32 %v1015, 0.0
      %v1080 = vmax.f32 %v1016, 0.0
      %vm1081 = vcmask 130048
      %v1082 = vsel %vm1081, %v1017, -inf
      %v1083 = vsel %vm1081, %v1021, -inf
      %v1084 = vmax.f32 %v1082, %v1083
      %v1085 = vsel %vm1081, %v1018, -inf
      %v1086 = vsel %vm1081, %v1022, -inf
      %v1087 = vmax.f32 %v1085, %v1086
      %v1088 = vsel %vm1081, %v1019, -inf
      %v1089 = vsel %vm1081, %v1023, -inf
      %v1090 = vmax.f32 %v1088, %v1089
      %v1091 = vsel %vm1081, %v1020, -inf
      %v1092 = vsel %vm1081, %v1024, -inf
      %v1093 = vmax.f32 %v1091, %v1092
      %v1094 = vsel %vm1081, %v1025, -inf
      %v1095 = vsel %vm1081, %v1029, -inf
      %v1096 = vmax.f32 %v1094, %v1095
      %v1097 = vsel %vm1081, %v1026, -inf
      %v1098 = vsel %vm1081, %v1030, -inf
      %v1099 = vmax.f32 %v1097, %v1098
      %v1100 = vsel %vm1081, %v1027, -inf
      %v1101 = vsel %vm1081, %v1031, -inf
      %v1102 = vmax.f32 %v1100, %v1101
      %v1103 = vsel %vm1081, %v1028, -inf
      %v1104 = vsel %vm1081, %v1032, -inf
      %v1105 = vmax.f32 %v1103, %v1104
      %v1106 = vsel %vm1081, %v1033, -inf
      %v1107 = vsel %vm1081, %v1037, -inf
      %v1108 = vmax.f32 %v1106, %v1107
      %v1109 = vsel %vm1081, %v1034, -inf
      %v1110 = vsel %vm1081, %v1038, -inf
      %v1111 = vmax.f32 %v1109, %v1110
      %v1112 = vsel %vm1081, %v1035, -inf
      %v1113 = vsel %vm1081, %v1039, -inf
      %v1114 = vmax.f32 %v1112, %v1113
      %v1115 = vsel %vm1081, %v1036, -inf
      %v1116 = vsel %vm1081, %v1040, -inf
      %v1117 = vmax.f32 %v1115, %v1116
      %v1118 = vsel %vm1081, %v1041, -inf
      %v1119 = vsel %vm1081, %v1045, -inf
      %v1120 = vmax.f32 %v1118, %v1119
      %v1121 = vsel %vm1081, %v1042, -inf
      %v1122 = vsel %vm1081, %v1046, -inf
      %v1123 = vmax.f32 %v1121, %v1122
      %v1124 = vsel %vm1081, %v1043, -inf
      %v1125 = vsel %vm1081, %v1047, -inf
      %v1126 = vmax.f32 %v1124, %v1125
      %v1127 = vsel %vm1081, %v1044, -inf
      %v1128 = vsel %vm1081, %v1048, -inf
      %v1129 = vmax.f32 %v1127, %v1128
      %v1130 = vsel %vm1081, %v1049, -inf
      %v1131 = vsel %vm1081, %v1053, -inf
      %v1132 = vmax.f32 %v1130, %v1131
      %v1133 = vsel %vm1081, %v1050, -inf
      %v1134 = vsel %vm1081, %v1054, -inf
      %v1135 = vmax.f32 %v1133, %v1134
      %v1136 = vsel %vm1081, %v1051, -inf
      %v1137 = vsel %vm1081, %v1055, -inf
      %v1138 = vmax.f32 %v1136, %v1137
      %v1139 = vsel %vm1081, %v1052, -inf
      %v1140 = vsel %vm1081, %v1056, -inf
      %v1141 = vmax.f32 %v1139, %v1140
      %v1142 = vsel %vm1081, %v1057, -inf
      %v1143 = vsel %vm1081, %v1061, -inf
      %v1144 = vmax.f32 %v1142, %v1143
      %v1145 = vsel %vm1081, %v1058, -inf
      %v1146 = vsel %vm1081, %v1062, -inf
      %v1147 = vmax.f32 %v1145, %v1146
      %v1148 = vsel %vm1081, %v1059, -inf
      %v1149 = vsel %vm1081, %v1063, -inf
      %v1150 = vmax.f32 %v1148, %v1149
      %v1151 = vsel %vm1081, %v1060, -inf
      %v1152 = vsel %vm1081, %v1064, -inf
      %v1153 = vmax.f32 %v1151, %v1152
      %v1154 = vsel %vm1081, %v1065, -inf
      %v1155 = vsel %vm1081, %v1069, -inf
      %v1156 = vmax.f32 %v1154, %v1155
      %v1157 = vsel %vm1081, %v1066, -inf
      %v1158 = vsel %vm1081, %v1070, -inf
      %v1159 = vmax.f32 %v1157, %v1158
      %v1160 = vsel %vm1081, %v1067, -inf
      %v1161 = vsel %vm1081, %v1071, -inf
      %v1162 = vmax.f32 %v1160, %v1161
      %v1163 = vsel %vm1081, %v1068, -inf
      %v1164 = vsel %vm1081, %v1072, -inf
      %v1165 = vmax.f32 %v1163, %v1164
      %v1166 = vsel %vm1081, %v1073, -inf
      %v1167 = vsel %vm1081, %v1077, -inf
      %v1168 = vmax.f32 %v1166, %v1167
      %v1169 = vsel %vm1081, %v1074, -inf
      %v1170 = vsel %vm1081, %v1078, -inf
      %v1171 = vmax.f32 %v1169, %v1170
      %v1172 = vsel %vm1081, %v1075, -inf
      %v1173 = vsel %vm1081, %v1079, -inf
      %v1174 = vmax.f32 %v1172, %v1173
      %v1175 = vsel %vm1081, %v1076, -inf
      %v1176 = vsel %vm1081, %v1080, -inf
      %v1177 = vmax.f32 %v1175, %v1176
      %v1210 = vcombine.high %v1084, %v1084
      %v1212 = vunpack.c.l.s4 1983009808
      %v1213 = vunpack.c.0.s8 %v1212
      %v1214 = vlaneseq
      %v1215 = vshrl.u32 %v1214, 7
      %v1216 = vsub.s32 %v1213, %v1215
      %v1217 = vrot.slane %v1084, %v1216
      %v1219 = vunpack.c.l.s4 1983009808
      %v1220 = vunpack.c.0.s8 %v1219
      %v1221 = vlaneseq
      %v1222 = vshrl.u32 %v1221, 7
      %v1223 = vsub.s32 %v1220, %v1222
      %v1224 = vrot.slane %v1210, %v1223
      %v1225 = vcombine.high %v1217, %v1217
      %v1226 = vcombine.high %v1224, %v1224
      %v1227 = vcombine.high %v1087, %v1087
      %v1229 = vunpack.c.l.s4 1983009808
      %v1230 = vunpack.c.0.s8 %v1229
      %v1231 = vlaneseq
      %v1232 = vshrl.u32 %v1231, 7
      %v1233 = vsub.s32 %v1230, %v1232
      %v1234 = vrot.slane %v1087, %v1233
      %v1236 = vunpack.c.l.s4 1983009808
      %v1237 = vunpack.c.0.s8 %v1236
      %v1238 = vlaneseq
      %v1239 = vshrl.u32 %v1238, 7
      %v1240 = vsub.s32 %v1237, %v1239
      %v1241 = vrot.slane %v1227, %v1240
      %v1242 = vcombine.high %v1234, %v1234
      %v1243 = vcombine.high %v1241, %v1241
      %v1244 = vcombine.high %v1090, %v1090
      %v1246 = vunpack.c.l.s4 1983009808
      %v1247 = vunpack.c.0.s8 %v1246
      %v1248 = vlaneseq
      %v1249 = vshrl.u32 %v1248, 7
      %v1250 = vsub.s32 %v1247, %v1249
      %v1251 = vrot.slane %v1090, %v1250
      %v1253 = vunpack.c.l.s4 1983009808
      %v1254 = vunpack.c.0.s8 %v1253
      %v1255 = vlaneseq
      %v1256 = vshrl.u32 %v1255, 7
      %v1257 = vsub.s32 %v1254, %v1256
      %v1258 = vrot.slane %v1244, %v1257
      %v1259 = vcombine.high %v1251, %v1251
      %v1260 = vcombine.high %v1258, %v1258
      %v1261 = vcombine.high %v1093, %v1093
      %v1263 = vunpack.c.l.s4 1983009808
      %v1264 = vunpack.c.0.s8 %v1263
      %v1265 = vlaneseq
      %v1266 = vshrl.u32 %v1265, 7
      %v1267 = vsub.s32 %v1264, %v1266
      %v1268 = vrot.slane %v1093, %v1267
      %v1270 = vunpack.c.l.s4 1983009808
      %v1271 = vunpack.c.0.s8 %v1270
      %v1272 = vlaneseq
      %v1273 = vshrl.u32 %v1272, 7
      %v1274 = vsub.s32 %v1271, %v1273
      %v1275 = vrot.slane %v1261, %v1274
      %v1276 = vcombine.high %v1268, %v1268
      %v1277 = vcombine.high %v1275, %v1275
      %v1278 = vcombine.high %v1096, %v1096
      %v1280 = vunpack.c.l.s4 1983009808
      %v1281 = vunpack.c.0.s8 %v1280
      %v1282 = vlaneseq
      %v1283 = vshrl.u32 %v1282, 7
      %v1284 = vsub.s32 %v1281, %v1283
      %v1285 = vrot.slane %v1096, %v1284
      %v1287 = vunpack.c.l.s4 1983009808
      %v1288 = vunpack.c.0.s8 %v1287
      %v1289 = vlaneseq
      %v1290 = vshrl.u32 %v1289, 7
      %v1291 = vsub.s32 %v1288, %v1290
      %v1292 = vrot.slane %v1278, %v1291
      %v1293 = vcombine.high %v1285, %v1285
      %v1294 = vcombine.high %v1292, %v1292
      %v1295 = vcombine.high %v1099, %v1099
      %v1297 = vunpack.c.l.s4 1983009808
      %v1298 = vunpack.c.0.s8 %v1297
      %v1299 = vlaneseq
      %v1300 = vshrl.u32 %v1299, 7
      %v1301 = vsub.s32 %v1298, %v1300
      %v1302 = vrot.slane %v1099, %v1301
      %v1304 = vunpack.c.l.s4 1983009808
      %v1305 = vunpack.c.0.s8 %v1304
      %v1306 = vlaneseq
      %v1307 = vshrl.u32 %v1306, 7
      %v1308 = vsub.s32 %v1305, %v1307
      %v1309 = vrot.slane %v1295, %v1308
      %v1310 = vcombine.high %v1302, %v1302
      %v1311 = vcombine.high %v1309, %v1309
      %v1312 = vcombine.high %v1102, %v1102
      %v1314 = vunpack.c.l.s4 1983009808
      %v1315 = vunpack.c.0.s8 %v1314
      %v1316 = vlaneseq
      %v1317 = vshrl.u32 %v1316, 7
      %v1318 = vsub.s32 %v1315, %v1317
      %v1319 = vrot.slane %v1102, %v1318
      %v1321 = vunpack.c.l.s4 1983009808
      %v1322 = vunpack.c.0.s8 %v1321
      %v1323 = vlaneseq
      %v1324 = vshrl.u32 %v1323, 7
      %v1325 = vsub.s32 %v1322, %v1324
      %v1326 = vrot.slane %v1312, %v1325
      %v1327 = vcombine.high %v1319, %v1319
      %v1328 = vcombine.high %v1326, %v1326
      %v1329 = vcombine.high %v1105, %v1105
      %v1331 = vunpack.c.l.s4 1983009808
      %v1332 = vunpack.c.0.s8 %v1331
      %v1333 = vlaneseq
      %v1334 = vshrl.u32 %v1333, 7
      %v1335 = vsub.s32 %v1332, %v1334
      %v1336 = vrot.slane %v1105, %v1335
      %v1338 = vunpack.c.l.s4 1983009808
      %v1339 = vunpack.c.0.s8 %v1338
      %v1340 = vlaneseq
      %v1341 = vshrl.u32 %v1340, 7
      %v1342 = vsub.s32 %v1339, %v1341
      %v1343 = vrot.slane %v1329, %v1342
      %v1344 = vcombine.high %v1336, %v1336
      %v1345 = vcombine.high %v1343, %v1343
      %v1346 = vcombine.high %v1108, %v1108
      %v1348 = vunpack.c.l.s4 1983009808
      %v1349 = vunpack.c.0.s8 %v1348
      %v1350 = vlaneseq
      %v1351 = vshrl.u32 %v1350, 7
      %v1352 = vsub.s32 %v1349, %v1351
      %v1353 = vrot.slane %v1108, %v1352
      %v1355 = vunpack.c.l.s4 1983009808
      %v1356 = vunpack.c.0.s8 %v1355
      %v1357 = vlaneseq
      %v1358 = vshrl.u32 %v1357, 7
      %v1359 = vsub.s32 %v1356, %v1358
      %v1360 = vrot.slane %v1346, %v1359
      %v1361 = vcombine.high %v1353, %v1353
      %v1362 = vcombine.high %v1360, %v1360
      %v1363 = vcombine.high %v1111, %v1111
      %v1365 = vunpack.c.l.s4 1983009808
      %v1366 = vunpack.c.0.s8 %v1365
      %v1367 = vlaneseq
      %v1368 = vshrl.u32 %v1367, 7
      %v1369 = vsub.s32 %v1366, %v1368
      %v1370 = vrot.slane %v1111, %v1369
      %v1372 = vunpack.c.l.s4 1983009808
      %v1373 = vunpack.c.0.s8 %v1372
      %v1374 = vlaneseq
      %v1375 = vshrl.u32 %v1374, 7
      %v1376 = vsub.s32 %v1373, %v1375
      %v1377 = vrot.slane %v1363, %v1376
      %v1378 = vcombine.high %v1370, %v1370
      %v1379 = vcombine.high %v1377, %v1377
      %v1380 = vcombine.high %v1114, %v1114
      %v1382 = vunpack.c.l.s4 1983009808
      %v1383 = vunpack.c.0.s8 %v1382
      %v1384 = vlaneseq
      %v1385 = vshrl.u32 %v1384, 7
      %v1386 = vsub.s32 %v1383, %v1385
      %v1387 = vrot.slane %v1114, %v1386
      %v1389 = vunpack.c.l.s4 1983009808
      %v1390 = vunpack.c.0.s8 %v1389
      %v1391 = vlaneseq
      %v1392 = vshrl.u32 %v1391, 7
      %v1393 = vsub.s32 %v1390, %v1392
      %v1394 = vrot.slane %v1380, %v1393
      %v1395 = vcombine.high %v1387, %v1387
      %v1396 = vcombine.high %v1394, %v1394
      %v1397 = vcombine.high %v1117, %v1117
      %v1399 = vunpack.c.l.s4 1983009808
      %v1400 = vunpack.c.0.s8 %v1399
      %v1401 = vlaneseq
      %v1402 = vshrl.u32 %v1401, 7
      %v1403 = vsub.s32 %v1400, %v1402
      %v1404 = vrot.slane %v1117, %v1403
      %v1406 = vunpack.c.l.s4 1983009808
      %v1407 = vunpack.c.0.s8 %v1406
      %v1408 = vlaneseq
      %v1409 = vshrl.u32 %v1408, 7
      %v1410 = vsub.s32 %v1407, %v1409
      %v1411 = vrot.slane %v1397, %v1410
      %v1412 = vcombine.high %v1404, %v1404
      %v1413 = vcombine.high %v1411, %v1411
      %v1414 = vcombine.high %v1120, %v1120
      %v1416 = vunpack.c.l.s4 1983009808
      %v1417 = vunpack.c.0.s8 %v1416
      %v1418 = vlaneseq
      %v1419 = vshrl.u32 %v1418, 7
      %v1420 = vsub.s32 %v1417, %v1419
      %v1421 = vrot.slane %v1120, %v1420
      %v1423 = vunpack.c.l.s4 1983009808
      %v1424 = vunpack.c.0.s8 %v1423
      %v1425 = vlaneseq
      %v1426 = vshrl.u32 %v1425, 7
      %v1427 = vsub.s32 %v1424, %v1426
      %v1428 = vrot.slane %v1414, %v1427
      %v1429 = vcombine.high %v1421, %v1421
      %v1430 = vcombine.high %v1428, %v1428
      %v1431 = vcombine.high %v1123, %v1123
      %v1433 = vunpack.c.l.s4 1983009808
      %v1434 = vunpack.c.0.s8 %v1433
      %v1435 = vlaneseq
      %v1436 = vshrl.u32 %v1435, 7
      %v1437 = vsub.s32 %v1434, %v1436
      %v1438 = vrot.slane %v1123, %v1437
      %v1440 = vunpack.c.l.s4 1983009808
      %v1441 = vunpack.c.0.s8 %v1440
      %v1442 = vlaneseq
      %v1443 = vshrl.u32 %v1442, 7
      %v1444 = vsub.s32 %v1441, %v1443
      %v1445 = vrot.slane %v1431, %v1444
      %v1446 = vcombine.high %v1438, %v1438
      %v1447 = vcombine.high %v1445, %v1445
      %v1448 = vcombine.high %v1126, %v1126
      %v1450 = vunpack.c.l.s4 1983009808
      %v1451 = vunpack.c.0.s8 %v1450
      %v1452 = vlaneseq
      %v1453 = vshrl.u32 %v1452, 7
      %v1454 = vsub.s32 %v1451, %v1453
      %v1455 = vrot.slane %v1126, %v1454
      %v1457 = vunpack.c.l.s4 1983009808
      %v1458 = vunpack.c.0.s8 %v1457
      %v1459 = vlaneseq
      %v1460 = vshrl.u32 %v1459, 7
      %v1461 = vsub.s32 %v1458, %v1460
      %v1462 = vrot.slane %v1448, %v1461
      %v1463 = vcombine.high %v1455, %v1455
      %v1464 = vcombine.high %v1462, %v1462
      %v1465 = vcombine.high %v1129, %v1129
      %v1467 = vunpack.c.l.s4 1983009808
      %v1468 = vunpack.c.0.s8 %v1467
      %v1469 = vlaneseq
      %v1470 = vshrl.u32 %v1469, 7
      %v1471 = vsub.s32 %v1468, %v1470
      %v1472 = vrot.slane %v1129, %v1471
      %v1474 = vunpack.c.l.s4 1983009808
      %v1475 = vunpack.c.0.s8 %v1474
      %v1476 = vlaneseq
      %v1477 = vshrl.u32 %v1476, 7
      %v1478 = vsub.s32 %v1475, %v1477
      %v1479 = vrot.slane %v1465, %v1478
      %v1480 = vcombine.high %v1472, %v1472
      %v1481 = vcombine.high %v1479, %v1479
      %v1482 = vcombine.high %v1132, %v1132
      %v1484 = vunpack.c.l.s4 1983009808
      %v1485 = vunpack.c.0.s8 %v1484
      %v1486 = vlaneseq
      %v1487 = vshrl.u32 %v1486, 7
      %v1488 = vsub.s32 %v1485, %v1487
      %v1489 = vrot.slane %v1132, %v1488
      %v1491 = vunpack.c.l.s4 1983009808
      %v1492 = vunpack.c.0.s8 %v1491
      %v1493 = vlaneseq
      %v1494 = vshrl.u32 %v1493, 7
      %v1495 = vsub.s32 %v1492, %v1494
      %v1496 = vrot.slane %v1482, %v1495
      %v1497 = vcombine.high %v1489, %v1489
      %v1498 = vcombine.high %v1496, %v1496
      %v1499 = vcombine.high %v1135, %v1135
      %v1501 = vunpack.c.l.s4 1983009808
      %v1502 = vunpack.c.0.s8 %v1501
      %v1503 = vlaneseq
      %v1504 = vshrl.u32 %v1503, 7
      %v1505 = vsub.s32 %v1502, %v1504
      %v1506 = vrot.slane %v1135, %v1505
      %v1508 = vunpack.c.l.s4 1983009808
      %v1509 = vunpack.c.0.s8 %v1508
      %v1510 = vlaneseq
      %v1511 = vshrl.u32 %v1510, 7
      %v1512 = vsub.s32 %v1509, %v1511
      %v1513 = vrot.slane %v1499, %v1512
      %v1514 = vcombine.high %v1506, %v1506
      %v1515 = vcombine.high %v1513, %v1513
      %v1516 = vcombine.high %v1138, %v1138
      %v1518 = vunpack.c.l.s4 1983009808
      %v1519 = vunpack.c.0.s8 %v1518
      %v1520 = vlaneseq
      %v1521 = vshrl.u32 %v1520, 7
      %v1522 = vsub.s32 %v1519, %v1521
      %v1523 = vrot.slane %v1138, %v1522
      %v1525 = vunpack.c.l.s4 1983009808
      %v1526 = vunpack.c.0.s8 %v1525
      %v1527 = vlaneseq
      %v1528 = vshrl.u32 %v1527, 7
      %v1529 = vsub.s32 %v1526, %v1528
      %v1530 = vrot.slane %v1516, %v1529
      %v1531 = vcombine.high %v1523, %v1523
      %v1532 = vcombine.high %v1530, %v1530
      %v1533 = vcombine.high %v1141, %v1141
      %v1535 = vunpack.c.l.s4 1983009808
      %v1536 = vunpack.c.0.s8 %v1535
      %v1537 = vlaneseq
      %v1538 = vshrl.u32 %v1537, 7
      %v1539 = vsub.s32 %v1536, %v1538
      %v1540 = vrot.slane %v1141, %v1539
      %v1542 = vunpack.c.l.s4 1983009808
      %v1543 = vunpack.c.0.s8 %v1542
      %v1544 = vlaneseq
      %v1545 = vshrl.u32 %v1544, 7
      %v1546 = vsub.s32 %v1543, %v1545
      %v1547 = vrot.slane %v1533, %v1546
      %v1548 = vcombine.high %v1540, %v1540
      %v1549 = vcombine.high %v1547, %v1547
      %v1550 = vcombine.high %v1144, %v1144
      %v1552 = vunpack.c.l.s4 1983009808
      %v1553 = vunpack.c.0.s8 %v1552
      %v1554 = vlaneseq
      %v1555 = vshrl.u32 %v1554, 7
      %v1556 = vsub.s32 %v1553, %v1555
      %v1557 = vrot.slane %v1144, %v1556
      %v1559 = vunpack.c.l.s4 1983009808
      %v1560 = vunpack.c.0.s8 %v1559
      %v1561 = vlaneseq
      %v1562 = vshrl.u32 %v1561, 7
      %v1563 = vsub.s32 %v1560, %v1562
      %v1564 = vrot.slane %v1550, %v1563
      %v1565 = vcombine.high %v1557, %v1557
      %v1566 = vcombine.high %v1564, %v1564
      %v1567 = vcombine.high %v1147, %v1147
      %v1569 = vunpack.c.l.s4 1983009808
      %v1570 = vunpack.c.0.s8 %v1569
      %v1571 = vlaneseq
      %v1572 = vshrl.u32 %v1571, 7
      %v1573 = vsub.s32 %v1570, %v1572
      %v1574 = vrot.slane %v1147, %v1573
      %v1576 = vunpack.c.l.s4 1983009808
      %v1577 = vunpack.c.0.s8 %v1576
      %v1578 = vlaneseq
      %v1579 = vshrl.u32 %v1578, 7
      %v1580 = vsub.s32 %v1577, %v1579
      %v1581 = vrot.slane %v1567, %v1580
      %v1582 = vcombine.high %v1574, %v1574
      %v1583 = vcombine.high %v1581, %v1581
      %v1584 = vcombine.high %v1150, %v1150
      %v1586 = vunpack.c.l.s4 1983009808
      %v1587 = vunpack.c.0.s8 %v1586
      %v1588 = vlaneseq
      %v1589 = vshrl.u32 %v1588, 7
      %v1590 = vsub.s32 %v1587, %v1589
      %v1591 = vrot.slane %v1150, %v1590
      %v1593 = vunpack.c.l.s4 1983009808
      %v1594 = vunpack.c.0.s8 %v1593
      %v1595 = vlaneseq
      %v1596 = vshrl.u32 %v1595, 7
      %v1597 = vsub.s32 %v1594, %v1596
      %v1598 = vrot.slane %v1584, %v1597
      %v1599 = vcombine.high %v1591, %v1591
      %v1600 = vcombine.high %v1598, %v1598
      %v1601 = vcombine.high %v1153, %v1153
      %v1603 = vunpack.c.l.s4 1983009808
      %v1604 = vunpack.c.0.s8 %v1603
      %v1605 = vlaneseq
      %v1606 = vshrl.u32 %v1605, 7
      %v1607 = vsub.s32 %v1604, %v1606
      %v1608 = vrot.slane %v1153, %v1607
      %v1610 = vunpack.c.l.s4 1983009808
      %v1611 = vunpack.c.0.s8 %v1610
      %v1612 = vlaneseq
      %v1613 = vshrl.u32 %v1612, 7
      %v1614 = vsub.s32 %v1611, %v1613
      %v1615 = vrot.slane %v1601, %v1614
      %v1616 = vcombine.high %v1608, %v1608
      %v1617 = vcombine.high %v1615, %v1615
      %v1618 = vcombine.high %v1156, %v1156
      %v1620 = vunpack.c.l.s4 1983009808
      %v1621 = vunpack.c.0.s8 %v1620
      %v1622 = vlaneseq
      %v1623 = vshrl.u32 %v1622, 7
      %v1624 = vsub.s32 %v1621, %v1623
      %v1625 = vrot.slane %v1156, %v1624
      %v1627 = vunpack.c.l.s4 1983009808
      %v1628 = vunpack.c.0.s8 %v1627
      %v1629 = vlaneseq
      %v1630 = vshrl.u32 %v1629, 7
      %v1631 = vsub.s32 %v1628, %v1630
      %v1632 = vrot.slane %v1618, %v1631
      %v1633 = vcombine.high %v1625, %v1625
      %v1634 = vcombine.high %v1632, %v1632
      %v1635 = vcombine.high %v1159, %v1159
      %v1637 = vunpack.c.l.s4 1983009808
      %v1638 = vunpack.c.0.s8 %v1637
      %v1639 = vlaneseq
      %v1640 = vshrl.u32 %v1639, 7
      %v1641 = vsub.s32 %v1638, %v1640
      %v1642 = vrot.slane %v1159, %v1641
      %v1644 = vunpack.c.l.s4 1983009808
      %v1645 = vunpack.c.0.s8 %v1644
      %v1646 = vlaneseq
      %v1647 = vshrl.u32 %v1646, 7
      %v1648 = vsub.s32 %v1645, %v1647
      %v1649 = vrot.slane %v1635, %v1648
      %v1650 = vcombine.high %v1642, %v1642
      %v1651 = vcombine.high %v1649, %v1649
      %v1652 = vcombine.high %v1162, %v1162
      %v1654 = vunpack.c.l.s4 1983009808
      %v1655 = vunpack.c.0.s8 %v1654
      %v1656 = vlaneseq
      %v1657 = vshrl.u32 %v1656, 7
      %v1658 = vsub.s32 %v1655, %v1657
      %v1659 = vrot.slane %v1162, %v1658
      %v1661 = vunpack.c.l.s4 1983009808
      %v1662 = vunpack.c.0.s8 %v1661
      %v1663 = vlaneseq
      %v1664 = vshrl.u32 %v1663, 7
      %v1665 = vsub.s32 %v1662, %v1664
      %v1666 = vrot.slane %v1652, %v1665
      %v1667 = vcombine.high %v1659, %v1659
      %v1668 = vcombine.high %v1666, %v1666
      %v1669 = vcombine.high %v1165, %v1165
      %v1671 = vunpack.c.l.s4 1983009808
      %v1672 = vunpack.c.0.s8 %v1671
      %v1673 = vlaneseq
      %v1674 = vshrl.u32 %v1673, 7
      %v1675 = vsub.s32 %v1672, %v1674
      %v1676 = vrot.slane %v1165, %v1675
      %v1678 = vunpack.c.l.s4 1983009808
      %v1679 = vunpack.c.0.s8 %v1678
      %v1680 = vlaneseq
      %v1681 = vshrl.u32 %v1680, 7
      %v1682 = vsub.s32 %v1679, %v1681
      %v1683 = vrot.slane %v1669, %v1682
      %v1684 = vcombine.high %v1676, %v1676
      %v1685 = vcombine.high %v1683, %v1683
      %v1686 = vcombine.high %v1168, %v1168
      %v1688 = vunpack.c.l.s4 1983009808
      %v1689 = vunpack.c.0.s8 %v1688
      %v1690 = vlaneseq
      %v1691 = vshrl.u32 %v1690, 7
      %v1692 = vsub.s32 %v1689, %v1691
      %v1693 = vrot.slane %v1168, %v1692
      %v1695 = vunpack.c.l.s4 1983009808
      %v1696 = vunpack.c.0.s8 %v1695
      %v1697 = vlaneseq
      %v1698 = vshrl.u32 %v1697, 7
      %v1699 = vsub.s32 %v1696, %v1698
      %v1700 = vrot.slane %v1686, %v1699
      %v1701 = vcombine.high %v1693, %v1693
      %v1702 = vcombine.high %v1700, %v1700
      %v1703 = vcombine.high %v1171, %v1171
      %v1705 = vunpack.c.l.s4 1983009808
      %v1706 = vunpack.c.0.s8 %v1705
      %v1707 = vlaneseq
      %v1708 = vshrl.u32 %v1707, 7
      %v1709 = vsub.s32 %v1706, %v1708
      %v1710 = vrot.slane %v1171, %v1709
      %v1712 = vunpack.c.l.s4 1983009808
      %v1713 = vunpack.c.0.s8 %v1712
      %v1714 = vlaneseq
      %v1715 = vshrl.u32 %v1714, 7
      %v1716 = vsub.s32 %v1713, %v1715
      %v1717 = vrot.slane %v1703, %v1716
      %v1718 = vcombine.high %v1710, %v1710
      %v1719 = vcombine.high %v1717, %v1717
      %v1720 = vcombine.high %v1174, %v1174
      %v1722 = vunpack.c.l.s4 1983009808
      %v1723 = vunpack.c.0.s8 %v1722
      %v1724 = vlaneseq
      %v1725 = vshrl.u32 %v1724, 7
      %v1726 = vsub.s32 %v1723, %v1725
      %v1727 = vrot.slane %v1174, %v1726
      %v1729 = vunpack.c.l.s4 1983009808
      %v1730 = vunpack.c.0.s8 %v1729
      %v1731 = vlaneseq
      %v1732 = vshrl.u32 %v1731, 7
      %v1733 = vsub.s32 %v1730, %v1732
      %v1734 = vrot.slane %v1720, %v1733
      %v1735 = vcombine.high %v1727, %v1727
      %v1736 = vcombine.high %v1734, %v1734
      %v1737 = vcombine.high %v1177, %v1177
      %v1739 = vunpack.c.l.s4 1983009808
      %v1740 = vunpack.c.0.s8 %v1739
      %v1741 = vlaneseq
      %v1742 = vshrl.u32 %v1741, 7
      %v1743 = vsub.s32 %v1740, %v1742
      %v1744 = vrot.slane %v1177, %v1743
      %v1746 = vunpack.c.l.s4 1983009808
      %v1747 = vunpack.c.0.s8 %v1746
      %v1748 = vlaneseq
      %v1749 = vshrl.u32 %v1748, 7
      %v1750 = vsub.s32 %v1747, %v1749
      %v1751 = vrot.slane %v1737, %v1750
      %v1752 = vcombine.high %v1744, %v1744
      %v1753 = vcombine.high %v1751, %v1751
      %vm1882 = vcmask 123904
      %v1883 = vsel %vm1882, %v1217, -inf
      %v1884 = vrot.slane %v1883, 4
      %v1885 = vmax.f32 %v1883, %v1884
      %v1886 = vrot.slane %v1885, 2
      %v1887 = vmax.f32 %v1885, %v1886
      %v1888 = vrot.slane %v1887, 1
      %v1889 = vmax.f32 %v1887, %v1888
      %v1890 = vsel %vm1882, %v1225, -inf
      %v1891 = vrot.slane %v1890, 4
      %v1892 = vmax.f32 %v1890, %v1891
      %v1893 = vrot.slane %v1892, 2
      %v1894 = vmax.f32 %v1892, %v1893
      %v1895 = vrot.slane %v1894, 1
      %v1896 = vmax.f32 %v1894, %v1895
      %v1897 = vsel %vm1882, %v1224, -inf
      %v1898 = vrot.slane %v1897, 4
      %v1899 = vmax.f32 %v1897, %v1898
      %v1900 = vrot.slane %v1899, 2
      %v1901 = vmax.f32 %v1899, %v1900
      %v1902 = vrot.slane %v1901, 1
      %v1903 = vmax.f32 %v1901, %v1902
      %v1904 = vsel %vm1882, %v1226, -inf
      %v1905 = vrot.slane %v1904, 4
      %v1906 = vmax.f32 %v1904, %v1905
      %v1907 = vrot.slane %v1906, 2
      %v1908 = vmax.f32 %v1906, %v1907
      %v1909 = vrot.slane %v1908, 1
      %v1910 = vmax.f32 %v1908, %v1909
      %v1911 = vsel %vm1882, %v1234, -inf
      %v1912 = vrot.slane %v1911, 4
      %v1913 = vmax.f32 %v1911, %v1912
      %v1914 = vrot.slane %v1913, 2
      %v1915 = vmax.f32 %v1913, %v1914
      %v1916 = vrot.slane %v1915, 1
      %v1917 = vmax.f32 %v1915, %v1916
      %v1918 = vsel %vm1882, %v1242, -inf
      %v1919 = vrot.slane %v1918, 4
      %v1920 = vmax.f32 %v1918, %v1919
      %v1921 = vrot.slane %v1920, 2
      %v1922 = vmax.f32 %v1920, %v1921
      %v1923 = vrot.slane %v1922, 1
      %v1924 = vmax.f32 %v1922, %v1923
      %v1925 = vsel %vm1882, %v1241, -inf
      %v1926 = vrot.slane %v1925, 4
      %v1927 = vmax.f32 %v1925, %v1926
      %v1928 = vrot.slane %v1927, 2
      %v1929 = vmax.f32 %v1927, %v1928
      %v1930 = vrot.slane %v1929, 1
      %v1931 = vmax.f32 %v1929, %v1930
      %v1932 = vsel %vm1882, %v1243, -inf
      %v1933 = vrot.slane %v1932, 4
      %v1934 = vmax.f32 %v1932, %v1933
      %v1935 = vrot.slane %v1934, 2
      %v1936 = vmax.f32 %v1934, %v1935
      %v1937 = vrot.slane %v1936, 1
      %v1938 = vmax.f32 %v1936, %v1937
      %v1939 = vsel %vm1882, %v1251, -inf
      %v1940 = vrot.slane %v1939, 4
      %v1941 = vmax.f32 %v1939, %v1940
      %v1942 = vrot.slane %v1941, 2
      %v1943 = vmax.f32 %v1941, %v1942
      %v1944 = vrot.slane %v1943, 1
      %v1945 = vmax.f32 %v1943, %v1944
      %v1946 = vsel %vm1882, %v1259, -inf
      %v1947 = vrot.slane %v1946, 4
      %v1948 = vmax.f32 %v1946, %v1947
      %v1949 = vrot.slane %v1948, 2
      %v1950 = vmax.f32 %v1948, %v1949
      %v1951 = vrot.slane %v1950, 1
      %v1952 = vmax.f32 %v1950, %v1951
      %v1953 = vsel %vm1882, %v1258, -inf
      %v1954 = vrot.slane %v1953, 4
      %v1955 = vmax.f32 %v1953, %v1954
      %v1956 = vrot.slane %v1955, 2
      %v1957 = vmax.f32 %v1955, %v1956
      %v1958 = vrot.slane %v1957, 1
      %v1959 = vmax.f32 %v1957, %v1958
      %v1960 = vsel %vm1882, %v1260, -inf
      %v1961 = vrot.slane %v1960, 4
      %v1962 = vmax.f32 %v1960, %v1961
      %v1963 = vrot.slane %v1962, 2
      %v1964 = vmax.f32 %v1962, %v1963
      %v1965 = vrot.slane %v1964, 1
      %v1966 = vmax.f32 %v1964, %v1965
      %v1967 = vsel %vm1882, %v1268, -inf
      %v1968 = vrot.slane %v1967, 4
      %v1969 = vmax.f32 %v1967, %v1968
      %v1970 = vrot.slane %v1969, 2
      %v1971 = vmax.f32 %v1969, %v1970
      %v1972 = vrot.slane %v1971, 1
      %v1973 = vmax.f32 %v1971, %v1972
      %v1974 = vsel %vm1882, %v1276, -inf
      %v1975 = vrot.slane %v1974, 4
      %v1976 = vmax.f32 %v1974, %v1975
      %v1977 = vrot.slane %v1976, 2
      %v1978 = vmax.f32 %v1976, %v1977
      %v1979 = vrot.slane %v1978, 1
      %v1980 = vmax.f32 %v1978, %v1979
      %v1981 = vsel %vm1882, %v1275, -inf
      %v1982 = vrot.slane %v1981, 4
      %v1983 = vmax.f32 %v1981, %v1982
      %v1984 = vrot.slane %v1983, 2
      %v1985 = vmax.f32 %v1983, %v1984
      %v1986 = vrot.slane %v1985, 1
      %v1987 = vmax.f32 %v1985, %v1986
      %v1988 = vsel %vm1882, %v1277, -inf
      %v1989 = vrot.slane %v1988, 4
      %v1990 = vmax.f32 %v1988, %v1989
      %v1991 = vrot.slane %v1990, 2
      %v1992 = vmax.f32 %v1990, %v1991
      %v1993 = vrot.slane %v1992, 1
      %v1994 = vmax.f32 %v1992, %v1993
      %v1995 = vsel %vm1882, %v1285, -inf
      %v1996 = vrot.slane %v1995, 4
      %v1997 = vmax.f32 %v1995, %v1996
      %v1998 = vrot.slane %v1997, 2
      %v1999 = vmax.f32 %v1997, %v1998
      %v2000 = vrot.slane %v1999, 1
      %v2001 = vmax.f32 %v1999, %v2000
      %v2002 = vsel %vm1882, %v1293, -inf
      %v2003 = vrot.slane %v2002, 4
      %v2004 = vmax.f32 %v2002, %v2003
      %v2005 = vrot.slane %v2004, 2
      %v2006 = vmax.f32 %v2004, %v2005
      %v2007 = vrot.slane %v2006, 1
      %v2008 = vmax.f32 %v2006, %v2007
      %v2009 = vsel %vm1882, %v1292, -inf
      %v2010 = vrot.slane %v2009, 4
      %v2011 = vmax.f32 %v2009, %v2010
      %v2012 = vrot.slane %v2011, 2
      %v2013 = vmax.f32 %v2011, %v2012
      %v2014 = vrot.slane %v2013, 1
      %v2015 = vmax.f32 %v2013, %v2014
      %v2016 = vsel %vm1882, %v1294, -inf
      %v2017 = vrot.slane %v2016, 4
      %v2018 = vmax.f32 %v2016, %v2017
      %v2019 = vrot.slane %v2018, 2
      %v2020 = vmax.f32 %v2018, %v2019
      %v2021 = vrot.slane %v2020, 1
      %v2022 = vmax.f32 %v2020, %v2021
      %v2023 = vsel %vm1882, %v1302, -inf
      %v2024 = vrot.slane %v2023, 4
      %v2025 = vmax.f32 %v2023, %v2024
      %v2026 = vrot.slane %v2025, 2
      %v2027 = vmax.f32 %v2025, %v2026
      %v2028 = vrot.slane %v2027, 1
      %v2029 = vmax.f32 %v2027, %v2028
      %v2030 = vsel %vm1882, %v1310, -inf
      %v2031 = vrot.slane %v2030, 4
      %v2032 = vmax.f32 %v2030, %v2031
      %v2033 = vrot.slane %v2032, 2
      %v2034 = vmax.f32 %v2032, %v2033
      %v2035 = vrot.slane %v2034, 1
      %v2036 = vmax.f32 %v2034, %v2035
      %v2037 = vsel %vm1882, %v1309, -inf
      %v2038 = vrot.slane %v2037, 4
      %v2039 = vmax.f32 %v2037, %v2038
      %v2040 = vrot.slane %v2039, 2
      %v2041 = vmax.f32 %v2039, %v2040
      %v2042 = vrot.slane %v2041, 1
      %v2043 = vmax.f32 %v2041, %v2042
      %v2044 = vsel %vm1882, %v1311, -inf
      %v2045 = vrot.slane %v2044, 4
      %v2046 = vmax.f32 %v2044, %v2045
      %v2047 = vrot.slane %v2046, 2
      %v2048 = vmax.f32 %v2046, %v2047
      %v2049 = vrot.slane %v2048, 1
      %v2050 = vmax.f32 %v2048, %v2049
      %v2051 = vsel %vm1882, %v1319, -inf
      %v2052 = vrot.slane %v2051, 4
      %v2053 = vmax.f32 %v2051, %v2052
      %v2054 = vrot.slane %v2053, 2
      %v2055 = vmax.f32 %v2053, %v2054
      %v2056 = vrot.slane %v2055, 1
      %v2057 = vmax.f32 %v2055, %v2056
      %v2058 = vsel %vm1882, %v1327, -inf
      %v2059 = vrot.slane %v2058, 4
      %v2060 = vmax.f32 %v2058, %v2059
      %v2061 = vrot.slane %v2060, 2
      %v2062 = vmax.f32 %v2060, %v2061
      %v2063 = vrot.slane %v2062, 1
      %v2064 = vmax.f32 %v2062, %v2063
      %v2065 = vsel %vm1882, %v1326, -inf
      %v2066 = vrot.slane %v2065, 4
      %v2067 = vmax.f32 %v2065, %v2066
      %v2068 = vrot.slane %v2067, 2
      %v2069 = vmax.f32 %v2067, %v2068
      %v2070 = vrot.slane %v2069, 1
      %v2071 = vmax.f32 %v2069, %v2070
      %v2072 = vsel %vm1882, %v1328, -inf
      %v2073 = vrot.slane %v2072, 4
      %v2074 = vmax.f32 %v2072, %v2073
      %v2075 = vrot.slane %v2074, 2
      %v2076 = vmax.f32 %v2074, %v2075
      %v2077 = vrot.slane %v2076, 1
      %v2078 = vmax.f32 %v2076, %v2077
      %v2079 = vsel %vm1882, %v1336, -inf
      %v2080 = vrot.slane %v2079, 4
      %v2081 = vmax.f32 %v2079, %v2080
      %v2082 = vrot.slane %v2081, 2
      %v2083 = vmax.f32 %v2081, %v2082
      %v2084 = vrot.slane %v2083, 1
      %v2085 = vmax.f32 %v2083, %v2084
      %v2086 = vsel %vm1882, %v1344, -inf
      %v2087 = vrot.slane %v2086, 4
      %v2088 = vmax.f32 %v2086, %v2087
      %v2089 = vrot.slane %v2088, 2
      %v2090 = vmax.f32 %v2088, %v2089
      %v2091 = vrot.slane %v2090, 1
      %v2092 = vmax.f32 %v2090, %v2091
      %v2093 = vsel %vm1882, %v1343, -inf
      %v2094 = vrot.slane %v2093, 4
      %v2095 = vmax.f32 %v2093, %v2094
      %v2096 = vrot.slane %v2095, 2
      %v2097 = vmax.f32 %v2095, %v2096
      %v2098 = vrot.slane %v2097, 1
      %v2099 = vmax.f32 %v2097, %v2098
      %v2100 = vsel %vm1882, %v1345, -inf
      %v2101 = vrot.slane %v2100, 4
      %v2102 = vmax.f32 %v2100, %v2101
      %v2103 = vrot.slane %v2102, 2
      %v2104 = vmax.f32 %v2102, %v2103
      %v2105 = vrot.slane %v2104, 1
      %v2106 = vmax.f32 %v2104, %v2105
      %v2107 = vsel %vm1882, %v1353, -inf
      %v2108 = vrot.slane %v2107, 4
      %v2109 = vmax.f32 %v2107, %v2108
      %v2110 = vrot.slane %v2109, 2
      %v2111 = vmax.f32 %v2109, %v2110
      %v2112 = vrot.slane %v2111, 1
      %v2113 = vmax.f32 %v2111, %v2112
      %v2114 = vsel %vm1882, %v1361, -inf
      %v2115 = vrot.slane %v2114, 4
      %v2116 = vmax.f32 %v2114, %v2115
      %v2117 = vrot.slane %v2116, 2
      %v2118 = vmax.f32 %v2116, %v2117
      %v2119 = vrot.slane %v2118, 1
      %v2120 = vmax.f32 %v2118, %v2119
      %v2121 = vsel %vm1882, %v1360, -inf
      %v2122 = vrot.slane %v2121, 4
      %v2123 = vmax.f32 %v2121, %v2122
      %v2124 = vrot.slane %v2123, 2
      %v2125 = vmax.f32 %v2123, %v2124
      %v2126 = vrot.slane %v2125, 1
      %v2127 = vmax.f32 %v2125, %v2126
      %v2128 = vsel %vm1882, %v1362, -inf
      %v2129 = vrot.slane %v2128, 4
      %v2130 = vmax.f32 %v2128, %v2129
      %v2131 = vrot.slane %v2130, 2
      %v2132 = vmax.f32 %v2130, %v2131
      %v2133 = vrot.slane %v2132, 1
      %v2134 = vmax.f32 %v2132, %v2133
      %v2135 = vsel %vm1882, %v1370, -inf
      %v2136 = vrot.slane %v2135, 4
      %v2137 = vmax.f32 %v2135, %v2136
      %v2138 = vrot.slane %v2137, 2
      %v2139 = vmax.f32 %v2137, %v2138
      %v2140 = vrot.slane %v2139, 1
      %v2141 = vmax.f32 %v2139, %v2140
      %v2142 = vsel %vm1882, %v1378, -inf
      %v2143 = vrot.slane %v2142, 4
      %v2144 = vmax.f32 %v2142, %v2143
      %v2145 = vrot.slane %v2144, 2
      %v2146 = vmax.f32 %v2144, %v2145
      %v2147 = vrot.slane %v2146, 1
      %v2148 = vmax.f32 %v2146, %v2147
      %v2149 = vsel %vm1882, %v1377, -inf
      %v2150 = vrot.slane %v2149, 4
      %v2151 = vmax.f32 %v2149, %v2150
      %v2152 = vrot.slane %v2151, 2
      %v2153 = vmax.f32 %v2151, %v2152
      %v2154 = vrot.slane %v2153, 1
      %v2155 = vmax.f32 %v2153, %v2154
      %v2156 = vsel %vm1882, %v1379, -inf
      %v2157 = vrot.slane %v2156, 4
      %v2158 = vmax.f32 %v2156, %v2157
      %v2159 = vrot.slane %v2158, 2
      %v2160 = vmax.f32 %v2158, %v2159
      %v2161 = vrot.slane %v2160, 1
      %v2162 = vmax.f32 %v2160, %v2161
      %v2163 = vsel %vm1882, %v1387, -inf
      %v2164 = vrot.slane %v2163, 4
      %v2165 = vmax.f32 %v2163, %v2164
      %v2166 = vrot.slane %v2165, 2
      %v2167 = vmax.f32 %v2165, %v2166
      %v2168 = vrot.slane %v2167, 1
      %v2169 = vmax.f32 %v2167, %v2168
      %v2170 = vsel %vm1882, %v1395, -inf
      %v2171 = vrot.slane %v2170, 4
      %v2172 = vmax.f32 %v2170, %v2171
      %v2173 = vrot.slane %v2172, 2
      %v2174 = vmax.f32 %v2172, %v2173
      %v2175 = vrot.slane %v2174, 1
      %v2176 = vmax.f32 %v2174, %v2175
      %v2177 = vsel %vm1882, %v1394, -inf
      %v2178 = vrot.slane %v2177, 4
      %v2179 = vmax.f32 %v2177, %v2178
      %v2180 = vrot.slane %v2179, 2
      %v2181 = vmax.f32 %v2179, %v2180
      %v2182 = vrot.slane %v2181, 1
      %v2183 = vmax.f32 %v2181, %v2182
      %v2184 = vsel %vm1882, %v1396, -inf
      %v2185 = vrot.slane %v2184, 4
      %v2186 = vmax.f32 %v2184, %v2185
      %v2187 = vrot.slane %v2186, 2
      %v2188 = vmax.f32 %v2186, %v2187
      %v2189 = vrot.slane %v2188, 1
      %v2190 = vmax.f32 %v2188, %v2189
      %v2191 = vsel %vm1882, %v1404, -inf
      %v2192 = vrot.slane %v2191, 4
      %v2193 = vmax.f32 %v2191, %v2192
      %v2194 = vrot.slane %v2193, 2
      %v2195 = vmax.f32 %v2193, %v2194
      %v2196 = vrot.slane %v2195, 1
      %v2197 = vmax.f32 %v2195, %v2196
      %v2198 = vsel %vm1882, %v1412, -inf
      %v2199 = vrot.slane %v2198, 4
      %v2200 = vmax.f32 %v2198, %v2199
      %v2201 = vrot.slane %v2200, 2
      %v2202 = vmax.f32 %v2200, %v2201
      %v2203 = vrot.slane %v2202, 1
      %v2204 = vmax.f32 %v2202, %v2203
      %v2205 = vsel %vm1882, %v1411, -inf
      %v2206 = vrot.slane %v2205, 4
      %v2207 = vmax.f32 %v2205, %v2206
      %v2208 = vrot.slane %v2207, 2
      %v2209 = vmax.f32 %v2207, %v2208
      %v2210 = vrot.slane %v2209, 1
      %v2211 = vmax.f32 %v2209, %v2210
      %v2212 = vsel %vm1882, %v1413, -inf
      %v2213 = vrot.slane %v2212, 4
      %v2214 = vmax.f32 %v2212, %v2213
      %v2215 = vrot.slane %v2214, 2
      %v2216 = vmax.f32 %v2214, %v2215
      %v2217 = vrot.slane %v2216, 1
      %v2218 = vmax.f32 %v2216, %v2217
      %v2219 = vsel %vm1882, %v1421, -inf
      %v2220 = vrot.slane %v2219, 4
      %v2221 = vmax.f32 %v2219, %v2220
      %v2222 = vrot.slane %v2221, 2
      %v2223 = vmax.f32 %v2221, %v2222
      %v2224 = vrot.slane %v2223, 1
      %v2225 = vmax.f32 %v2223, %v2224
      %v2226 = vsel %vm1882, %v1429, -inf
      %v2227 = vrot.slane %v2226, 4
      %v2228 = vmax.f32 %v2226, %v2227
      %v2229 = vrot.slane %v2228, 2
      %v2230 = vmax.f32 %v2228, %v2229
      %v2231 = vrot.slane %v2230, 1
      %v2232 = vmax.f32 %v2230, %v2231
      %v2233 = vsel %vm1882, %v1428, -inf
      %v2234 = vrot.slane %v2233, 4
      %v2235 = vmax.f32 %v2233, %v2234
      %v2236 = vrot.slane %v2235, 2
      %v2237 = vmax.f32 %v2235, %v2236
      %v2238 = vrot.slane %v2237, 1
      %v2239 = vmax.f32 %v2237, %v2238
      %v2240 = vsel %vm1882, %v1430, -inf
      %v2241 = vrot.slane %v2240, 4
      %v2242 = vmax.f32 %v2240, %v2241
      %v2243 = vrot.slane %v2242, 2
      %v2244 = vmax.f32 %v2242, %v2243
      %v2245 = vrot.slane %v2244, 1
      %v2246 = vmax.f32 %v2244, %v2245
      %v2247 = vsel %vm1882, %v1438, -inf
      %v2248 = vrot.slane %v2247, 4
      %v2249 = vmax.f32 %v2247, %v2248
      %v2250 = vrot.slane %v2249, 2
      %v2251 = vmax.f32 %v2249, %v2250
      %v2252 = vrot.slane %v2251, 1
      %v2253 = vmax.f32 %v2251, %v2252
      %v2254 = vsel %vm1882, %v1446, -inf
      %v2255 = vrot.slane %v2254, 4
      %v2256 = vmax.f32 %v2254, %v2255
      %v2257 = vrot.slane %v2256, 2
      %v2258 = vmax.f32 %v2256, %v2257
      %v2259 = vrot.slane %v2258, 1
      %v2260 = vmax.f32 %v2258, %v2259
      %v2261 = vsel %vm1882, %v1445, -inf
      %v2262 = vrot.slane %v2261, 4
      %v2263 = vmax.f32 %v2261, %v2262
      %v2264 = vrot.slane %v2263, 2
      %v2265 = vmax.f32 %v2263, %v2264
      %v2266 = vrot.slane %v2265, 1
      %v2267 = vmax.f32 %v2265, %v2266
      %v2268 = vsel %vm1882, %v1447, -inf
      %v2269 = vrot.slane %v2268, 4
      %v2270 = vmax.f32 %v2268, %v2269
      %v2271 = vrot.slane %v2270, 2
      %v2272 = vmax.f32 %v2270, %v2271
      %v2273 = vrot.slane %v2272, 1
      %v2274 = vmax.f32 %v2272, %v2273
      %v2275 = vsel %vm1882, %v1455, -inf
      %v2276 = vrot.slane %v2275, 4
      %v2277 = vmax.f32 %v2275, %v2276
      %v2278 = vrot.slane %v2277, 2
      %v2279 = vmax.f32 %v2277, %v2278
      %v2280 = vrot.slane %v2279, 1
      %v2281 = vmax.f32 %v2279, %v2280
      %v2282 = vsel %vm1882, %v1463, -inf
      %v2283 = vrot.slane %v2282, 4
      %v2284 = vmax.f32 %v2282, %v2283
      %v2285 = vrot.slane %v2284, 2
      %v2286 = vmax.f32 %v2284, %v2285
      %v2287 = vrot.slane %v2286, 1
      %v2288 = vmax.f32 %v2286, %v2287
      %v2289 = vsel %vm1882, %v1462, -inf
      %v2290 = vrot.slane %v2289, 4
      %v2291 = vmax.f32 %v2289, %v2290
      %v2292 = vrot.slane %v2291, 2
      %v2293 = vmax.f32 %v2291, %v2292
      %v2294 = vrot.slane %v2293, 1
      %v2295 = vmax.f32 %v2293, %v2294
      %v2296 = vsel %vm1882, %v1464, -inf
      %v2297 = vrot.slane %v2296, 4
      %v2298 = vmax.f32 %v2296, %v2297
      %v2299 = vrot.slane %v2298, 2
      %v2300 = vmax.f32 %v2298, %v2299
      %v2301 = vrot.slane %v2300, 1
      %v2302 = vmax.f32 %v2300, %v2301
      %v2303 = vsel %vm1882, %v1472, -inf
      %v2304 = vrot.slane %v2303, 4
      %v2305 = vmax.f32 %v2303, %v2304
      %v2306 = vrot.slane %v2305, 2
      %v2307 = vmax.f32 %v2305, %v2306
      %v2308 = vrot.slane %v2307, 1
      %v2309 = vmax.f32 %v2307, %v2308
      %v2310 = vsel %vm1882, %v1480, -inf
      %v2311 = vrot.slane %v2310, 4
      %v2312 = vmax.f32 %v2310, %v2311
      %v2313 = vrot.slane %v2312, 2
      %v2314 = vmax.f32 %v2312, %v2313
      %v2315 = vrot.slane %v2314, 1
      %v2316 = vmax.f32 %v2314, %v2315
      %v2317 = vsel %vm1882, %v1479, -inf
      %v2318 = vrot.slane %v2317, 4
      %v2319 = vmax.f32 %v2317, %v2318
      %v2320 = vrot.slane %v2319, 2
      %v2321 = vmax.f32 %v2319, %v2320
      %v2322 = vrot.slane %v2321, 1
      %v2323 = vmax.f32 %v2321, %v2322
      %v2324 = vsel %vm1882, %v1481, -inf
      %v2325 = vrot.slane %v2324, 4
      %v2326 = vmax.f32 %v2324, %v2325
      %v2327 = vrot.slane %v2326, 2
      %v2328 = vmax.f32 %v2326, %v2327
      %v2329 = vrot.slane %v2328, 1
      %v2330 = vmax.f32 %v2328, %v2329
      %v2331 = vsel %vm1882, %v1489, -inf
      %v2332 = vrot.slane %v2331, 4
      %v2333 = vmax.f32 %v2331, %v2332
      %v2334 = vrot.slane %v2333, 2
      %v2335 = vmax.f32 %v2333, %v2334
      %v2336 = vrot.slane %v2335, 1
      %v2337 = vmax.f32 %v2335, %v2336
      %v2338 = vsel %vm1882, %v1497, -inf
      %v2339 = vrot.slane %v2338, 4
      %v2340 = vmax.f32 %v2338, %v2339
      %v2341 = vrot.slane %v2340, 2
      %v2342 = vmax.f32 %v2340, %v2341
      %v2343 = vrot.slane %v2342, 1
      %v2344 = vmax.f32 %v2342, %v2343
      %v2345 = vsel %vm1882, %v1496, -inf
      %v2346 = vrot.slane %v2345, 4
      %v2347 = vmax.f32 %v2345, %v2346
      %v2348 = vrot.slane %v2347, 2
      %v2349 = vmax.f32 %v2347, %v2348
      %v2350 = vrot.slane %v2349, 1
      %v2351 = vmax.f32 %v2349, %v2350
      %v2352 = vsel %vm1882, %v1498, -inf
      %v2353 = vrot.slane %v2352, 4
      %v2354 = vmax.f32 %v2352, %v2353
      %v2355 = vrot.slane %v2354, 2
      %v2356 = vmax.f32 %v2354, %v2355
      %v2357 = vrot.slane %v2356, 1
      %v2358 = vmax.f32 %v2356, %v2357
      %v2359 = vsel %vm1882, %v1506, -inf
      %v2360 = vrot.slane %v2359, 4
      %v2361 = vmax.f32 %v2359, %v2360
      %v2362 = vrot.slane %v2361, 2
      %v2363 = vmax.f32 %v2361, %v2362
      %v2364 = vrot.slane %v2363, 1
      %v2365 = vmax.f32 %v2363, %v2364
      %v2366 = vsel %vm1882, %v1514, -inf
      %v2367 = vrot.slane %v2366, 4
      %v2368 = vmax.f32 %v2366, %v2367
      %v2369 = vrot.slane %v2368, 2
      %v2370 = vmax.f32 %v2368, %v2369
      %v2371 = vrot.slane %v2370, 1
      %v2372 = vmax.f32 %v2370, %v2371
      %v2373 = vsel %vm1882, %v1513, -inf
      %v2374 = vrot.slane %v2373, 4
      %v2375 = vmax.f32 %v2373, %v2374
      %v2376 = vrot.slane %v2375, 2
      %v2377 = vmax.f32 %v2375, %v2376
      %v2378 = vrot.slane %v2377, 1
      %v2379 = vmax.f32 %v2377, %v2378
      %v2380 = vsel %vm1882, %v1515, -inf
      %v2381 = vrot.slane %v2380, 4
      %v2382 = vmax.f32 %v2380, %v2381
      %v2383 = vrot.slane %v2382, 2
      %v2384 = vmax.f32 %v2382, %v2383
      %v2385 = vrot.slane %v2384, 1
      %v2386 = vmax.f32 %v2384, %v2385
      %v2387 = vsel %vm1882, %v1523, -inf
      %v2388 = vrot.slane %v2387, 4
      %v2389 = vmax.f32 %v2387, %v2388
      %v2390 = vrot.slane %v2389, 2
      %v2391 = vmax.f32 %v2389, %v2390
      %v2392 = vrot.slane %v2391, 1
      %v2393 = vmax.f32 %v2391, %v2392
      %v2394 = vsel %vm1882, %v1531, -inf
      %v2395 = vrot.slane %v2394, 4
      %v2396 = vmax.f32 %v2394, %v2395
      %v2397 = vrot.slane %v2396, 2
      %v2398 = vmax.f32 %v2396, %v2397
      %v2399 = vrot.slane %v2398, 1
      %v2400 = vmax.f32 %v2398, %v2399
      %v2401 = vsel %vm1882, %v1530, -inf
      %v2402 = vrot.slane %v2401, 4
      %v2403 = vmax.f32 %v2401, %v2402
      %v2404 = vrot.slane %v2403, 2
      %v2405 = vmax.f32 %v2403, %v2404
      %v2406 = vrot.slane %v2405, 1
      %v2407 = vmax.f32 %v2405, %v2406
      %v2408 = vsel %vm1882, %v1532, -inf
      %v2409 = vrot.slane %v2408, 4
      %v2410 = vmax.f32 %v2408, %v2409
      %v2411 = vrot.slane %v2410, 2
      %v2412 = vmax.f32 %v2410, %v2411
      %v2413 = vrot.slane %v2412, 1
      %v2414 = vmax.f32 %v2412, %v2413
      %v2415 = vsel %vm1882, %v1540, -inf
      %v2416 = vrot.slane %v2415, 4
      %v2417 = vmax.f32 %v2415, %v2416
      %v2418 = vrot.slane %v2417, 2
      %v2419 = vmax.f32 %v2417, %v2418
      %v2420 = vrot.slane %v2419, 1
      %v2421 = vmax.f32 %v2419, %v2420
      %v2422 = vsel %vm1882, %v1548, -inf
      %v2423 = vrot.slane %v2422, 4
      %v2424 = vmax.f32 %v2422, %v2423
      %v2425 = vrot.slane %v2424, 2
      %v2426 = vmax.f32 %v2424, %v2425
      %v2427 = vrot.slane %v2426, 1
      %v2428 = vmax.f32 %v2426, %v2427
      %v2429 = vsel %vm1882, %v1547, -inf
      %v2430 = vrot.slane %v2429, 4
      %v2431 = vmax.f32 %v2429, %v2430
      %v2432 = vrot.slane %v2431, 2
      %v2433 = vmax.f32 %v2431, %v2432
      %v2434 = vrot.slane %v2433, 1
      %v2435 = vmax.f32 %v2433, %v2434
      %v2436 = vsel %vm1882, %v1549, -inf
      %v2437 = vrot.slane %v2436, 4
      %v2438 = vmax.f32 %v2436, %v2437
      %v2439 = vrot.slane %v2438, 2
      %v2440 = vmax.f32 %v2438, %v2439
      %v2441 = vrot.slane %v2440, 1
      %v2442 = vmax.f32 %v2440, %v2441
      %v2443 = vsel %vm1882, %v1557, -inf
      %v2444 = vrot.slane %v2443, 4
      %v2445 = vmax.f32 %v2443, %v2444
      %v2446 = vrot.slane %v2445, 2
      %v2447 = vmax.f32 %v2445, %v2446
      %v2448 = vrot.slane %v2447, 1
      %v2449 = vmax.f32 %v2447, %v2448
      %v2450 = vsel %vm1882, %v1565, -inf
      %v2451 = vrot.slane %v2450, 4
      %v2452 = vmax.f32 %v2450, %v2451
      %v2453 = vrot.slane %v2452, 2
      %v2454 = vmax.f32 %v2452, %v2453
      %v2455 = vrot.slane %v2454, 1
      %v2456 = vmax.f32 %v2454, %v2455
      %v2457 = vsel %vm1882, %v1564, -inf
      %v2458 = vrot.slane %v2457, 4
      %v2459 = vmax.f32 %v2457, %v2458
      %v2460 = vrot.slane %v2459, 2
      %v2461 = vmax.f32 %v2459, %v2460
      %v2462 = vrot.slane %v2461, 1
      %v2463 = vmax.f32 %v2461, %v2462
      %v2464 = vsel %vm1882, %v1566, -inf
      %v2465 = vrot.slane %v2464, 4
      %v2466 = vmax.f32 %v2464, %v2465
      %v2467 = vrot.slane %v2466, 2
      %v2468 = vmax.f32 %v2466, %v2467
      %v2469 = vrot.slane %v2468, 1
      %v2470 = vmax.f32 %v2468, %v2469
      %v2471 = vsel %vm1882, %v1574, -inf
      %v2472 = vrot.slane %v2471, 4
      %v2473 = vmax.f32 %v2471, %v2472
      %v2474 = vrot.slane %v2473, 2
      %v2475 = vmax.f32 %v2473, %v2474
      %v2476 = vrot.slane %v2475, 1
      %v2477 = vmax.f32 %v2475, %v2476
      %v2478 = vsel %vm1882, %v1582, -inf
      %v2479 = vrot.slane %v2478, 4
      %v2480 = vmax.f32 %v2478, %v2479
      %v2481 = vrot.slane %v2480, 2
      %v2482 = vmax.f32 %v2480, %v2481
      %v2483 = vrot.slane %v2482, 1
      %v2484 = vmax.f32 %v2482, %v2483
      %v2485 = vsel %vm1882, %v1581, -inf
      %v2486 = vrot.slane %v2485, 4
      %v2487 = vmax.f32 %v2485, %v2486
      %v2488 = vrot.slane %v2487, 2
      %v2489 = vmax.f32 %v2487, %v2488
      %v2490 = vrot.slane %v2489, 1
      %v2491 = vmax.f32 %v2489, %v2490
      %v2492 = vsel %vm1882, %v1583, -inf
      %v2493 = vrot.slane %v2492, 4
      %v2494 = vmax.f32 %v2492, %v2493
      %v2495 = vrot.slane %v2494, 2
      %v2496 = vmax.f32 %v2494, %v2495
      %v2497 = vrot.slane %v2496, 1
      %v2498 = vmax.f32 %v2496, %v2497
      %v2499 = vsel %vm1882, %v1591, -inf
      %v2500 = vrot.slane %v2499, 4
      %v2501 = vmax.f32 %v2499, %v2500
      %v2502 = vrot.slane %v2501, 2
      %v2503 = vmax.f32 %v2501, %v2502
      %v2504 = vrot.slane %v2503, 1
      %v2505 = vmax.f32 %v2503, %v2504
      %v2506 = vsel %vm1882, %v1599, -inf
      %v2507 = vrot.slane %v2506, 4
      %v2508 = vmax.f32 %v2506, %v2507
      %v2509 = vrot.slane %v2508, 2
      %v2510 = vmax.f32 %v2508, %v2509
      %v2511 = vrot.slane %v2510, 1
      %v2512 = vmax.f32 %v2510, %v2511
      %v2513 = vsel %vm1882, %v1598, -inf
      %v2514 = vrot.slane %v2513, 4
      %v2515 = vmax.f32 %v2513, %v2514
      %v2516 = vrot.slane %v2515, 2
      %v2517 = vmax.f32 %v2515, %v2516
      %v2518 = vrot.slane %v2517, 1
      %v2519 = vmax.f32 %v2517, %v2518
      %v2520 = vsel %vm1882, %v1600, -inf
      %v2521 = vrot.slane %v2520, 4
      %v2522 = vmax.f32 %v2520, %v2521
      %v2523 = vrot.slane %v2522, 2
      %v2524 = vmax.f32 %v2522, %v2523
      %v2525 = vrot.slane %v2524, 1
      %v2526 = vmax.f32 %v2524, %v2525
      %v2527 = vsel %vm1882, %v1608, -inf
      %v2528 = vrot.slane %v2527, 4
      %v2529 = vmax.f32 %v2527, %v2528
      %v2530 = vrot.slane %v2529, 2
      %v2531 = vmax.f32 %v2529, %v2530
      %v2532 = vrot.slane %v2531, 1
      %v2533 = vmax.f32 %v2531, %v2532
      %v2534 = vsel %vm1882, %v1616, -inf
      %v2535 = vrot.slane %v2534, 4
      %v2536 = vmax.f32 %v2534, %v2535
      %v2537 = vrot.slane %v2536, 2
      %v2538 = vmax.f32 %v2536, %v2537
      %v2539 = vrot.slane %v2538, 1
      %v2540 = vmax.f32 %v2538, %v2539
      %v2541 = vsel %vm1882, %v1615, -inf
      %v2542 = vrot.slane %v2541, 4
      %v2543 = vmax.f32 %v2541, %v2542
      %v2544 = vrot.slane %v2543, 2
      %v2545 = vmax.f32 %v2543, %v2544
      %v2546 = vrot.slane %v2545, 1
      %v2547 = vmax.f32 %v2545, %v2546
      %v2548 = vsel %vm1882, %v1617, -inf
      %v2549 = vrot.slane %v2548, 4
      %v2550 = vmax.f32 %v2548, %v2549
      %v2551 = vrot.slane %v2550, 2
      %v2552 = vmax.f32 %v2550, %v2551
      %v2553 = vrot.slane %v2552, 1
      %v2554 = vmax.f32 %v2552, %v2553
      %v2555 = vsel %vm1882, %v1625, -inf
      %v2556 = vrot.slane %v2555, 4
      %v2557 = vmax.f32 %v2555, %v2556
      %v2558 = vrot.slane %v2557, 2
      %v2559 = vmax.f32 %v2557, %v2558
      %v2560 = vrot.slane %v2559, 1
      %v2561 = vmax.f32 %v2559, %v2560
      %v2562 = vsel %vm1882, %v1633, -inf
      %v2563 = vrot.slane %v2562, 4
      %v2564 = vmax.f32 %v2562, %v2563
      %v2565 = vrot.slane %v2564, 2
      %v2566 = vmax.f32 %v2564, %v2565
      %v2567 = vrot.slane %v2566, 1
      %v2568 = vmax.f32 %v2566, %v2567
      %v2569 = vsel %vm1882, %v1632, -inf
      %v2570 = vrot.slane %v2569, 4
      %v2571 = vmax.f32 %v2569, %v2570
      %v2572 = vrot.slane %v2571, 2
      %v2573 = vmax.f32 %v2571, %v2572
      %v2574 = vrot.slane %v2573, 1
      %v2575 = vmax.f32 %v2573, %v2574
      %v2576 = vsel %vm1882, %v1634, -inf
      %v2577 = vrot.slane %v2576, 4
      %v2578 = vmax.f32 %v2576, %v2577
      %v2579 = vrot.slane %v2578, 2
      %v2580 = vmax.f32 %v2578, %v2579
      %v2581 = vrot.slane %v2580, 1
      %v2582 = vmax.f32 %v2580, %v2581
      %v2583 = vsel %vm1882, %v1642, -inf
      %v2584 = vrot.slane %v2583, 4
      %v2585 = vmax.f32 %v2583, %v2584
      %v2586 = vrot.slane %v2585, 2
      %v2587 = vmax.f32 %v2585, %v2586
      %v2588 = vrot.slane %v2587, 1
      %v2589 = vmax.f32 %v2587, %v2588
      %v2590 = vsel %vm1882, %v1650, -inf
      %v2591 = vrot.slane %v2590, 4
      %v2592 = vmax.f32 %v2590, %v2591
      %v2593 = vrot.slane %v2592, 2
      %v2594 = vmax.f32 %v2592, %v2593
      %v2595 = vrot.slane %v2594, 1
      %v2596 = vmax.f32 %v2594, %v2595
      %v2597 = vsel %vm1882, %v1649, -inf
      %v2598 = vrot.slane %v2597, 4
      %v2599 = vmax.f32 %v2597, %v2598
      %v2600 = vrot.slane %v2599, 2
      %v2601 = vmax.f32 %v2599, %v2600
      %v2602 = vrot.slane %v2601, 1
      %v2603 = vmax.f32 %v2601, %v2602
      %v2604 = vsel %vm1882, %v1651, -inf
      %v2605 = vrot.slane %v2604, 4
      %v2606 = vmax.f32 %v2604, %v2605
      %v2607 = vrot.slane %v2606, 2
      %v2608 = vmax.f32 %v2606, %v2607
      %v2609 = vrot.slane %v2608, 1
      %v2610 = vmax.f32 %v2608, %v2609
      %v2611 = vsel %vm1882, %v1659, -inf
      %v2612 = vrot.slane %v2611, 4
      %v2613 = vmax.f32 %v2611, %v2612
      %v2614 = vrot.slane %v2613, 2
      %v2615 = vmax.f32 %v2613, %v2614
      %v2616 = vrot.slane %v2615, 1
      %v2617 = vmax.f32 %v2615, %v2616
      %v2618 = vsel %vm1882, %v1667, -inf
      %v2619 = vrot.slane %v2618, 4
      %v2620 = vmax.f32 %v2618, %v2619
      %v2621 = vrot.slane %v2620, 2
      %v2622 = vmax.f32 %v2620, %v2621
      %v2623 = vrot.slane %v2622, 1
      %v2624 = vmax.f32 %v2622, %v2623
      %v2625 = vsel %vm1882, %v1666, -inf
      %v2626 = vrot.slane %v2625, 4
      %v2627 = vmax.f32 %v2625, %v2626
      %v2628 = vrot.slane %v2627, 2
      %v2629 = vmax.f32 %v2627, %v2628
      %v2630 = vrot.slane %v2629, 1
      %v2631 = vmax.f32 %v2629, %v2630
      %v2632 = vsel %vm1882, %v1668, -inf
      %v2633 = vrot.slane %v2632, 4
      %v2634 = vmax.f32 %v2632, %v2633
      %v2635 = vrot.slane %v2634, 2
      %v2636 = vmax.f32 %v2634, %v2635
      %v2637 = vrot.slane %v2636, 1
      %v2638 = vmax.f32 %v2636, %v2637
      %v2639 = vsel %vm1882, %v1676, -inf
      %v2640 = vrot.slane %v2639, 4
      %v2641 = vmax.f32 %v2639, %v2640
      %v2642 = vrot.slane %v2641, 2
      %v2643 = vmax.f32 %v2641, %v2642
      %v2644 = vrot.slane %v2643, 1
      %v2645 = vmax.f32 %v2643, %v2644
      %v2646 = vsel %vm1882, %v1684, -inf
      %v2647 = vrot.slane %v2646, 4
      %v2648 = vmax.f32 %v2646, %v2647
      %v2649 = vrot.slane %v2648, 2
      %v2650 = vmax.f32 %v2648, %v2649
      %v2651 = vrot.slane %v2650, 1
      %v2652 = vmax.f32 %v2650, %v2651
      %v2653 = vsel %vm1882, %v1683, -inf
      %v2654 = vrot.slane %v2653, 4
      %v2655 = vmax.f32 %v2653, %v2654
      %v2656 = vrot.slane %v2655, 2
      %v2657 = vmax.f32 %v2655, %v2656
      %v2658 = vrot.slane %v2657, 1
      %v2659 = vmax.f32 %v2657, %v2658
      %v2660 = vsel %vm1882, %v1685, -inf
      %v2661 = vrot.slane %v2660, 4
      %v2662 = vmax.f32 %v2660, %v2661
      %v2663 = vrot.slane %v2662, 2
      %v2664 = vmax.f32 %v2662, %v2663
      %v2665 = vrot.slane %v2664, 1
      %v2666 = vmax.f32 %v2664, %v2665
      %v2667 = vsel %vm1882, %v1693, -inf
      %v2668 = vrot.slane %v2667, 4
      %v2669 = vmax.f32 %v2667, %v2668
      %v2670 = vrot.slane %v2669, 2
      %v2671 = vmax.f32 %v2669, %v2670
      %v2672 = vrot.slane %v2671, 1
      %v2673 = vmax.f32 %v2671, %v2672
      %v2674 = vsel %vm1882, %v1701, -inf
      %v2675 = vrot.slane %v2674, 4
      %v2676 = vmax.f32 %v2674, %v2675
      %v2677 = vrot.slane %v2676, 2
      %v2678 = vmax.f32 %v2676, %v2677
      %v2679 = vrot.slane %v2678, 1
      %v2680 = vmax.f32 %v2678, %v2679
      %v2681 = vsel %vm1882, %v1700, -inf
      %v2682 = vrot.slane %v2681, 4
      %v2683 = vmax.f32 %v2681, %v2682
      %v2684 = vrot.slane %v2683, 2
      %v2685 = vmax.f32 %v2683, %v2684
      %v2686 = vrot.slane %v2685, 1
      %v2687 = vmax.f32 %v2685, %v2686
      %v2688 = vsel %vm1882, %v1702, -inf
      %v2689 = vrot.slane %v2688, 4
      %v2690 = vmax.f32 %v2688, %v2689
      %v2691 = vrot.slane %v2690, 2
      %v2692 = vmax.f32 %v2690, %v2691
      %v2693 = vrot.slane %v2692, 1
      %v2694 = vmax.f32 %v2692, %v2693
      %v2695 = vsel %vm1882, %v1710, -inf
      %v2696 = vrot.slane %v2695, 4
      %v2697 = vmax.f32 %v2695, %v2696
      %v2698 = vrot.slane %v2697, 2
      %v2699 = vmax.f32 %v2697, %v2698
      %v2700 = vrot.slane %v2699, 1
      %v2701 = vmax.f32 %v2699, %v2700
      %v2702 = vsel %vm1882, %v1718, -inf
      %v2703 = vrot.slane %v2702, 4
      %v2704 = vmax.f32 %v2702, %v2703
      %v2705 = vrot.slane %v2704, 2
      %v2706 = vmax.f32 %v2704, %v2705
      %v2707 = vrot.slane %v2706, 1
      %v2708 = vmax.f32 %v2706, %v2707
      %v2709 = vsel %vm1882, %v1717, -inf
      %v2710 = vrot.slane %v2709, 4
      %v2711 = vmax.f32 %v2709, %v2710
      %v2712 = vrot.slane %v2711, 2
      %v2713 = vmax.f32 %v2711, %v2712
      %v2714 = vrot.slane %v2713, 1
      %v2715 = vmax.f32 %v2713, %v2714
      %v2716 = vsel %vm1882, %v1719, -inf
      %v2717 = vrot.slane %v2716, 4
      %v2718 = vmax.f32 %v2716, %v2717
      %v2719 = vrot.slane %v2718, 2
      %v2720 = vmax.f32 %v2718, %v2719
      %v2721 = vrot.slane %v2720, 1
      %v2722 = vmax.f32 %v2720, %v2721
      %v2723 = vsel %vm1882, %v1727, -inf
      %v2724 = vrot.slane %v2723, 4
      %v2725 = vmax.f32 %v2723, %v2724
      %v2726 = vrot.slane %v2725, 2
      %v2727 = vmax.f32 %v2725, %v2726
      %v2728 = vrot.slane %v2727, 1
      %v2729 = vmax.f32 %v2727, %v2728
      %v2730 = vsel %vm1882, %v1735, -inf
      %v2731 = vrot.slane %v2730, 4
      %v2732 = vmax.f32 %v2730, %v2731
      %v2733 = vrot.slane %v2732, 2
      %v2734 = vmax.f32 %v2732, %v2733
      %v2735 = vrot.slane %v2734, 1
      %v2736 = vmax.f32 %v2734, %v2735
      %v2737 = vsel %vm1882, %v1734, -inf
      %v2738 = vrot.slane %v2737, 4
      %v2739 = vmax.f32 %v2737, %v2738
      %v2740 = vrot.slane %v2739, 2
      %v2741 = vmax.f32 %v2739, %v2740
      %v2742 = vrot.slane %v2741, 1
      %v2743 = vmax.f32 %v2741, %v2742
      %v2744 = vsel %vm1882, %v1736, -inf
      %v2745 = vrot.slane %v2744, 4
      %v2746 = vmax.f32 %v2744, %v2745
      %v2747 = vrot.slane %v2746, 2
      %v2748 = vmax.f32 %v2746, %v2747
      %v2749 = vrot.slane %v2748, 1
      %v2750 = vmax.f32 %v2748, %v2749
      %v2751 = vsel %vm1882, %v1744, -inf
      %v2752 = vrot.slane %v2751, 4
      %v2753 = vmax.f32 %v2751, %v2752
      %v2754 = vrot.slane %v2753, 2
      %v2755 = vmax.f32 %v2753, %v2754
      %v2756 = vrot.slane %v2755, 1
      %v2757 = vmax.f32 %v2755, %v2756
      %v2758 = vsel %vm1882, %v1752, -inf
      %v2759 = vrot.slane %v2758, 4
      %v2760 = vmax.f32 %v2758, %v2759
      %v2761 = vrot.slane %v2760, 2
      %v2762 = vmax.f32 %v2760, %v2761
      %v2763 = vrot.slane %v2762, 1
      %v2764 = vmax.f32 %v2762, %v2763
      %v2765 = vsel %vm1882, %v1751, -inf
      %v2766 = vrot.slane %v2765, 4
      %v2767 = vmax.f32 %v2765, %v2766
      %v2768 = vrot.slane %v2767, 2
      %v2769 = vmax.f32 %v2767, %v2768
      %v2770 = vrot.slane %v2769, 1
      %v2771 = vmax.f32 %v2769, %v2770
      %v2772 = vsel %vm1882, %v1753, -inf
      %v2773 = vrot.slane %v2772, 4
      %v2774 = vmax.f32 %v2772, %v2773
      %v2775 = vrot.slane %v2774, 2
      %v2776 = vmax.f32 %v2774, %v2775
      %v2777 = vrot.slane %v2776, 1
      %v2778 = vmax.f32 %v2776, %v2777
      %v2779 = vpack.c.bf16 %v1889, %v1889
      %v2780 = vpack.c.bf16 %v1896, %v1896
      %v2781 = vpack.c.bf16 %v1903, %v1903
      %v2782 = vpack.c.bf16 %v1910, %v1910
      %v2783 = vpack.c.bf16 %v1917, %v1917
      %v2784 = vpack.c.bf16 %v1924, %v1924
      %v2785 = vpack.c.bf16 %v1931, %v1931
      %v2786 = vpack.c.bf16 %v1938, %v1938
      %v2787 = vpack.c.bf16 %v1945, %v1945
      %v2788 = vpack.c.bf16 %v1952, %v1952
      %v2789 = vpack.c.bf16 %v1959, %v1959
      %v2790 = vpack.c.bf16 %v1966, %v1966
      %v2791 = vpack.c.bf16 %v1973, %v1973
      %v2792 = vpack.c.bf16 %v1980, %v1980
      %v2793 = vpack.c.bf16 %v1987, %v1987
      %v2794 = vpack.c.bf16 %v1994, %v1994
      %v2795 = vpack.c.bf16 %v2001, %v2001
      %v2796 = vpack.c.bf16 %v2008, %v2008
      %v2797 = vpack.c.bf16 %v2015, %v2015
      %v2798 = vpack.c.bf16 %v2022, %v2022
      %v2799 = vpack.c.bf16 %v2029, %v2029
      %v2800 = vpack.c.bf16 %v2036, %v2036
      %v2801 = vpack.c.bf16 %v2043, %v2043
      %v2802 = vpack.c.bf16 %v2050, %v2050
      %v2803 = vpack.c.bf16 %v2057, %v2057
      %v2804 = vpack.c.bf16 %v2064, %v2064
      %v2805 = vpack.c.bf16 %v2071, %v2071
      %v2806 = vpack.c.bf16 %v2078, %v2078
      %v2807 = vpack.c.bf16 %v2085, %v2085
      %v2808 = vpack.c.bf16 %v2092, %v2092
      %v2809 = vpack.c.bf16 %v2099, %v2099
      %v2810 = vpack.c.bf16 %v2106, %v2106
      %v2811 = vpack.c.bf16 %v2113, %v2113
      %v2812 = vpack.c.bf16 %v2120, %v2120
      %v2813 = vpack.c.bf16 %v2127, %v2127
      %v2814 = vpack.c.bf16 %v2134, %v2134
      %v2815 = vpack.c.bf16 %v2141, %v2141
      %v2816 = vpack.c.bf16 %v2148, %v2148
      %v2817 = vpack.c.bf16 %v2155, %v2155
      %v2818 = vpack.c.bf16 %v2162, %v2162
      %v2819 = vpack.c.bf16 %v2169, %v2169
      %v2820 = vpack.c.bf16 %v2176, %v2176
      %v2821 = vpack.c.bf16 %v2183, %v2183
      %v2822 = vpack.c.bf16 %v2190, %v2190
      %v2823 = vpack.c.bf16 %v2197, %v2197
      %v2824 = vpack.c.bf16 %v2204, %v2204
      %v2825 = vpack.c.bf16 %v2211, %v2211
      %v2826 = vpack.c.bf16 %v2218, %v2218
      %v2827 = vpack.c.bf16 %v2225, %v2225
      %v2828 = vpack.c.bf16 %v2232, %v2232
      %v2829 = vpack.c.bf16 %v2239, %v2239
      %v2830 = vpack.c.bf16 %v2246, %v2246
      %v2831 = vpack.c.bf16 %v2253, %v2253
      %v2832 = vpack.c.bf16 %v2260, %v2260
      %v2833 = vpack.c.bf16 %v2267, %v2267
      %v2834 = vpack.c.bf16 %v2274, %v2274
      %v2835 = vpack.c.bf16 %v2281, %v2281
      %v2836 = vpack.c.bf16 %v2288, %v2288
      %v2837 = vpack.c.bf16 %v2295, %v2295
      %v2838 = vpack.c.bf16 %v2302, %v2302
      %v2839 = vpack.c.bf16 %v2309, %v2309
      %v2840 = vpack.c.bf16 %v2316, %v2316
      %v2841 = vpack.c.bf16 %v2323, %v2323
      %v2842 = vpack.c.bf16 %v2330, %v2330
      %v2843 = vpack.c.bf16 %v2337, %v2337
      %v2844 = vpack.c.bf16 %v2344, %v2344
      %v2845 = vpack.c.bf16 %v2351, %v2351
      %v2846 = vpack.c.bf16 %v2358, %v2358
      %v2847 = vpack.c.bf16 %v2365, %v2365
      %v2848 = vpack.c.bf16 %v2372, %v2372
      %v2849 = vpack.c.bf16 %v2379, %v2379
      %v2850 = vpack.c.bf16 %v2386, %v2386
      %v2851 = vpack.c.bf16 %v2393, %v2393
      %v2852 = vpack.c.bf16 %v2400, %v2400
      %v2853 = vpack.c.bf16 %v2407, %v2407
      %v2854 = vpack.c.bf16 %v2414, %v2414
      %v2855 = vpack.c.bf16 %v2421, %v2421
      %v2856 = vpack.c.bf16 %v2428, %v2428
      %v2857 = vpack.c.bf16 %v2435, %v2435
      %v2858 = vpack.c.bf16 %v2442, %v2442
      %v2859 = vpack.c.bf16 %v2449, %v2449
      %v2860 = vpack.c.bf16 %v2456, %v2456
      %v2861 = vpack.c.bf16 %v2463, %v2463
      %v2862 = vpack.c.bf16 %v2470, %v2470
      %v2863 = vpack.c.bf16 %v2477, %v2477
      %v2864 = vpack.c.bf16 %v2484, %v2484
      %v2865 = vpack.c.bf16 %v2491, %v2491
      %v2866 = vpack.c.bf16 %v2498, %v2498
      %v2867 = vpack.c.bf16 %v2505, %v2505
      %v2868 = vpack.c.bf16 %v2512, %v2512
      %v2869 = vpack.c.bf16 %v2519, %v2519
      %v2870 = vpack.c.bf16 %v2526, %v2526
      %v2871 = vpack.c.bf16 %v2533, %v2533
      %v2872 = vpack.c.bf16 %v2540, %v2540
      %v2873 = vpack.c.bf16 %v2547, %v2547
      %v2874 = vpack.c.bf16 %v2554, %v2554
      %v2875 = vpack.c.bf16 %v2561, %v2561
      %v2876 = vpack.c.bf16 %v2568, %v2568
      %v2877 = vpack.c.bf16 %v2575, %v2575
      %v2878 = vpack.c.bf16 %v2582, %v2582
      %v2879 = vpack.c.bf16 %v2589, %v2589
      %v2880 = vpack.c.bf16 %v2596, %v2596
      %v2881 = vpack.c.bf16 %v2603, %v2603
      %v2882 = vpack.c.bf16 %v2610, %v2610
      %v2883 = vpack.c.bf16 %v2617, %v2617
      %v2884 = vpack.c.bf16 %v2624, %v2624
      %v2885 = vpack.c.bf16 %v2631, %v2631
      %v2886 = vpack.c.bf16 %v2638, %v2638
      %v2887 = vpack.c.bf16 %v2645, %v2645
      %v2888 = vpack.c.bf16 %v2652, %v2652
      %v2889 = vpack.c.bf16 %v2659, %v2659
      %v2890 = vpack.c.bf16 %v2666, %v2666
      %v2891 = vpack.c.bf16 %v2673, %v2673
      %v2892 = vpack.c.bf16 %v2680, %v2680
      %v2893 = vpack.c.bf16 %v2687, %v2687
      %v2894 = vpack.c.bf16 %v2694, %v2694
      %v2895 = vpack.c.bf16 %v2701, %v2701
      %v2896 = vpack.c.bf16 %v2708, %v2708
      %v2897 = vpack.c.bf16 %v2715, %v2715
      %v2898 = vpack.c.bf16 %v2722, %v2722
      %v2899 = vpack.c.bf16 %v2729, %v2729
      %v2900 = vpack.c.bf16 %v2736, %v2736
      %v2901 = vpack.c.bf16 %v2743, %v2743
      %v2902 = vpack.c.bf16 %v2750, %v2750
      %v2903 = vpack.c.bf16 %v2757, %v2757
      %v2904 = vpack.c.bf16 %v2764, %v2764
      %v2905 = vpack.c.bf16 %v2771, %v2771
      %v2906 = vpack.c.bf16 %v2778, %v2778
      %v3035 = vunpack.c.l.b16 %v2779
      %v3036 = vunpack.c.l.b16 %v2780
      %v3037 = vunpack.c.l.b16 %v2781
      %v3038 = vunpack.c.l.b16 %v2782
      %v3039 = vunpack.c.l.b16 %v2783
      %v3040 = vunpack.c.l.b16 %v2784
      %v3041 = vunpack.c.l.b16 %v2785
      %v3042 = vunpack.c.l.b16 %v2786
      %v3043 = vunpack.c.l.b16 %v2787
      %v3044 = vunpack.c.l.b16 %v2788
      %v3045 = vunpack.c.l.b16 %v2789
      %v3046 = vunpack.c.l.b16 %v2790
      %v3047 = vunpack.c.l.b16 %v2791
      %v3048 = vunpack.c.l.b16 %v2792
      %v3049 = vunpack.c.l.b16 %v2793
      %v3050 = vunpack.c.l.b16 %v2794
      %v3051 = vunpack.c.l.b16 %v2795
      %v3052 = vunpack.c.l.b16 %v2796
      %v3053 = vunpack.c.l.b16 %v2797
      %v3054 = vunpack.c.l.b16 %v2798
      %v3055 = vunpack.c.l.b16 %v2799
      %v3056 = vunpack.c.l.b16 %v2800
      %v3057 = vunpack.c.l.b16 %v2801
      %v3058 = vunpack.c.l.b16 %v2802
      %v3059 = vunpack.c.l.b16 %v2803
      %v3060 = vunpack.c.l.b16 %v2804
      %v3061 = vunpack.c.l.b16 %v2805
      %v3062 = vunpack.c.l.b16 %v2806
      %v3063 = vunpack.c.l.b16 %v2807
      %v3064 = vunpack.c.l.b16 %v2808
      %v3065 = vunpack.c.l.b16 %v2809
      %v3066 = vunpack.c.l.b16 %v2810
      %v3067 = vunpack.c.l.b16 %v2811
      %v3068 = vunpack.c.l.b16 %v2812
      %v3069 = vunpack.c.l.b16 %v2813
      %v3070 = vunpack.c.l.b16 %v2814
      %v3071 = vunpack.c.l.b16 %v2815
      %v3072 = vunpack.c.l.b16 %v2816
      %v3073 = vunpack.c.l.b16 %v2817
      %v3074 = vunpack.c.l.b16 %v2818
      %v3075 = vunpack.c.l.b16 %v2819
      %v3076 = vunpack.c.l.b16 %v2820
      %v3077 = vunpack.c.l.b16 %v2821
      %v3078 = vunpack.c.l.b16 %v2822
      %v3079 = vunpack.c.l.b16 %v2823
      %v3080 = vunpack.c.l.b16 %v2824
      %v3081 = vunpack.c.l.b16 %v2825
      %v3082 = vunpack.c.l.b16 %v2826
      %v3083 = vunpack.c.l.b16 %v2827
      %v3084 = vunpack.c.l.b16 %v2828
      %v3085 = vunpack.c.l.b16 %v2829
      %v3086 = vunpack.c.l.b16 %v2830
      %v3087 = vunpack.c.l.b16 %v2831
      %v3088 = vunpack.c.l.b16 %v2832
      %v3089 = vunpack.c.l.b16 %v2833
      %v3090 = vunpack.c.l.b16 %v2834
      %v3091 = vunpack.c.l.b16 %v2835
      %v3092 = vunpack.c.l.b16 %v2836
      %v3093 = vunpack.c.l.b16 %v2837
      %v3094 = vunpack.c.l.b16 %v2838
      %v3095 = vunpack.c.l.b16 %v2839
      %v3096 = vunpack.c.l.b16 %v2840
      %v3097 = vunpack.c.l.b16 %v2841
      %v3098 = vunpack.c.l.b16 %v2842
      %v3099 = vunpack.c.l.b16 %v2843
      %v3100 = vunpack.c.l.b16 %v2844
      %v3101 = vunpack.c.l.b16 %v2845
      %v3102 = vunpack.c.l.b16 %v2846
      %v3103 = vunpack.c.l.b16 %v2847
      %v3104 = vunpack.c.l.b16 %v2848
      %v3105 = vunpack.c.l.b16 %v2849
      %v3106 = vunpack.c.l.b16 %v2850
      %v3107 = vunpack.c.l.b16 %v2851
      %v3108 = vunpack.c.l.b16 %v2852
      %v3109 = vunpack.c.l.b16 %v2853
      %v3110 = vunpack.c.l.b16 %v2854
      %v3111 = vunpack.c.l.b16 %v2855
      %v3112 = vunpack.c.l.b16 %v2856
      %v3113 = vunpack.c.l.b16 %v2857
      %v3114 = vunpack.c.l.b16 %v2858
      %v3115 = vunpack.c.l.b16 %v2859
      %v3116 = vunpack.c.l.b16 %v2860
      %v3117 = vunpack.c.l.b16 %v2861
      %v3118 = vunpack.c.l.b16 %v2862
      %v3119 = vunpack.c.l.b16 %v2863
      %v3120 = vunpack.c.l.b16 %v2864
      %v3121 = vunpack.c.l.b16 %v2865
      %v3122 = vunpack.c.l.b16 %v2866
      %v3123 = vunpack.c.l.b16 %v2867
      %v3124 = vunpack.c.l.b16 %v2868
      %v3125 = vunpack.c.l.b16 %v2869
      %v3126 = vunpack.c.l.b16 %v2870
      %v3127 = vunpack.c.l.b16 %v2871
      %v3128 = vunpack.c.l.b16 %v2872
      %v3129 = vunpack.c.l.b16 %v2873
      %v3130 = vunpack.c.l.b16 %v2874
      %v3131 = vunpack.c.l.b16 %v2875
      %v3132 = vunpack.c.l.b16 %v2876
      %v3133 = vunpack.c.l.b16 %v2877
      %v3134 = vunpack.c.l.b16 %v2878
      %v3135 = vunpack.c.l.b16 %v2879
      %v3136 = vunpack.c.l.b16 %v2880
      %v3137 = vunpack.c.l.b16 %v2881
      %v3138 = vunpack.c.l.b16 %v2882
      %v3139 = vunpack.c.l.b16 %v2883
      %v3140 = vunpack.c.l.b16 %v2884
      %v3141 = vunpack.c.l.b16 %v2885
      %v3142 = vunpack.c.l.b16 %v2886
      %v3143 = vunpack.c.l.b16 %v2887
      %v3144 = vunpack.c.l.b16 %v2888
      %v3145 = vunpack.c.l.b16 %v2889
      %v3146 = vunpack.c.l.b16 %v2890
      %v3147 = vunpack.c.l.b16 %v2891
      %v3148 = vunpack.c.l.b16 %v2892
      %v3149 = vunpack.c.l.b16 %v2893
      %v3150 = vunpack.c.l.b16 %v2894
      %v3151 = vunpack.c.l.b16 %v2895
      %v3152 = vunpack.c.l.b16 %v2896
      %v3153 = vunpack.c.l.b16 %v2897
      %v3154 = vunpack.c.l.b16 %v2898
      %v3155 = vunpack.c.l.b16 %v2899
      %v3156 = vunpack.c.l.b16 %v2900
      %v3157 = vunpack.c.l.b16 %v2901
      %v3158 = vunpack.c.l.b16 %v2902
      %v3159 = vunpack.c.l.b16 %v2903
      %v3160 = vunpack.c.l.b16 %v2904
      %v3161 = vunpack.c.l.b16 %v2905
      %v3162 = vunpack.c.l.b16 %v2906
      %v3163 = vpack.c.b16 %v3035, %v3035
      %v3164 = vpack.c.b16 %v3036, %v3036
      %v3165 = vpack.c.b16 %v3037, %v3037
      %v3166 = vpack.c.b16 %v3038, %v3038
      %v3167 = vpack.c.b16 %v3039, %v3039
      %v3168 = vpack.c.b16 %v3040, %v3040
      %v3169 = vpack.c.b16 %v3041, %v3041
      %v3170 = vpack.c.b16 %v3042, %v3042
      %v3171 = vpack.c.b16 %v3043, %v3043
      %v3172 = vpack.c.b16 %v3044, %v3044
      %v3173 = vpack.c.b16 %v3045, %v3045
      %v3174 = vpack.c.b16 %v3046, %v3046
      %v3175 = vpack.c.b16 %v3047, %v3047
      %v3176 = vpack.c.b16 %v3048, %v3048
      %v3177 = vpack.c.b16 %v3049, %v3049
      %v3178 = vpack.c.b16 %v3050, %v3050
      %v3179 = vpack.c.b16 %v3051, %v3051
      %v3180 = vpack.c.b16 %v3052, %v3052
      %v3181 = vpack.c.b16 %v3053, %v3053
      %v3182 = vpack.c.b16 %v3054, %v3054
      %v3183 = vpack.c.b16 %v3055, %v3055
      %v3184 = vpack.c.b16 %v3056, %v3056
      %v3185 = vpack.c.b16 %v3057, %v3057
      %v3186 = vpack.c.b16 %v3058, %v3058
      %v3187 = vpack.c.b16 %v3059, %v3059
      %v3188 = vpack.c.b16 %v3060, %v3060
      %v3189 = vpack.c.b16 %v3061, %v3061
      %v3190 = vpack.c.b16 %v3062, %v3062
      %v3191 = vpack.c.b16 %v3063, %v3063
      %v3192 = vpack.c.b16 %v3064, %v3064
      %v3193 = vpack.c.b16 %v3065, %v3065
      %v3194 = vpack.c.b16 %v3066, %v3066
      %v3195 = vpack.c.b16 %v3067, %v3067
      %v3196 = vpack.c.b16 %v3068, %v3068
      %v3197 = vpack.c.b16 %v3069, %v3069
      %v3198 = vpack.c.b16 %v3070, %v3070
      %v3199 = vpack.c.b16 %v3071, %v3071
      %v3200 = vpack.c.b16 %v3072, %v3072
      %v3201 = vpack.c.b16 %v3073, %v3073
      %v3202 = vpack.c.b16 %v3074, %v3074
      %v3203 = vpack.c.b16 %v3075, %v3075
      %v3204 = vpack.c.b16 %v3076, %v3076
      %v3205 = vpack.c.b16 %v3077, %v3077
      %v3206 = vpack.c.b16 %v3078, %v3078
      %v3207 = vpack.c.b16 %v3079, %v3079
      %v3208 = vpack.c.b16 %v3080, %v3080
      %v3209 = vpack.c.b16 %v3081, %v3081
      %v3210 = vpack.c.b16 %v3082, %v3082
      %v3211 = vpack.c.b16 %v3083, %v3083
      %v3212 = vpack.c.b16 %v3084, %v3084
      %v3213 = vpack.c.b16 %v3085, %v3085
      %v3214 = vpack.c.b16 %v3086, %v3086
      %v3215 = vpack.c.b16 %v3087, %v3087
      %v3216 = vpack.c.b16 %v3088, %v3088
      %v3217 = vpack.c.b16 %v3089, %v3089
      %v3218 = vpack.c.b16 %v3090, %v3090
      %v3219 = vpack.c.b16 %v3091, %v3091
      %v3220 = vpack.c.b16 %v3092, %v3092
      %v3221 = vpack.c.b16 %v3093, %v3093
      %v3222 = vpack.c.b16 %v3094, %v3094
      %v3223 = vpack.c.b16 %v3095, %v3095
      %v3224 = vpack.c.b16 %v3096, %v3096
      %v3225 = vpack.c.b16 %v3097, %v3097
      %v3226 = vpack.c.b16 %v3098, %v3098
      %v3227 = vpack.c.b16 %v3099, %v3099
      %v3228 = vpack.c.b16 %v3100, %v3100
      %v3229 = vpack.c.b16 %v3101, %v3101
      %v3230 = vpack.c.b16 %v3102, %v3102
      %v3231 = vpack.c.b16 %v3103, %v3103
      %v3232 = vpack.c.b16 %v3104, %v3104
      %v3233 = vpack.c.b16 %v3105, %v3105
      %v3234 = vpack.c.b16 %v3106, %v3106
      %v3235 = vpack.c.b16 %v3107, %v3107
      %v3236 = vpack.c.b16 %v3108, %v3108
      %v3237 = vpack.c.b16 %v3109, %v3109
      %v3238 = vpack.c.b16 %v3110, %v3110
      %v3239 = vpack.c.b16 %v3111, %v3111
      %v3240 = vpack.c.b16 %v3112, %v3112
      %v3241 = vpack.c.b16 %v3113, %v3113
      %v3242 = vpack.c.b16 %v3114, %v3114
      %v3243 = vpack.c.b16 %v3115, %v3115
      %v3244 = vpack.c.b16 %v3116, %v3116
      %v3245 = vpack.c.b16 %v3117, %v3117
      %v3246 = vpack.c.b16 %v3118, %v3118
      %v3247 = vpack.c.b16 %v3119, %v3119
      %v3248 = vpack.c.b16 %v3120, %v3120
      %v3249 = vpack.c.b16 %v3121, %v3121
      %v3250 = vpack.c.b16 %v3122, %v3122
      %v3251 = vpack.c.b16 %v3123, %v3123
      %v3252 = vpack.c.b16 %v3124, %v3124
      %v3253 = vpack.c.b16 %v3125, %v3125
      %v3254 = vpack.c.b16 %v3126, %v3126
      %v3255 = vpack.c.b16 %v3127, %v3127
      %v3256 = vpack.c.b16 %v3128, %v3128
      %v3257 = vpack.c.b16 %v3129, %v3129
      %v3258 = vpack.c.b16 %v3130, %v3130
      %v3259 = vpack.c.b16 %v3131, %v3131
      %v3260 = vpack.c.b16 %v3132, %v3132
      %v3261 = vpack.c.b16 %v3133, %v3133
      %v3262 = vpack.c.b16 %v3134, %v3134
      %v3263 = vpack.c.b16 %v3135, %v3135
      %v3264 = vpack.c.b16 %v3136, %v3136
      %v3265 = vpack.c.b16 %v3137, %v3137
      %v3266 = vpack.c.b16 %v3138, %v3138
      %v3267 = vpack.c.b16 %v3139, %v3139
      %v3268 = vpack.c.b16 %v3140, %v3140
      %v3269 = vpack.c.b16 %v3141, %v3141
      %v3270 = vpack.c.b16 %v3142, %v3142
      %v3271 = vpack.c.b16 %v3143, %v3143
      %v3272 = vpack.c.b16 %v3144, %v3144
      %v3273 = vpack.c.b16 %v3145, %v3145
      %v3274 = vpack.c.b16 %v3146, %v3146
      %v3275 = vpack.c.b16 %v3147, %v3147
      %v3276 = vpack.c.b16 %v3148, %v3148
      %v3277 = vpack.c.b16 %v3149, %v3149
      %v3278 = vpack.c.b16 %v3150, %v3150
      %v3279 = vpack.c.b16 %v3151, %v3151
      %v3280 = vpack.c.b16 %v3152, %v3152
      %v3281 = vpack.c.b16 %v3153, %v3153
      %v3282 = vpack.c.b16 %v3154, %v3154
      %v3283 = vpack.c.b16 %v3155, %v3155
      %v3284 = vpack.c.b16 %v3156, %v3156
      %v3285 = vpack.c.b16 %v3157, %v3157
      %v3286 = vpack.c.b16 %v3158, %v3158
      %v3287 = vpack.c.b16 %v3159, %v3159
      %v3288 = vpack.c.b16 %v3160, %v3160
      %v3289 = vpack.c.b16 %v3161, %v3161
      %v3290 = vpack.c.b16 %v3162, %v3162
      %v3291 = vunpack.c.l.b16 %v3163
      %v3292 = vunpack.c.l.b16 %v3164
      %v3293 = vunpack.c.l.b16 %v3165
      %v3294 = vunpack.c.l.b16 %v3166
      %v3295 = vunpack.c.l.b16 %v3167
      %v3296 = vunpack.c.l.b16 %v3168
      %v3297 = vunpack.c.l.b16 %v3169
      %v3298 = vunpack.c.l.b16 %v3170
      %v3299 = vunpack.c.l.b16 %v3171
      %v3300 = vunpack.c.l.b16 %v3172
      %v3301 = vunpack.c.l.b16 %v3173
      %v3302 = vunpack.c.l.b16 %v3174
      %v3303 = vunpack.c.l.b16 %v3175
      %v3304 = vunpack.c.l.b16 %v3176
      %v3305 = vunpack.c.l.b16 %v3177
      %v3306 = vunpack.c.l.b16 %v3178
      %v3307 = vunpack.c.l.b16 %v3179
      %v3308 = vunpack.c.l.b16 %v3180
      %v3309 = vunpack.c.l.b16 %v3181
      %v3310 = vunpack.c.l.b16 %v3182
      %v3311 = vunpack.c.l.b16 %v3183
      %v3312 = vunpack.c.l.b16 %v3184
      %v3313 = vunpack.c.l.b16 %v3185
      %v3314 = vunpack.c.l.b16 %v3186
      %v3315 = vunpack.c.l.b16 %v3187
      %v3316 = vunpack.c.l.b16 %v3188
      %v3317 = vunpack.c.l.b16 %v3189
      %v3318 = vunpack.c.l.b16 %v3190
      %v3319 = vunpack.c.l.b16 %v3191
      %v3320 = vunpack.c.l.b16 %v3192
      %v3321 = vunpack.c.l.b16 %v3193
      %v3322 = vunpack.c.l.b16 %v3194
      %v3323 = vunpack.c.l.b16 %v3195
      %v3324 = vunpack.c.l.b16 %v3196
      %v3325 = vunpack.c.l.b16 %v3197
      %v3326 = vunpack.c.l.b16 %v3198
      %v3327 = vunpack.c.l.b16 %v3199
      %v3328 = vunpack.c.l.b16 %v3200
      %v3329 = vunpack.c.l.b16 %v3201
      %v3330 = vunpack.c.l.b16 %v3202
      %v3331 = vunpack.c.l.b16 %v3203
      %v3332 = vunpack.c.l.b16 %v3204
      %v3333 = vunpack.c.l.b16 %v3205
      %v3334 = vunpack.c.l.b16 %v3206
      %v3335 = vunpack.c.l.b16 %v3207
      %v3336 = vunpack.c.l.b16 %v3208
      %v3337 = vunpack.c.l.b16 %v3209
      %v3338 = vunpack.c.l.b16 %v3210
      %v3339 = vunpack.c.l.b16 %v3211
      %v3340 = vunpack.c.l.b16 %v3212
      %v3341 = vunpack.c.l.b16 %v3213
      %v3342 = vunpack.c.l.b16 %v3214
      %v3343 = vunpack.c.l.b16 %v3215
      %v3344 = vunpack.c.l.b16 %v3216
      %v3345 = vunpack.c.l.b16 %v3217
      %v3346 = vunpack.c.l.b16 %v3218
      %v3347 = vunpack.c.l.b16 %v3219
      %v3348 = vunpack.c.l.b16 %v3220
      %v3349 = vunpack.c.l.b16 %v3221
      %v3350 = vunpack.c.l.b16 %v3222
      %v3351 = vunpack.c.l.b16 %v3223
      %v3352 = vunpack.c.l.b16 %v3224
      %v3353 = vunpack.c.l.b16 %v3225
      %v3354 = vunpack.c.l.b16 %v3226
      %v3355 = vunpack.c.l.b16 %v3227
      %v3356 = vunpack.c.l.b16 %v3228
      %v3357 = vunpack.c.l.b16 %v3229
      %v3358 = vunpack.c.l.b16 %v3230
      %v3359 = vunpack.c.l.b16 %v3231
      %v3360 = vunpack.c.l.b16 %v3232
      %v3361 = vunpack.c.l.b16 %v3233
      %v3362 = vunpack.c.l.b16 %v3234
      %v3363 = vunpack.c.l.b16 %v3235
      %v3364 = vunpack.c.l.b16 %v3236
      %v3365 = vunpack.c.l.b16 %v3237
      %v3366 = vunpack.c.l.b16 %v3238
      %v3367 = vunpack.c.l.b16 %v3239
      %v3368 = vunpack.c.l.b16 %v3240
      %v3369 = vunpack.c.l.b16 %v3241
      %v3370 = vunpack.c.l.b16 %v3242
      %v3371 = vunpack.c.l.b16 %v3243
      %v3372 = vunpack.c.l.b16 %v3244
      %v3373 = vunpack.c.l.b16 %v3245
      %v3374 = vunpack.c.l.b16 %v3246
      %v3375 = vunpack.c.l.b16 %v3247
      %v3376 = vunpack.c.l.b16 %v3248
      %v3377 = vunpack.c.l.b16 %v3249
      %v3378 = vunpack.c.l.b16 %v3250
      %v3379 = vunpack.c.l.b16 %v3251
      %v3380 = vunpack.c.l.b16 %v3252
      %v3381 = vunpack.c.l.b16 %v3253
      %v3382 = vunpack.c.l.b16 %v3254
      %v3383 = vunpack.c.l.b16 %v3255
      %v3384 = vunpack.c.l.b16 %v3256
      %v3385 = vunpack.c.l.b16 %v3257
      %v3386 = vunpack.c.l.b16 %v3258
      %v3387 = vunpack.c.l.b16 %v3259
      %v3388 = vunpack.c.l.b16 %v3260
      %v3389 = vunpack.c.l.b16 %v3261
      %v3390 = vunpack.c.l.b16 %v3262
      %v3391 = vunpack.c.l.b16 %v3263
      %v3392 = vunpack.c.l.b16 %v3264
      %v3393 = vunpack.c.l.b16 %v3265
      %v3394 = vunpack.c.l.b16 %v3266
      %v3395 = vunpack.c.l.b16 %v3267
      %v3396 = vunpack.c.l.b16 %v3268
      %v3397 = vunpack.c.l.b16 %v3269
      %v3398 = vunpack.c.l.b16 %v3270
      %v3399 = vunpack.c.l.b16 %v3271
      %v3400 = vunpack.c.l.b16 %v3272
      %v3401 = vunpack.c.l.b16 %v3273
      %v3402 = vunpack.c.l.b16 %v3274
      %v3403 = vunpack.c.l.b16 %v3275
      %v3404 = vunpack.c.l.b16 %v3276
      %v3405 = vunpack.c.l.b16 %v3277
      %v3406 = vunpack.c.l.b16 %v3278
      %v3407 = vunpack.c.l.b16 %v3279
      %v3408 = vunpack.c.l.b16 %v3280
      %v3409 = vunpack.c.l.b16 %v3281
      %v3410 = vunpack.c.l.b16 %v3282
      %v3411 = vunpack.c.l.b16 %v3283
      %v3412 = vunpack.c.l.b16 %v3284
      %v3413 = vunpack.c.l.b16 %v3285
      %v3414 = vunpack.c.l.b16 %v3286
      %v3415 = vunpack.c.l.b16 %v3287
      %v3416 = vunpack.c.l.b16 %v3288
      %v3417 = vunpack.c.l.b16 %v3289
      %v3418 = vunpack.c.l.b16 %v3290
      %vm3419 = vcmask 1041409
      %v3420 = vsel %vm3419, %v3292, %v3291
      %vm3421 = vcmask 1042434
      %v3422 = vsel %vm3421, %v3293, %v3420
      %vm3423 = vcmask 1043459
      %v3424 = vsel %vm3423, %v3294, %v3422
      %vm3425 = vcmask 1044484
      %v3426 = vsel %vm3425, %v3295, %v3424
      %vm3427 = vcmask 1045509
      %v3428 = vsel %vm3427, %v3296, %v3426
      %vm3429 = vcmask 1046534
      %v3430 = vsel %vm3429, %v3297, %v3428
      %vm3431 = vcmask 1047559
      %v3432 = vsel %vm3431, %v3298, %v3430
      %v3433 = vsel %vm3419, %v3300, %v3299
      %v3434 = vsel %vm3421, %v3301, %v3433
      %v3435 = vsel %vm3423, %v3302, %v3434
      %v3436 = vsel %vm3425, %v3303, %v3435
      %v3437 = vsel %vm3427, %v3304, %v3436
      %v3438 = vsel %vm3429, %v3305, %v3437
      %v3439 = vsel %vm3431, %v3306, %v3438
      %v3440 = vsel %vm3419, %v3308, %v3307
      %v3441 = vsel %vm3421, %v3309, %v3440
      %v3442 = vsel %vm3423, %v3310, %v3441
      %v3443 = vsel %vm3425, %v3311, %v3442
      %v3444 = vsel %vm3427, %v3312, %v3443
      %v3445 = vsel %vm3429, %v3313, %v3444
      %v3446 = vsel %vm3431, %v3314, %v3445
      %v3447 = vsel %vm3419, %v3316, %v3315
      %v3448 = vsel %vm3421, %v3317, %v3447
      %v3449 = vsel %vm3423, %v3318, %v3448
      %v3450 = vsel %vm3425, %v3319, %v3449
      %v3451 = vsel %vm3427, %v3320, %v3450
      %v3452 = vsel %vm3429, %v3321, %v3451
      %v3453 = vsel %vm3431, %v3322, %v3452
      %v3454 = vsel %vm3419, %v3324, %v3323
      %v3455 = vsel %vm3421, %v3325, %v3454
      %v3456 = vsel %vm3423, %v3326, %v3455
      %v3457 = vsel %vm3425, %v3327, %v3456
      %v3458 = vsel %vm3427, %v3328, %v3457
      %v3459 = vsel %vm3429, %v3329, %v3458
      %v3460 = vsel %vm3431, %v3330, %v3459
      %v3461 = vsel %vm3419, %v3332, %v3331
      %v3462 = vsel %vm3421, %v3333, %v3461
      %v3463 = vsel %vm3423, %v3334, %v3462
      %v3464 = vsel %vm3425, %v3335, %v3463
      %v3465 = vsel %vm3427, %v3336, %v3464
      %v3466 = vsel %vm3429, %v3337, %v3465
      %v3467 = vsel %vm3431, %v3338, %v3466
      %v3468 = vsel %vm3419, %v3340, %v3339
      %v3469 = vsel %vm3421, %v3341, %v3468
      %v3470 = vsel %vm3423, %v3342, %v3469
      %v3471 = vsel %vm3425, %v3343, %v3470
      %v3472 = vsel %vm3427, %v3344, %v3471
      %v3473 = vsel %vm3429, %v3345, %v3472
      %v3474 = vsel %vm3431, %v3346, %v3473
      %v3475 = vsel %vm3419, %v3348, %v3347
      %v3476 = vsel %vm3421, %v3349, %v3475
      %v3477 = vsel %vm3423, %v3350, %v3476
      %v3478 = vsel %vm3425, %v3351, %v3477
      %v3479 = vsel %vm3427, %v3352, %v3478
      %v3480 = vsel %vm3429, %v3353, %v3479
      %v3481 = vsel %vm3431, %v3354, %v3480
      %v3482 = vsel %vm3419, %v3356, %v3355
      %v3483 = vsel %vm3421, %v3357, %v3482
      %v3484 = vsel %vm3423, %v3358, %v3483
      %v3485 = vsel %vm3425, %v3359, %v3484
      %v3486 = vsel %vm3427, %v3360, %v3485
      %v3487 = vsel %vm3429, %v3361, %v3486
      %v3488 = vsel %vm3431, %v3362, %v3487
      %v3489 = vsel %vm3419, %v3364, %v3363
      %v3490 = vsel %vm3421, %v3365, %v3489
      %v3491 = vsel %vm3423, %v3366, %v3490
      %v3492 = vsel %vm3425, %v3367, %v3491
      %v3493 = vsel %vm3427, %v3368, %v3492
      %v3494 = vsel %vm3429, %v3369, %v3493
      %v3495 = vsel %vm3431, %v3370, %v3494
      %v3496 = vsel %vm3419, %v3372, %v3371
      %v3497 = vsel %vm3421, %v3373, %v3496
      %v3498 = vsel %vm3423, %v3374, %v3497
      %v3499 = vsel %vm3425, %v3375, %v3498
      %v3500 = vsel %vm3427, %v3376, %v3499
      %v3501 = vsel %vm3429, %v3377, %v3500
      %v3502 = vsel %vm3431, %v3378, %v3501
      %v3503 = vsel %vm3419, %v3380, %v3379
      %v3504 = vsel %vm3421, %v3381, %v3503
      %v3505 = vsel %vm3423, %v3382, %v3504
      %v3506 = vsel %vm3425, %v3383, %v3505
      %v3507 = vsel %vm3427, %v3384, %v3506
      %v3508 = vsel %vm3429, %v3385, %v3507
      %v3509 = vsel %vm3431, %v3386, %v3508
      %v3510 = vsel %vm3419, %v3388, %v3387
      %v3511 = vsel %vm3421, %v3389, %v3510
      %v3512 = vsel %vm3423, %v3390, %v3511
      %v3513 = vsel %vm3425, %v3391, %v3512
      %v3514 = vsel %vm3427, %v3392, %v3513
      %v3515 = vsel %vm3429, %v3393, %v3514
      %v3516 = vsel %vm3431, %v3394, %v3515
      %v3517 = vsel %vm3419, %v3396, %v3395
      %v3518 = vsel %vm3421, %v3397, %v3517
      %v3519 = vsel %vm3423, %v3398, %v3518
      %v3520 = vsel %vm3425, %v3399, %v3519
      %v3521 = vsel %vm3427, %v3400, %v3520
      %v3522 = vsel %vm3429, %v3401, %v3521
      %v3523 = vsel %vm3431, %v3402, %v3522
      %v3524 = vsel %vm3419, %v3404, %v3403
      %v3525 = vsel %vm3421, %v3405, %v3524
      %v3526 = vsel %vm3423, %v3406, %v3525
      %v3527 = vsel %vm3425, %v3407, %v3526
      %v3528 = vsel %vm3427, %v3408, %v3527
      %v3529 = vsel %vm3429, %v3409, %v3528
      %v3530 = vsel %vm3431, %v3410, %v3529
      %v3531 = vsel %vm3419, %v3412, %v3411
      %v3532 = vsel %vm3421, %v3413, %v3531
      %v3533 = vsel %vm3423, %v3414, %v3532
      %v3534 = vsel %vm3425, %v3415, %v3533
      %v3535 = vsel %vm3427, %v3416, %v3534
      %v3536 = vsel %vm3429, %v3417, %v3535
      %v3537 = vsel %vm3431, %v3418, %v3536
      %v3538 = vpack.c.b16 %v3432, %v3432
      %v3539 = vpack.c.b16 %v3439, %v3439
      %v3540 = vpack.c.b16 %v3446, %v3446
      %v3541 = vpack.c.b16 %v3453, %v3453
      %v3542 = vpack.c.b16 %v3460, %v3460
      %v3543 = vpack.c.b16 %v3467, %v3467
      %v3544 = vpack.c.b16 %v3474, %v3474
      %v3545 = vpack.c.b16 %v3481, %v3481
      %v3546 = vpack.c.b16 %v3488, %v3488
      %v3547 = vpack.c.b16 %v3495, %v3495
      %v3548 = vpack.c.b16 %v3502, %v3502
      %v3549 = vpack.c.b16 %v3509, %v3509
      %v3550 = vpack.c.b16 %v3516, %v3516
      %v3551 = vpack.c.b16 %v3523, %v3523
      %v3552 = vpack.c.b16 %v3530, %v3530
      %v3553 = vpack.c.b16 %v3537, %v3537
      %vm3570 = vcmask 125952
      %3571 = vst.msk [vmem:[%s240] sm:$0xf] %vm3570, %v3538
      %3572 = vst.msk [vmem:[%s240 + $0x4] sm:$0xf] %vm3570, %v3539
      %3573 = vst.msk [vmem:[%s240 + $0x8] sm:$0xf] %vm3570, %v3540
      %3574 = vst.msk [vmem:[%s240 + $0xc] sm:$0xf] %vm3570, %v3541
      %3575 = vst.msk [vmem:[%s240 + $0x10] sm:$0xf] %vm3570, %v3542
      %3576 = vst.msk [vmem:[%s240 + $0x14] sm:$0xf] %vm3570, %v3543
      %3577 = vst.msk [vmem:[%s240 + $0x18] sm:$0xf] %vm3570, %v3544
      %3578 = vst.msk [vmem:[%s240 + $0x1c] sm:$0xf] %vm3570, %v3545
      %3579 = vst.msk [vmem:[%s240 + $0x20] sm:$0xf] %vm3570, %v3546
      %3580 = vst.msk [vmem:[%s240 + $0x24] sm:$0xf] %vm3570, %v3547
      %3581 = vst.msk [vmem:[%s240 + $0x28] sm:$0xf] %vm3570, %v3548
      %3582 = vst.msk [vmem:[%s240 + $0x2c] sm:$0xf] %vm3570, %v3549
      %3583 = vst.msk [vmem:[%s240 + $0x30] sm:$0xf] %vm3570, %v3550
      %3584 = vst.msk [vmem:[%s240 + $0x34] sm:$0xf] %vm3570, %v3551
      %3585 = vst.msk [vmem:[%s240 + $0x38] sm:$0xf] %vm3570, %v3552
      %3586 = vst.msk [vmem:[%s240 + $0x3c] sm:$0xf] %vm3570, %v3553
      %s3587 = smul.u32 8, %s20
      %p3588 = scmp.lt.s32.totalorder %s19, 1
      %s3589 = scalar_select %p3588, %s19, 1
      %p3590 = scmp.lt.s32.totalorder %s3587, 15
      %s3591 = scalar_select %p3590, %s3587, 15
      %s3592 = smul.addr %s3591, 2
      %s3593 = smul.addr %s3589, 32
      %s3594 = sadd.s32 %s3592, %s3593
      %s3595 = smul.addr %s3594, 4
      %s3596 = scalar_lea.vmem %s4, %s3595
      // Predicated region
      $region37: #{cnn_forward.3} parent=35 // pred_check
        %p3597 = pneg %p138
      $region38: #{cnn_forward.3} parent=35 // pred_check_branch
        %3599 = sbr.rel (%p3597) target = $region40
      $region39: #{cnn_forward.3} parent=35 // pred_region
        %s3600 = smul.u32 8, %s20
      $region40: #{cnn_forward.3} parent=35 // pred_fallthru
        _
    $region36: #{cnn_forward.3} parent=5 // pred_fallthru
      _
    %p3601 = scmp.le.s32.totalorder 2, %s10
    // Predicated region
    $region41: #{cnn_forward.3} parent=5 // pred_check
      %p3602 = pneg %p3601
    $region42: #{cnn_forward.3} parent=5 // pred_check_branch
      %3604 = sbr.rel (%p3602) target = $region44
    $region43: #{cnn_forward.3} parent=5 // pred_region
      %s3605 = ssub.s32 %s10, 2
      // Predicated region
      $region45: #{cnn_forward.3} parent=43 // pred_check
        %p3606 = pneg %p144
      $region46: #{cnn_forward.3} parent=43 // pred_check_branch
        %3608 = sbr.rel (%p3606) target = $region48
      $region47: #{cnn_forward.3} parent=43 // pred_region
        %s3609 = smul.u32 8, %s22
        %p3610 = scmp.lt.s32.totalorder %s21, 1
        %s3611 = scalar_select %p3610, %s21, 1
        %p3612 = scmp.lt.s32.totalorder %s3609, 15
        %s3613 = scalar_select %p3612, %s3609, 15
        %s3614 = smul.addr %s3613, 2
        %s3615 = smul.addr %s3611, 32
        %s3616 = sadd.s32 %s3614, %s3615
        %s3617 = smul.addr %s3616, 4
        %s3618 = scalar_lea.vmem %s4, %s3617
      $region48: #{cnn_forward.3} parent=43 // pred_fallthru
        _
    $region44: #{cnn_forward.3} parent=5 // pred_fallthru
      _
  $region6: #{cnn_forward.3} parent=0 // loop_footer
    %s14 = sadd.s32 1, %s10
  $region7: #{cnn_forward.3} parent=0 // loop_footer_branch
    %9 = sbr.rel target = $region3
  $region8: #{cnn_forward.3} parent=0 // loop_exit
    _

// kernel: cnn_forward.4
$region0: #{cnn_forward.4}
  #allocation0 [shape = 'u32[]', space=smem, size = 0x4, offset = 0x4, fixed_abs, tag = 'smem constant byte address 0x4 - core index']
  #allocation1 [shape = 'u32[144,128]{1,0:T(1,128)}', space=vmem, size = 0x12000, scoped, tag = 'internal scratch']
  %s0 = inlined_call_operand.vmem [shape: bf16[2,16,16,144], index: 0, kind: input, shape index: {}]
  %s1 = inlined_call_operand.vmem [shape: bf16[144,32], index: 1, kind: input, shape index: {}]
  %s2 = inlined_call_operand.vmem [shape: f32[1,32], index: 2, kind: input, shape index: {}]
  %s3 = inlined_call_operand.vmem [shape: f32[1,32], index: 3, kind: input, shape index: {}]
  %s4 = inlined_call_operand.vmem [shape: bf16[2,8,8,32], index: 4, kind: output, shape index: {}]
  %s5 = sld [smem:[#allocation0]]
  $region49: #{cnn_forward.4} parent=0
    _
  %s7 = ssub.s32 1, %s5
  %s8 = scalar_select 0, %s7, %s5
  loop: start=0, step=1, limit=4
  $region2: #{cnn_forward.4} parent=0 // loop_pre_header
    _
  $region3: #{cnn_forward.4} parent=0 // loop_header
    %s10 = sphi 0, %s14
    %p11 = scmp.ge.s32.totalorder %s10, 4
    %s17 = sphi 0, %s29
    %s18 = sphi 0, %s25
    %s19 = sphi 0, %s17
    %s20 = sphi 0, %s18
    %s21 = sphi 0, %s19
    %s22 = sphi 0, %s20
    %s34 = sphi 0, %s36
    %s37 = sphi 0, %s34
    %s38 = sphi 0, %s37
    %s54 = sphi 0, %s38
    %s58 = sphi 0, %s58
    %s60 = sphi 0, %s58
    %s61 = sphi 0, %s60
    %s75 = sphi 0, %s61
    %s79 = sphi 0, %s79
    %s81 = sphi 0, %s79
    %s82 = sphi 0, %s81
    %s96 = sphi 0, %s82
    %s100 = sphi 0, %s100
    %s102 = sphi 0, %s100
    %s103 = sphi 0, %s102
    %s117 = sphi 0, %s103
    %s125 = sphi 0, %s127
    %s128 = sphi 0, %s125
    %s129 = sphi 0, %s128
    %s145 = sphi 0, %s129
  $region4: #{cnn_forward.4} parent=0 // loop_header_branch
    %13 = sbr.rel (%p11) target = $region8
  $region5: #{cnn_forward.4} parent=0 // loop_body
    %s15 = ssub.s32 %s10, 1
    %s16 = ssub.s32 %s10, 2
    %s23 = sadd.s32 1, %s18
    %p24 = scmp.ge.s32.totalorder %s23, 1
    %s25 = scalar_select %p24, 0, %s23
    %s26 = sadd.s32 1, %s17
    %s27 = scalar_select %p24, %s26, %s17
    %p28 = scmp.ge.s32.totalorder %s27, 2
    %s29 = scalar_select %p28, 0, %s27
    %s30 = ssub.s32 %s17, %s29
    %s31 = ssub.s32 %s18, %s25
    %s32 = sor.u32 %s30, %s31
    %p33 = scmp.eq.s32.totalorder %s32, 0
    %s35 = sadd.s32 %s34, 1
    %s36 = scalar_select %p33, %s34, %s35
    %p39 = pneg %p33
    %p40 = scmp.eq.s32.totalorder %s10, 1
    %p41 = por %p39, %p40
    %p42 = scmp.ne.s32.totalorder %s34, %s37
    %p43 = scmp.eq.s32.totalorder %s10, 0
    %p44 = por %p42, %p43
    %p45 = scmp.ne.s32.totalorder %s34, %s37
    %p46 = scmp.eq.s32.totalorder %s15, 1
    %p47 = por %p45, %p46
    %p48 = scmp.ne.s32.totalorder %s37, %s38
    %p49 = scmp.eq.s32.totalorder %s15, 0
    %p50 = por %p48, %p49
    %p51 = scmp.ne.s32.totalorder %s37, %s38
    %p52 = scmp.eq.s32.totalorder %s16, 1
    %p53 = por %p51, %p52
    %p55 = scmp.ne.s32.totalorder %s38, %s54
    %p56 = scmp.eq.s32.totalorder %s16, 0
    %p57 = por %p55, %p56
    %s59 = sadd.s32 %s58, 1
    %p62 = scmp.eq.s32.totalorder %s10, 1
    %p63 = scmp.ne.s32.totalorder %s58, %s60
    %p64 = scmp.eq.s32.totalorder %s10, 0
    %p65 = por %p63, %p64
    %p66 = scmp.ne.s32.totalorder %s58, %s60
    %p67 = scmp.eq.s32.totalorder %s15, 1
    %p68 = por %p66, %p67
    %p69 = scmp.ne.s32.totalorder %s60, %s61
    %p70 = scmp.eq.s32.totalorder %s15, 0
    %p71 = por %p69, %p70
    %p72 = scmp.ne.s32.totalorder %s60, %s61
    %p73 = scmp.eq.s32.totalorder %s16, 1
    %p74 = por %p72, %p73
    %p76 = scmp.ne.s32.totalorder %s61, %s75
    %p77 = scmp.eq.s32.totalorder %s16, 0
    %p78 = por %p76, %p77
    %s80 = sadd.s32 %s79, 1
    %p83 = scmp.eq.s32.totalorder %s10, 1
    %p84 = scmp.ne.s32.totalorder %s79, %s81
    %p85 = scmp.eq.s32.totalorder %s10, 0
    %p86 = por %p84, %p85
    %p87 = scmp.ne.s32.totalorder %s79, %s81
    %p88 = scmp.eq.s32.totalorder %s15, 1
    %p89 = por %p87, %p88
    %p90 = scmp.ne.s32.totalorder %s81, %s82
    %p91 = scmp.eq.s32.totalorder %s15, 0
    %p92 = por %p90, %p91
    %p93 = scmp.ne.s32.totalorder %s81, %s82
    %p94 = scmp.eq.s32.totalorder %s16, 1
    %p95 = por %p93, %p94
    %p97 = scmp.ne.s32.totalorder %s82, %s96
    %p98 = scmp.eq.s32.totalorder %s16, 0
    %p99 = por %p97, %p98
    %s101 = sadd.s32 %s100, 1
    %p104 = scmp.eq.s32.totalorder %s10, 1
    %p105 = scmp.ne.s32.totalorder %s100, %s102
    %p106 = scmp.eq.s32.totalorder %s10, 0
    %p107 = por %p105, %p106
    %p108 = scmp.ne.s32.totalorder %s100, %s102
    %p109 = scmp.eq.s32.totalorder %s15, 1
    %p110 = por %p108, %p109
    %p111 = scmp.ne.s32.totalorder %s102, %s103
    %p112 = scmp.eq.s32.totalorder %s15, 0
    %p113 = por %p111, %p112
    %p114 = scmp.ne.s32.totalorder %s102, %s103
    %p115 = scmp.eq.s32.totalorder %s16, 1
    %p116 = por %p114, %p115
    %p118 = scmp.ne.s32.totalorder %s103, %s117
    %p119 = scmp.eq.s32.totalorder %s16, 0
    %p120 = por %p118, %p119
    %s121 = ssub.s32 %s17, %s29
    %s122 = ssub.s32 %s18, %s25
    %s123 = sor.u32 %s121, %s122
    %p124 = scmp.eq.s32.totalorder %s123, 0
    %s126 = sadd.s32 %s125, 1
    %s127 = scalar_select %p124, %s125, %s126
    %p130 = pneg %p124
    %p131 = scmp.eq.s32.totalorder %s10, 1
    %p132 = por %p130, %p131
    %p133 = scmp.ne.s32.totalorder %s125, %s128
    %p134 = scmp.eq.s32.totalorder %s10, 0
    %p135 = por %p133, %p134
    %p136 = scmp.ne.s32.totalorder %s125, %s128
    %p137 = scmp.eq.s32.totalorder %s15, 1
    %p138 = por %p136, %p137
    %p139 = scmp.ne.s32.totalorder %s128, %s129
    %p140 = scmp.eq.s32.totalorder %s15, 0
    %p141 = por %p139, %p140
    %p142 = scmp.ne.s32.totalorder %s128, %s129
    %p143 = scmp.eq.s32.totalorder %s16, 1
    %p144 = por %p142, %p143
    %p146 = scmp.ne.s32.totalorder %s129, %s145
    %p147 = scmp.eq.s32.totalorder %s16, 0
    %p148 = por %p146, %p147
    %p149 = scmp.le.s32.totalorder 1, %s10
    %p150 = scmp.lt.s32.totalorder %s10, 3
    %p151 = pnand %p149, %p150
    %p152 = pneg %p151
    // Predicated region
    $region9: #{cnn_forward.4} parent=5 // pred_check
      _
    $region10: #{cnn_forward.4} parent=5 // pred_check_branch
      %154 = sbr.rel (%p151) target = $region12
    $region11: #{cnn_forward.4} parent=5 // pred_region
      %s155 = ssub.s32 %s10, 1
      // Predicated region
      $region13: #{cnn_forward.4} parent=11 // pred_check
        %p156 = pneg %p71
      $region14: #{cnn_forward.4} parent=11 // pred_check_branch
        %158 = sbr.rel (%p156) target = $region16
      $region15: #{cnn_forward.4} parent=11 // pred_region
        _
      $region16: #{cnn_forward.4} parent=11 // pred_fallthru
        _
      // Predicated region
      $region17: #{cnn_forward.4} parent=11 // pred_check
        %p159 = pneg %p92
      $region18: #{cnn_forward.4} parent=11 // pred_check_branch
        %161 = sbr.rel (%p159) target = $region20
      $region19: #{cnn_forward.4} parent=11 // pred_region
        _
      $region20: #{cnn_forward.4} parent=11 // pred_fallthru
        _
      // Predicated region
      $region21: #{cnn_forward.4} parent=11 // pred_check
        %p162 = pneg %p113
      $region22: #{cnn_forward.4} parent=11 // pred_check_branch
        %164 = sbr.rel (%p162) target = $region24
      $region23: #{cnn_forward.4} parent=11 // pred_region
        _
      $region24: #{cnn_forward.4} parent=11 // pred_fallthru
        _
    $region12: #{cnn_forward.4} parent=5 // pred_fallthru
      _
    %p165 = scmp.lt.s32.totalorder %s10, 2
    // Predicated region
    $region25: #{cnn_forward.4} parent=5 // pred_check
      %p166 = pneg %p165
    $region26: #{cnn_forward.4} parent=5 // pred_check_branch
      %168 = sbr.rel (%p166) target = $region28
    $region27: #{cnn_forward.4} parent=5 // pred_region
      // Predicated region
      $region29: #{cnn_forward.4} parent=27 // pred_check
        %p169 = pneg %p44
      $region30: #{cnn_forward.4} parent=27 // pred_check_branch
        %171 = sbr.rel (%p169) target = $region32
      $region31: #{cnn_forward.4} parent=27 // pred_region
        %s172 = smul.u32 16, %s18
        %p173 = scmp.lt.s32.totalorder %s17, 1
        %s174 = scalar_select %p173, %s17, 1
        %p175 = scmp.lt.s32.totalorder %s172, 15
        %s176 = scalar_select %p175, %s172, 15
        %s177 = smul.addr %s176, 4
        %s178 = smul.addr %s174, 64
        %s179 = sadd.s32 %s177, %s178
        %s180 = smul.addr %s179, 4
        %s181 = scalar_lea.vmem %s0, %s180
        %s182 = smul.u32 16, %s18
      $region32: #{cnn_forward.4} parent=27 // pred_fallthru
        _
    $region28: #{cnn_forward.4} parent=5 // pred_fallthru
      _
    %p183 = scmp.le.s32.totalorder 1, %s10
    %p184 = scmp.lt.s32.totalorder %s10, 3
    %p185 = pnand %p183, %p184
    %p186 = pneg %p185
    // Predicated region
    $region33: #{cnn_forward.4} parent=5 // pred_check
      _
    $region34: #{cnn_forward.4} parent=5 // pred_check_branch
      %188 = sbr.rel (%p185) target = $region36
    $region35: #{cnn_forward.4} parent=5 // pred_region
      %s189 = ssub.s32 %s10, 1
      %s190 = smul.u32 16, %s20
      %p191 = scmp.lt.s32.totalorder %s19, 1
      %s192 = scalar_select %p191, %s19, 1
      %p193 = scmp.lt.s32.totalorder %s190, 15
      %s194 = scalar_select %p193, %s190, 15
      %s195 = smul.addr %s194, 4
      %s196 = smul.addr %s192, 64
      %s197 = sadd.s32 %s195, %s196
      %s198 = smul.addr %s197, 4
      %s199 = scalar_lea.vmem %s0, %s198
      %p200 = pneg %p50
      %p201 = pneg %p47
      %p202 = pneg %p71
      %p203 = pneg %p68
      %p204 = pneg %p92
      %p205 = pneg %p89
      %p206 = pneg %p113
      %p207 = pneg %p110
      %p208 = pneg %p141
      %p209 = pneg %p138
      %s210 = smul.u32 8, %s20
      %p211 = scmp.lt.s32.totalorder %s19, 1
      %s212 = scalar_select %p211, %s19, 1
      %p213 = scmp.lt.s32.totalorder %s210, 7
      %s214 = scalar_select %p213, %s210, 7
      %s215 = smul.addr %s212, 8
      %s216 = sadd.s32 %s214, %s215
      %s217 = smul.addr %s216, 4
      %s218 = scalar_lea.vmem %s4, %s217
      %s219 = smul.u32 16, %s20
      %p220 = scmp.lt.s32.totalorder %s19, 1
      %s221 = scalar_select %p220, %s19, 1
      %p222 = scmp.lt.s32.totalorder %s219, 15
      %s223 = scalar_select %p222, %s219, 15
      %s224 = smul.addr %s223, 4
      %s225 = smul.addr %s221, 64
      %s226 = sadd.s32 %s224, %s225
      %s227 = smul.addr %s226, 4
      %s228 = scalar_lea.vmem %s0, %s227
      %s229 = smul.u32 16, %s20
      %s230 = smul.u32 8, %s20
      %p231 = scmp.lt.s32.totalorder %s19, 1
      %s232 = scalar_select %p231, %s19, 1
      %p233 = scmp.lt.s32.totalorder %s230, 7
      %s234 = scalar_select %p233, %s230, 7
      %s235 = smul.addr %s232, 8
      %s236 = sadd.s32 %s234, %s235
      %s237 = smul.addr %s236, 4
      %s238 = scalar_lea.vmem %s4, %s237
      %s239 = smul.u32 8, %s20
      %v241 = vld [vmem:[%s228] sm:$0xff]
      %v242 = vld [vmem:[%s228 + $0x8] sm:$0xff]
      %v243 = vld [vmem:[%s228 + $0x10] sm:$0xff]
      %v244 = vld [vmem:[%s228 + $0x18] sm:$0xff]
      %v245 = vld [vmem:[%s228 + $0x20] sm:$0xff]
      %v246 = vld [vmem:[%s228 + $0x28] sm:$0xff]
      %v247 = vld [vmem:[%s228 + $0x30] sm:$0xff]
      %v248 = vld [vmem:[%s228 + $0x38] sm:$0xff]
      %v249 = vld [vmem:[%s228 + $0x40] sm:$0xff]
      %v250 = vld [vmem:[%s228 + $0x48] sm:$0xff]
      %v251 = vld [vmem:[%s228 + $0x50] sm:$0xff]
      %v252 = vld [vmem:[%s228 + $0x58] sm:$0xff]
      %v253 = vld [vmem:[%s228 + $0x60] sm:$0xff]
      %v254 = vld [vmem:[%s228 + $0x68] sm:$0xff]
      %v255 = vld [vmem:[%s228 + $0x70] sm:$0xff]
      %v256 = vld [vmem:[%s228 + $0x78] sm:$0xff]
      %v257 = vld [vmem:[%s228 + $0x80] sm:$0xff]
      %v258 = vld [vmem:[%s228 + $0x88] sm:$0xff]
      %v259 = vld [vmem:[%s228 + $0x90] sm:$0xff]
      %v260 = vld [vmem:[%s228 + $0x98] sm:$0xff]
      %v261 = vld [vmem:[%s228 + $0xa0] sm:$0xff]
      %v262 = vld [vmem:[%s228 + $0xa8] sm:$0xff]
      %v263 = vld [vmem:[%s228 + $0xb0] sm:$0xff]
      %v264 = vld [vmem:[%s228 + $0xb8] sm:$0xff]
      %v265 = vld [vmem:[%s228 + $0xc0] sm:$0xff]
      %v266 = vld [vmem:[%s228 + $0xc8] sm:$0xff]
      %v267 = vld [vmem:[%s228 + $0xd0] sm:$0xff]
      %v268 = vld [vmem:[%s228 + $0xd8] sm:$0xff]
      %v269 = vld [vmem:[%s228 + $0xe0] sm:$0xff]
      %v270 = vld [vmem:[%s228 + $0xe8] sm:$0xff]
      %v271 = vld [vmem:[%s228 + $0xf0] sm:$0xff]
      %v272 = vld [vmem:[%s228 + $0xf8] sm:$0xff]
      %v273 = vld [vmem:[%s1] sm:$0xf]
      %v274 = vld [vmem:[%s1 + $0x4] sm:$0xf]
      %v275 = vld [vmem:[%s1 + $0x8] sm:$0xf]
      %v276 = vld [vmem:[%s1 + $0xc] sm:$0xf]
      %v277 = vld [vmem:[%s1 + $0x10] sm:$0xf]
      %v278 = vld [vmem:[%s1 + $0x14] sm:$0xf]
      %v279 = vld [vmem:[%s1 + $0x18] sm:$0xf]
      %v280 = vld [vmem:[%s1 + $0x1c] sm:$0xf]
      %v281 = vld [vmem:[%s1 + $0x20] sm:$0xf]
      %v282 = vld [vmem:[%s1 + $0x24] sm:$0xf]
      %v283 = vld [vmem:[%s1 + $0x28] sm:$0xf]
      %v284 = vld [vmem:[%s1 + $0x2c] sm:$0xf]
      %v285 = vld [vmem:[%s1 + $0x30] sm:$0xf]
      %v286 = vld [vmem:[%s1 + $0x34] sm:$0xf]
      %v287 = vld [vmem:[%s1 + $0x38] sm:$0xf]
      %v288 = vld [vmem:[%s1 + $0x3c] sm:$0xf]
      %v289 = vld [vmem:[%s1 + $0x40] sm:$0xf]
      %v290 = vld [vmem:[%s1 + $0x44] sm:$0xf]
      %v323 = vunpack.c.l.b16 %v241
      %v324 = vunpack.c.h.b16 %v241
      %v325 = vunpack.c.l.b16 %v242
      %v326 = vunpack.c.h.b16 %v242
      %v327 = vunpack.c.l.b16 %v243
      %v328 = vunpack.c.h.b16 %v243
      %v329 = vunpack.c.l.b16 %v244
      %v330 = vunpack.c.h.b16 %v244
      %v331 = vunpack.c.l.b16 %v245
      %v332 = vunpack.c.h.b16 %v245
      %v333 = vunpack.c.l.b16 %v246
      %v334 = vunpack.c.h.b16 %v246
      %v335 = vunpack.c.l.b16 %v247
      %v336 = vunpack.c.h.b16 %v247
      %v337 = vunpack.c.l.b16 %v248
      %v338 = vunpack.c.h.b16 %v248
      %v339 = vunpack.c.l.b16 %v249
      %v340 = vunpack.c.h.b16 %v249
      %v341 = vunpack.c.l.b16 %v250
      %v342 = vunpack.c.h.b16 %v250
      %v343 = vunpack.c.l.b16 %v251
      %v344 = vunpack.c.h.b16 %v251
      %v345 = vunpack.c.l.b16 %v252
      %v346 = vunpack.c.h.b16 %v252
      %v347 = vunpack.c.l.b16 %v253
      %v348 = vunpack.c.h.b16 %v253
      %v349 = vunpack.c.l.b16 %v254
      %v350 = vunpack.c.h.b16 %v254
      %v351 = vunpack.c.l.b16 %v255
      %v352 = vunpack.c.h.b16 %v255
      %v353 = vunpack.c.l.b16 %v256
      %v354 = vunpack.c.h.b16 %v256
      %v355 = vunpack.c.l.b16 %v257
      %v356 = vunpack.c.h.b16 %v257
      %v357 = vunpack.c.l.b16 %v258
      %v358 = vunpack.c.h.b16 %v258
      %v359 = vunpack.c.l.b16 %v259
      %v360 = vunpack.c.h.b16 %v259
      %v361 = vunpack.c.l.b16 %v260
      %v362 = vunpack.c.h.b16 %v260
      %v363 = vunpack.c.l.b16 %v261
      %v364 = vunpack.c.h.b16 %v261
      %v365 = vunpack.c.l.b16 %v262
      %v366 = vunpack.c.h.b16 %v262
      %v367 = vunpack.c.l.b16 %v263
      %v368 = vunpack.c.h.b16 %v263
      %v369 = vunpack.c.l.b16 %v264
      %v370 = vunpack.c.h.b16 %v264
      %v371 = vunpack.c.l.b16 %v265
      %v372 = vunpack.c.h.b16 %v265
      %v373 = vunpack.c.l.b16 %v266
      %v374 = vunpack.c.h.b16 %v266
      %v375 = vunpack.c.l.b16 %v267
      %v376 = vunpack.c.h.b16 %v267
      %v377 = vunpack.c.l.b16 %v268
      %v378 = vunpack.c.h.b16 %v268
      %v379 = vunpack.c.l.b16 %v269
      %v380 = vunpack.c.h.b16 %v269
      %v381 = vunpack.c.l.b16 %v270
      %v382 = vunpack.c.h.b16 %v270
      %v383 = vunpack.c.l.b16 %v271
      %v384 = vunpack.c.h.b16 %v271
      %v385 = vunpack.c.l.b16 %v272
      %v386 = vunpack.c.h.b16 %v272
      %v387 = vpack.c.b16 %v325, %v323
      %v388 = vpack.c.b16 %v326, %v324
      %v389 = vpack.c.b16 %v329, %v327
      %v390 = vpack.c.b16 %v330, %v328
      %v391 = vpack.c.b16 %v333, %v331
      %v392 = vpack.c.b16 %v334, %v332
      %v393 = vpack.c.b16 %v337, %v335
      %v394 = vpack.c.b16 %v338, %v336
      %v395 = vpack.c.b16 %v341, %v339
      %v396 = vpack.c.b16 %v342, %v340
      %v397 = vpack.c.b16 %v345, %v343
      %v398 = vpack.c.b16 %v346, %v344
      %v399 = vpack.c.b16 %v349, %v347
      %v400 = vpack.c.b16 %v350, %v348
      %v401 = vpack.c.b16 %v353, %v351
      %v402 = vpack.c.b16 %v354, %v352
      %v403 = vpack.c.b16 %v357, %v355
      %v404 = vpack.c.b16 %v358, %v356
      %v405 = vpack.c.b16 %v361, %v359
      %v406 = vpack.c.b16 %v362, %v360
      %v407 = vpack.c.b16 %v365, %v363
      %v408 = vpack.c.b16 %v366, %v364
      %v409 = vpack.c.b16 %v369, %v367
      %v410 = vpack.c.b16 %v370, %v368
      %v411 = vpack.c.b16 %v373, %v371
      %v412 = vpack.c.b16 %v374, %v372
      %v413 = vpack.c.b16 %v377, %v375
      %v414 = vpack.c.b16 %v378, %v376
      %v415 = vpack.c.b16 %v381, %v379
      %v416 = vpack.c.b16 %v382, %v380
      %v417 = vpack.c.b16 %v385, %v383
      %v418 = vpack.c.b16 %v386, %v384
      %v453 = vunpack.c.l.b16 %v273
      %v454 = vunpack.c.l.b16 %v274
      %v455 = vunpack.c.l.b16 %v275
      %v456 = vunpack.c.l.b16 %v276
      %v457 = vunpack.c.l.b16 %v277
      %v458 = vunpack.c.l.b16 %v278
      %v459 = vunpack.c.l.b16 %v279
      %v460 = vunpack.c.l.b16 %v280
      %v461 = vunpack.c.l.b16 %v281
      %v462 = vunpack.c.l.b16 %v282
      %v463 = vunpack.c.l.b16 %v283
      %v464 = vunpack.c.l.b16 %v284
      %v465 = vunpack.c.l.b16 %v285
      %v466 = vunpack.c.l.b16 %v286
      %v467 = vunpack.c.l.b16 %v287
      %v468 = vunpack.c.l.b16 %v288
      %v469 = vunpack.c.l.b16 %v289
      %v470 = vunpack.c.l.b16 %v290
      %v471 = vpack.c.b16 %v454, %v453
      %v472 = vpack.c.b16 %v456, %v455
      %v473 = vpack.c.b16 %v458, %v457
      %v474 = vpack.c.b16 %v460, %v459
      %v475 = vpack.c.b16 %v462, %v461
      %v476 = vpack.c.b16 %v464, %v463
      %v477 = vpack.c.b16 %v466, %v465
      %v478 = vpack.c.b16 %v468, %v467
      %v479 = vpack.c.b16 %v470, %v469
      %vm489 = vcmask 130048
      %v491 = vsel %vm489, %v388, 0
      %v494 = vsel %vm489, %v390, 0
      %v497 = vsel %vm489, %v392, 0
      %v500 = vsel %vm489, %v394, 0
      %v503 = vsel %vm489, %v396, 0
      %v506 = vsel %vm489, %v398, 0
      %v509 = vsel %vm489, %v400, 0
      %v512 = vsel %vm489, %v402, 0
      %v515 = vsel %vm489, %v404, 0
      %v518 = vsel %vm489, %v406, 0
      %v521 = vsel %vm489, %v408, 0
      %v524 = vsel %vm489, %v410, 0
      %v527 = vsel %vm489, %v412, 0
      %v530 = vsel %vm489, %v414, 0
      %v533 = vsel %vm489, %v416, 0
      %v536 = vsel %vm489, %v418, 0
      %538 = vmatprep.subr.bf16.mxu0 0
      %539 = vmatpush1.bf16.msra.mxu0 %v471
      %540 = vmatprep.subr.bf16.mxu0 0
      %541 = vmatpush1.bf16.msra.mxu0 %v472
      %542 = vmatprep.subr.bf16.mxu0 0
      %543 = vmatpush1.bf16.msra.mxu0 %v473
      %544 = vmatprep.subr.bf16.mxu0 0
      %545 = vmatpush1.bf16.msra.mxu0 %v474
      %546 = vmatprep.subr.bf16.mxu0 0
      %547 = vmatpush1.bf16.msra.mxu0 %v475
      %548 = vmatprep.subr.bf16.mxu0 0
      %549 = vmatpush1.bf16.msra.mxu0 %v476
      %550 = vmatprep.subr.bf16.mxu0 0
      %551 = vmatpush1.bf16.msra.mxu0 %v477
      %552 = vmatprep.subr.bf16.mxu0 0
      %553 = vmatpush1.bf16.msra.mxu0 %v478
      %554 = vmatprep.subr.bf16.mxu0 0
      %555 = vmatpush1.bf16.msra.mxu0 %v479
      %556 = vmatprep.subr.bf16.mxu0 0
      %557 = vmatpush1.bf16.msra.mxu0 0
      %558 = vmatprep.subr.bf16.mxu0 0
      %559 = vmatpush1.bf16.msra.mxu0 0
      %560 = vmatprep.subr.bf16.mxu0 0
      %561 = vmatpush1.bf16.msra.mxu0 0
      %562 = vmatprep.subr.bf16.mxu0 0
      %563 = vmatpush1.bf16.msra.mxu0 0
      %564 = vmatprep.subr.bf16.mxu0 0
      %565 = vmatpush1.bf16.msra.mxu0 0
      %566 = vmatprep.subr.bf16.mxu0 0
      %567 = vmatpush1.bf16.msra.mxu0 0
      %568 = vmatprep.subr.bf16.mxu0 0
      %569 = vmatpush1.bf16.msra.mxu0 0
      %570 = vmatprep.mubr.bf16.mxu0 %v491
      %571 = vmatmul.mubr.bf16.gmra.mrb[0].mxu0 %v387
      %v572 = vpop.f32.mrb[0].mxu0
      %v573 = vadd.f32 0.0, %v572
      %v574 = vpop.f32.mrb[0].mxu0
      %v575 = vpop.f32.mrb[0].mxu0
      %v576 = vadd.f32 0.0, %v575
      %v577 = vpop.f32.mrb[0].mxu0
      %578 = vmatprep.mubr.bf16.mxu0 %v494
      %579 = vmatmul.mubr.bf16.gmra.mrb[0].mxu0 %v389
      %v580 = vpop.f32.mrb[0].mxu0
      %v581 = vadd.f32 0.0, %v580
      %v582 = vpop.f32.mrb[0].mxu0
      %v583 = vpop.f32.mrb[0].mxu0
      %v584 = vadd.f32 0.0, %v583
      %v585 = vpop.f32.mrb[0].mxu0
      %586 = vmatprep.mubr.bf16.mxu0 %v497
      %587 = vmatmul.mubr.bf16.gmra.mrb[0].mxu0 %v391
      %v588 = vpop.f32.mrb[0].mxu0
      %v589 = vadd.f32 0.0, %v588
      %v590 = vpop.f32.mrb[0].mxu0
      %v591 = vpop.f32.mrb[0].mxu0
      %v592 = vadd.f32 0.0, %v591
      %v593 = vpop.f32.mrb[0].mxu0
      %594 = vmatprep.mubr.bf16.mxu0 %v500
      %595 = vmatmul.mubr.bf16.gmra.mrb[0].mxu0 %v393
      %v596 = vpop.f32.mrb[0].mxu0
      %v597 = vadd.f32 0.0, %v596
      %v598 = vpop.f32.mrb[0].mxu0
      %v599 = vpop.f32.mrb[0].mxu0
      %v600 = vadd.f32 0.0, %v599
      %v601 = vpop.f32.mrb[0].mxu0
      %602 = vmatprep.mubr.bf16.mxu0 %v503
      %603 = vmatmul.mubr.bf16.gmra.mrb[0].mxu0 %v395
      %v604 = vpop.f32.mrb[0].mxu0
      %v605 = vadd.f32 0.0, %v604
      %v606 = vpop.f32.mrb[0].mxu0
      %v607 = vpop.f32.mrb[0].mxu0
      %v608 = vadd.f32 0.0, %v607
      %v609 = vpop.f32.mrb[0].mxu0
      %610 = vmatprep.mubr.bf16.mxu0 %v506
      %611 = vmatmul.mubr.bf16.gmra.mrb[0].mxu0 %v397
      %v612 = vpop.f32.mrb[0].mxu0
      %v613 = vadd.f32 0.0, %v612
      %v614 = vpop.f32.mrb[0].mxu0
      %v615 = vpop.f32.mrb[0].mxu0
      %v616 = vadd.f32 0.0, %v615
      %v617 = vpop.f32.mrb[0].mxu0
      %618 = vmatprep.mubr.bf16.mxu0 %v509
      %619 = vmatmul.mubr.bf16.gmra.mrb[0].mxu0 %v399
      %v620 = vpop.f32.mrb[0].mxu0
      %v621 = vadd.f32 0.0, %v620
      %v622 = vpop.f32.mrb[0].mxu0
      %v623 = vpop.f32.mrb[0].mxu0
      %v624 = vadd.f32 0.0, %v623
      %v625 = vpop.f32.mrb[0].mxu0
      %626 = vmatprep.mubr.bf16.mxu0 %v512
      %627 = vmatmul.mubr.bf16.gmra.mrb[0].mxu0 %v401
      %v628 = vpop.f32.mrb[0].mxu0
      %v629 = vadd.f32 0.0, %v628
      %v630 = vpop.f32.mrb[0].mxu0
      %v631 = vpop.f32.mrb[0].mxu0
      %v632 = vadd.f32 0.0, %v631
      %v633 = vpop.f32.mrb[0].mxu0
      %634 = vmatprep.mubr.bf16.mxu0 %v515
      %635 = vmatmul.mubr.bf16.gmra.mrb[0].mxu0 %v403
      %v636 = vpop.f32.mrb[0].mxu0
      %v637 = vadd.f32 0.0, %v636
      %v638 = vpop.f32.mrb[0].mxu0
      %v639 = vpop.f32.mrb[0].mxu0
      %v640 = vadd.f32 0.0, %v639
      %v641 = vpop.f32.mrb[0].mxu0
      %642 = vmatprep.mubr.bf16.mxu0 %v518
      %643 = vmatmul.mubr.bf16.gmra.mrb[0].mxu0 %v405
      %v644 = vpop.f32.mrb[0].mxu0
      %v645 = vadd.f32 0.0, %v644
      %v646 = vpop.f32.mrb[0].mxu0
      %v647 = vpop.f32.mrb[0].mxu0
      %v648 = vadd.f32 0.0, %v647
      %v649 = vpop.f32.mrb[0].mxu0
      %650 = vmatprep.mubr.bf16.mxu0 %v521
      %651 = vmatmul.mubr.bf16.gmra.mrb[0].mxu0 %v407
      %v652 = vpop.f32.mrb[0].mxu0
      %v653 = vadd.f32 0.0, %v652
      %v654 = vpop.f32.mrb[0].mxu0
      %v655 = vpop.f32.mrb[0].mxu0
      %v656 = vadd.f32 0.0, %v655
      %v657 = vpop.f32.mrb[0].mxu0
      %658 = vmatprep.mubr.bf16.mxu0 %v524
      %659 = vmatmul.mubr.bf16.gmra.mrb[0].mxu0 %v409
      %v660 = vpop.f32.mrb[0].mxu0
      %v661 = vadd.f32 0.0, %v660
      %v662 = vpop.f32.mrb[0].mxu0
      %v663 = vpop.f32.mrb[0].mxu0
      %v664 = vadd.f32 0.0, %v663
      %v665 = vpop.f32.mrb[0].mxu0
      %666 = vmatprep.mubr.bf16.mxu0 %v527
      %667 = vmatmul.mubr.bf16.gmra.mrb[0].mxu0 %v411
      %v668 = vpop.f32.mrb[0].mxu0
      %v669 = vadd.f32 0.0, %v668
      %v670 = vpop.f32.mrb[0].mxu0
      %v671 = vpop.f32.mrb[0].mxu0
      %v672 = vadd.f32 0.0, %v671
      %v673 = vpop.f32.mrb[0].mxu0
      %674 = vmatprep.mubr.bf16.mxu0 %v530
      %675 = vmatmul.mubr.bf16.gmra.mrb[0].mxu0 %v413
      %v676 = vpop.f32.mrb[0].mxu0
      %v677 = vadd.f32 0.0, %v676
      %v678 = vpop.f32.mrb[0].mxu0
      %v679 = vpop.f32.mrb[0].mxu0
      %v680 = vadd.f32 0.0, %v679
      %v681 = vpop.f32.mrb[0].mxu0
      %682 = vmatprep.mubr.bf16.mxu0 %v533
      %683 = vmatmul.mubr.bf16.gmra.mrb[0].mxu0 %v415
      %v684 = vpop.f32.mrb[0].mxu0
      %v685 = vadd.f32 0.0, %v684
      %v686 = vpop.f32.mrb[0].mxu0
      %v687 = vpop.f32.mrb[0].mxu0
      %v688 = vadd.f32 0.0, %v687
      %v689 = vpop.f32.mrb[0].mxu0
      %690 = vmatprep.mubr.bf16.mxu0 %v536
      %691 = vmatmul.mubr.bf16.gmra.mrb[0].mxu0 %v417
      %v692 = vpop.f32.mrb[0].mxu0
      %v693 = vadd.f32 0.0, %v692
      %v694 = vpop.f32.mrb[0].mxu0
      %v695 = vpop.f32.mrb[0].mxu0
      %v696 = vadd.f32 0.0, %v695
      %v697 = vpop.f32.mrb[0].mxu0
      %698 = vdwg.mxu0
      %v699 = vld [vmem:[%s2] sm:$0x1]
      %v701 = vlaneseq
      %v702 = vshrl.u32 %v701, 7
      %v703 = vsub.s32 0, %v702
      %v704 = vrot.slane %v699, %v703
      %v706 = vmul.f32 %v573, %v704
      %v707 = vmul.f32 %v576, %v704
      %v708 = vmul.f32 %v581, %v704
      %v709 = vmul.f32 %v584, %v704
      %v710 = vmul.f32 %v589, %v704
      %v711 = vmul.f32 %v592, %v704
      %v712 = vmul.f32 %v597, %v704
      %v713 = vmul.f32 %v600, %v704
      %v714 = vmul.f32 %v605, %v704
      %v715 = vmul.f32 %v608, %v704
      %v716 = vmul.f32 %v613, %v704
      %v717 = vmul.f32 %v616, %v704
      %v718 = vmul.f32 %v621, %v704
      %v719 = vmul.f32 %v624, %v704
      %v720 = vmul.f32 %v629, %v704
      %v721 = vmul.f32 %v632, %v704
      %v722 = vmul.f32 %v637, %v704
      %v723 = vmul.f32 %v640, %v704
      %v724 = vmul.f32 %v645, %v704
      %v725 = vmul.f32 %v648, %v704
      %v726 = vmul.f32 %v653, %v704
      %v727 = vmul.f32 %v656, %v704
      %v728 = vmul.f32 %v661, %v704
      %v729 = vmul.f32 %v664, %v704
      %v730 = vmul.f32 %v669, %v704
      %v731 = vmul.f32 %v672, %v704
      %v732 = vmul.f32 %v677, %v704
      %v733 = vmul.f32 %v680, %v704
      %v734 = vmul.f32 %v685, %v704
      %v735 = vmul.f32 %v688, %v704
      %v736 = vmul.f32 %v693, %v704
      %v737 = vmul.f32 %v696, %v704
      %v738 = vld [vmem:[%s3] sm:$0x1]
      %v740 = vlaneseq
      %v741 = vshrl.u32 %v740, 7
      %v742 = vsub.s32 0, %v741
      %v743 = vrot.slane %v738, %v742
      %v745 = vadd.f32 %v706, %v743
      %v746 = vadd.f32 %v707, %v743
      %v747 = vadd.f32 %v708, %v743
      %v748 = vadd.f32 %v709, %v743
      %v749 = vadd.f32 %v710, %v743
      %v750 = vadd.f32 %v711, %v743
      %v751 = vadd.f32 %v712, %v743
      %v752 = vadd.f32 %v713, %v743
      %v753 = vadd.f32 %v714, %v743
      %v754 = vadd.f32 %v715, %v743
      %v755 = vadd.f32 %v716, %v743
      %v756 = vadd.f32 %v717, %v743
      %v757 = vadd.f32 %v718, %v743
      %v758 = vadd.f32 %v719, %v743
      %v759 = vadd.f32 %v720, %v743
      %v760 = vadd.f32 %v721, %v743
      %v761 = vadd.f32 %v722, %v743
      %v762 = vadd.f32 %v723, %v743
      %v763 = vadd.f32 %v724, %v743
      %v764 = vadd.f32 %v725, %v743
      %v765 = vadd.f32 %v726, %v743
      %v766 = vadd.f32 %v727, %v743
      %v767 = vadd.f32 %v728, %v743
      %v768 = vadd.f32 %v729, %v743
      %v769 = vadd.f32 %v730, %v743
      %v770 = vadd.f32 %v731, %v743
      %v771 = vadd.f32 %v732, %v743
      %v772 = vadd.f32 %v733, %v743
      %v773 = vadd.f32 %v734, %v743
      %v774 = vadd.f32 %v735, %v743
      %v775 = vadd.f32 %v736, %v743
      %v776 = vadd.f32 %v737, %v743
      %v777 = vmax.f32 %v745, 0.0
      %v778 = vmax.f32 %v746, 0.0
      %v779 = vmax.f32 %v747, 0.0
      %v780 = vmax.f32 %v748, 0.0
      %v781 = vmax.f32 %v749, 0.0
      %v782 = vmax.f32 %v750, 0.0
      %v783 = vmax.f32 %v751, 0.0
      %v784 = vmax.f32 %v752, 0.0
      %v785 = vmax.f32 %v753, 0.0
      %v786 = vmax.f32 %v754, 0.0
      %v787 = vmax.f32 %v755, 0.0
      %v788 = vmax.f32 %v756, 0.0
      %v789 = vmax.f32 %v757, 0.0
      %v790 = vmax.f32 %v758, 0.0
      %v791 = vmax.f32 %v759, 0.0
      %v792 = vmax.f32 %v760, 0.0
      %v793 = vmax.f32 %v761, 0.0
      %v794 = vmax.f32 %v762, 0.0
      %v795 = vmax.f32 %v763, 0.0
      %v796 = vmax.f32 %v764, 0.0
      %v797 = vmax.f32 %v765, 0.0
      %v798 = vmax.f32 %v766, 0.0
      %v799 = vmax.f32 %v767, 0.0
      %v800 = vmax.f32 %v768, 0.0
      %v801 = vmax.f32 %v769, 0.0
      %v802 = vmax.f32 %v770, 0.0
      %v803 = vmax.f32 %v771, 0.0
      %v804 = vmax.f32 %v772, 0.0
      %v805 = vmax.f32 %v773, 0.0
      %v806 = vmax.f32 %v774, 0.0
      %v807 = vmax.f32 %v775, 0.0
      %v808 = vmax.f32 %v776, 0.0
      %vm809 = vcmask 261120
      %v810 = vsel %vm809, %v777, -inf
      %v811 = vsel %vm809, %v779, -inf
      %v812 = vmax.f32 %v810, %v811
      %v813 = vsel %vm809, %v778, -inf
      %v814 = vsel %vm809, %v780, -inf
      %v815 = vmax.f32 %v813, %v814
      %v816 = vsel %vm809, %v781, -inf
      %v817 = vsel %vm809, %v783, -inf
      %v818 = vmax.f32 %v816, %v817
      %v819 = vsel %vm809, %v782, -inf
      %v820 = vsel %vm809, %v784, -inf
      %v821 = vmax.f32 %v819, %v820
      %v822 = vsel %vm809, %v785, -inf
      %v823 = vsel %vm809, %v787, -inf
      %v824 = vmax.f32 %v822, %v823
      %v825 = vsel %vm809, %v786, -inf
      %v826 = vsel %vm809, %v788, -inf
      %v827 = vmax.f32 %v825, %v826
      %v828 = vsel %vm809, %v789, -inf
      %v829 = vsel %vm809, %v791, -inf
      %v830 = vmax.f32 %v828, %v829
      %v831 = vsel %vm809, %v790, -inf
      %v832 = vsel %vm809, %v792, -inf
      %v833 = vmax.f32 %v831, %v832
      %v834 = vsel %vm809, %v793, -inf
      %v835 = vsel %vm809, %v795, -inf
      %v836 = vmax.f32 %v834, %v835
      %v837 = vsel %vm809, %v794, -inf
      %v838 = vsel %vm809, %v796, -inf
      %v839 = vmax.f32 %v837, %v838
      %v840 = vsel %vm809, %v797, -inf
      %v841 = vsel %vm809, %v799, -inf
      %v842 = vmax.f32 %v840, %v841
      %v843 = vsel %vm809, %v798, -inf
      %v844 = vsel %vm809, %v800, -inf
      %v845 = vmax.f32 %v843, %v844
      %v846 = vsel %vm809, %v801, -inf
      %v847 = vsel %vm809, %v803, -inf
      %v848 = vmax.f32 %v846, %v847
      %v849 = vsel %vm809, %v802, -inf
      %v850 = vsel %vm809, %v804, -inf
      %v851 = vmax.f32 %v849, %v850
      %v852 = vsel %vm809, %v805, -inf
      %v853 = vsel %vm809, %v807, -inf
      %v854 = vmax.f32 %v852, %v853
      %v855 = vsel %vm809, %v806, -inf
      %v856 = vsel %vm809, %v808, -inf
      %v857 = vmax.f32 %v855, %v856
      %v874 = vcombine.high %v812, %v812
      %v876 = vunpack.c.l.s4 1983009808
      %v877 = vunpack.c.0.s8 %v876
      %v878 = vlaneseq
      %v879 = vshrl.u32 %v878, 7
      %v880 = vsub.s32 %v877, %v879
      %v881 = vrot.slane %v812, %v880
      %v883 = vunpack.c.l.s4 1983009808
      %v884 = vunpack.c.0.s8 %v883
      %v885 = vlaneseq
      %v886 = vshrl.u32 %v885, 7
      %v887 = vsub.s32 %v884, %v886
      %v888 = vrot.slane %v874, %v887
      %v889 = vcombine.high %v881, %v881
      %v890 = vcombine.high %v888, %v888
      %v891 = vcombine.high %v815, %v815
      %v893 = vunpack.c.l.s4 1983009808
      %v894 = vunpack.c.0.s8 %v893
      %v895 = vlaneseq
      %v896 = vshrl.u32 %v895, 7
      %v897 = vsub.s32 %v894, %v896
      %v898 = vrot.slane %v815, %v897
      %v900 = vunpack.c.l.s4 1983009808
      %v901 = vunpack.c.0.s8 %v900
      %v902 = vlaneseq
      %v903 = vshrl.u32 %v902, 7
      %v904 = vsub.s32 %v901, %v903
      %v905 = vrot.slane %v891, %v904
      %v906 = vcombine.high %v898, %v898
      %v907 = vcombine.high %v905, %v905
      %v908 = vcombine.high %v818, %v818
      %v910 = vunpack.c.l.s4 1983009808
      %v911 = vunpack.c.0.s8 %v910
      %v912 = vlaneseq
      %v913 = vshrl.u32 %v912, 7
      %v914 = vsub.s32 %v911, %v913
      %v915 = vrot.slane %v818, %v914
      %v917 = vunpack.c.l.s4 1983009808
      %v918 = vunpack.c.0.s8 %v917
      %v919 = vlaneseq
      %v920 = vshrl.u32 %v919, 7
      %v921 = vsub.s32 %v918, %v920
      %v922 = vrot.slane %v908, %v921
      %v923 = vcombine.high %v915, %v915
      %v924 = vcombine.high %v922, %v922
      %v925 = vcombine.high %v821, %v821
      %v927 = vunpack.c.l.s4 1983009808
      %v928 = vunpack.c.0.s8 %v927
      %v929 = vlaneseq
      %v930 = vshrl.u32 %v929, 7
      %v931 = vsub.s32 %v928, %v930
      %v932 = vrot.slane %v821, %v931
      %v934 = vunpack.c.l.s4 1983009808
      %v935 = vunpack.c.0.s8 %v934
      %v936 = vlaneseq
      %v937 = vshrl.u32 %v936, 7
      %v938 = vsub.s32 %v935, %v937
      %v939 = vrot.slane %v925, %v938
      %v940 = vcombine.high %v932, %v932
      %v941 = vcombine.high %v939, %v939
      %v942 = vcombine.high %v824, %v824
      %v944 = vunpack.c.l.s4 1983009808
      %v945 = vunpack.c.0.s8 %v944
      %v946 = vlaneseq
      %v947 = vshrl.u32 %v946, 7
      %v948 = vsub.s32 %v945, %v947
      %v949 = vrot.slane %v824, %v948
      %v951 = vunpack.c.l.s4 1983009808
      %v952 = vunpack.c.0.s8 %v951
      %v953 = vlaneseq
      %v954 = vshrl.u32 %v953, 7
      %v955 = vsub.s32 %v952, %v954
      %v956 = vrot.slane %v942, %v955
      %v957 = vcombine.high %v949, %v949
      %v958 = vcombine.high %v956, %v956
      %v959 = vcombine.high %v827, %v827
      %v961 = vunpack.c.l.s4 1983009808
      %v962 = vunpack.c.0.s8 %v961
      %v963 = vlaneseq
      %v964 = vshrl.u32 %v963, 7
      %v965 = vsub.s32 %v962, %v964
      %v966 = vrot.slane %v827, %v965
      %v968 = vunpack.c.l.s4 1983009808
      %v969 = vunpack.c.0.s8 %v968
      %v970 = vlaneseq
      %v971 = vshrl.u32 %v970, 7
      %v972 = vsub.s32 %v969, %v971
      %v973 = vrot.slane %v959, %v972
      %v974 = vcombine.high %v966, %v966
      %v975 = vcombine.high %v973, %v973
      %v976 = vcombine.high %v830, %v830
      %v978 = vunpack.c.l.s4 1983009808
      %v979 = vunpack.c.0.s8 %v978
      %v980 = vlaneseq
      %v981 = vshrl.u32 %v980, 7
      %v982 = vsub.s32 %v979, %v981
      %v983 = vrot.slane %v830, %v982
      %v985 = vunpack.c.l.s4 1983009808
      %v986 = vunpack.c.0.s8 %v985
      %v987 = vlaneseq
      %v988 = vshrl.u32 %v987, 7
      %v989 = vsub.s32 %v986, %v988
      %v990 = vrot.slane %v976, %v989
      %v991 = vcombine.high %v983, %v983
      %v992 = vcombine.high %v990, %v990
      %v993 = vcombine.high %v833, %v833
      %v995 = vunpack.c.l.s4 1983009808
      %v996 = vunpack.c.0.s8 %v995
      %v997 = vlaneseq
      %v998 = vshrl.u32 %v997, 7
      %v999 = vsub.s32 %v996, %v998
      %v1000 = vrot.slane %v833, %v999
      %v1002 = vunpack.c.l.s4 1983009808
      %v1003 = vunpack.c.0.s8 %v1002
      %v1004 = vlaneseq
      %v1005 = vshrl.u32 %v1004, 7
      %v1006 = vsub.s32 %v1003, %v1005
      %v1007 = vrot.slane %v993, %v1006
      %v1008 = vcombine.high %v1000, %v1000
      %v1009 = vcombine.high %v1007, %v1007
      %v1010 = vcombine.high %v836, %v836
      %v1012 = vunpack.c.l.s4 1983009808
      %v1013 = vunpack.c.0.s8 %v1012
      %v1014 = vlaneseq
      %v1015 = vshrl.u32 %v1014, 7
      %v1016 = vsub.s32 %v1013, %v1015
      %v1017 = vrot.slane %v836, %v1016
      %v1019 = vunpack.c.l.s4 1983009808
      %v1020 = vunpack.c.0.s8 %v1019
      %v1021 = vlaneseq
      %v1022 = vshrl.u32 %v1021, 7
      %v1023 = vsub.s32 %v1020, %v1022
      %v1024 = vrot.slane %v1010, %v1023
      %v1025 = vcombine.high %v1017, %v1017
      %v1026 = vcombine.high %v1024, %v1024
      %v1027 = vcombine.high %v839, %v839
      %v1029 = vunpack.c.l.s4 1983009808
      %v1030 = vunpack.c.0.s8 %v1029
      %v1031 = vlaneseq
      %v1032 = vshrl.u32 %v1031, 7
      %v1033 = vsub.s32 %v1030, %v1032
      %v1034 = vrot.slane %v839, %v1033
      %v1036 = vunpack.c.l.s4 1983009808
      %v1037 = vunpack.c.0.s8 %v1036
      %v1038 = vlaneseq
      %v1039 = vshrl.u32 %v1038, 7
      %v1040 = vsub.s32 %v1037, %v1039
      %v1041 = vrot.slane %v1027, %v1040
      %v1042 = vcombine.high %v1034, %v1034
      %v1043 = vcombine.high %v1041, %v1041
      %v1044 = vcombine.high %v842, %v842
      %v1046 = vunpack.c.l.s4 1983009808
      %v1047 = vunpack.c.0.s8 %v1046
      %v1048 = vlaneseq
      %v1049 = vshrl.u32 %v1048, 7
      %v1050 = vsub.s32 %v1047, %v1049
      %v1051 = vrot.slane %v842, %v1050
      %v1053 = vunpack.c.l.s4 1983009808
      %v1054 = vunpack.c.0.s8 %v1053
      %v1055 = vlaneseq
      %v1056 = vshrl.u32 %v1055, 7
      %v1057 = vsub.s32 %v1054, %v1056
      %v1058 = vrot.slane %v1044, %v1057
      %v1059 = vcombine.high %v1051, %v1051
      %v1060 = vcombine.high %v1058, %v1058
      %v1061 = vcombine.high %v845, %v845
      %v1063 = vunpack.c.l.s4 1983009808
      %v1064 = vunpack.c.0.s8 %v1063
      %v1065 = vlaneseq
      %v1066 = vshrl.u32 %v1065, 7
      %v1067 = vsub.s32 %v1064, %v1066
      %v1068 = vrot.slane %v845, %v1067
      %v1070 = vunpack.c.l.s4 1983009808
      %v1071 = vunpack.c.0.s8 %v1070
      %v1072 = vlaneseq
      %v1073 = vshrl.u32 %v1072, 7
      %v1074 = vsub.s32 %v1071, %v1073
      %v1075 = vrot.slane %v1061, %v1074
      %v1076 = vcombine.high %v1068, %v1068
      %v1077 = vcombine.high %v1075, %v1075
      %v1078 = vcombine.high %v848, %v848
      %v1080 = vunpack.c.l.s4 1983009808
      %v1081 = vunpack.c.0.s8 %v1080
      %v1082 = vlaneseq
      %v1083 = vshrl.u32 %v1082, 7
      %v1084 = vsub.s32 %v1081, %v1083
      %v1085 = vrot.slane %v848, %v1084
      %v1087 = vunpack.c.l.s4 1983009808
      %v1088 = vunpack.c.0.s8 %v1087
      %v1089 = vlaneseq
      %v1090 = vshrl.u32 %v1089, 7
      %v1091 = vsub.s32 %v1088, %v1090
      %v1092 = vrot.slane %v1078, %v1091
      %v1093 = vcombine.high %v1085, %v1085
      %v1094 = vcombine.high %v1092, %v1092
      %v1095 = vcombine.high %v851, %v851
      %v1097 = vunpack.c.l.s4 1983009808
      %v1098 = vunpack.c.0.s8 %v1097
      %v1099 = vlaneseq
      %v1100 = vshrl.u32 %v1099, 7
      %v1101 = vsub.s32 %v1098, %v1100
      %v1102 = vrot.slane %v851, %v1101
      %v1104 = vunpack.c.l.s4 1983009808
      %v1105 = vunpack.c.0.s8 %v1104
      %v1106 = vlaneseq
      %v1107 = vshrl.u32 %v1106, 7
      %v1108 = vsub.s32 %v1105, %v1107
      %v1109 = vrot.slane %v1095, %v1108
      %v1110 = vcombine.high %v1102, %v1102
      %v1111 = vcombine.high %v1109, %v1109
      %v1112 = vcombine.high %v854, %v854
      %v1114 = vunpack.c.l.s4 1983009808
      %v1115 = vunpack.c.0.s8 %v1114
      %v1116 = vlaneseq
      %v1117 = vshrl.u32 %v1116, 7
      %v1118 = vsub.s32 %v1115, %v1117
      %v1119 = vrot.slane %v854, %v1118
      %v1121 = vunpack.c.l.s4 1983009808
      %v1122 = vunpack.c.0.s8 %v1121
      %v1123 = vlaneseq
      %v1124 = vshrl.u32 %v1123, 7
      %v1125 = vsub.s32 %v1122, %v1124
      %v1126 = vrot.slane %v1112, %v1125
      %v1127 = vcombine.high %v1119, %v1119
      %v1128 = vcombine.high %v1126, %v1126
      %v1129 = vcombine.high %v857, %v857
      %v1131 = vunpack.c.l.s4 1983009808
      %v1132 = vunpack.c.0.s8 %v1131
      %v1133 = vlaneseq
      %v1134 = vshrl.u32 %v1133, 7
      %v1135 = vsub.s32 %v1132, %v1134
      %v1136 = vrot.slane %v857, %v1135
      %v1138 = vunpack.c.l.s4 1983009808
      %v1139 = vunpack.c.0.s8 %v1138
      %v1140 = vlaneseq
      %v1141 = vshrl.u32 %v1140, 7
      %v1142 = vsub.s32 %v1139, %v1141
      %v1143 = vrot.slane %v1129, %v1142
      %v1144 = vcombine.high %v1136, %v1136
      %v1145 = vcombine.high %v1143, %v1143
      %vm1210 = vcmask 254976
      %v1211 = vsel %vm1210, %v881, -inf
      %v1212 = vrot.slane %v1211, 4
      %v1213 = vmax.f32 %v1211, %v1212
      %v1214 = vrot.slane %v1213, 2
      %v1215 = vmax.f32 %v1213, %v1214
      %v1216 = vrot.slane %v1215, 1
      %v1217 = vmax.f32 %v1215, %v1216
      %v1218 = vsel %vm1210, %v889, -inf
      %v1219 = vrot.slane %v1218, 4
      %v1220 = vmax.f32 %v1218, %v1219
      %v1221 = vrot.slane %v1220, 2
      %v1222 = vmax.f32 %v1220, %v1221
      %v1223 = vrot.slane %v1222, 1
      %v1224 = vmax.f32 %v1222, %v1223
      %v1225 = vsel %vm1210, %v888, -inf
      %v1226 = vrot.slane %v1225, 4
      %v1227 = vmax.f32 %v1225, %v1226
      %v1228 = vrot.slane %v1227, 2
      %v1229 = vmax.f32 %v1227, %v1228
      %v1230 = vrot.slane %v1229, 1
      %v1231 = vmax.f32 %v1229, %v1230
      %v1232 = vsel %vm1210, %v890, -inf
      %v1233 = vrot.slane %v1232, 4
      %v1234 = vmax.f32 %v1232, %v1233
      %v1235 = vrot.slane %v1234, 2
      %v1236 = vmax.f32 %v1234, %v1235
      %v1237 = vrot.slane %v1236, 1
      %v1238 = vmax.f32 %v1236, %v1237
      %v1239 = vsel %vm1210, %v898, -inf
      %v1240 = vrot.slane %v1239, 4
      %v1241 = vmax.f32 %v1239, %v1240
      %v1242 = vrot.slane %v1241, 2
      %v1243 = vmax.f32 %v1241, %v1242
      %v1244 = vrot.slane %v1243, 1
      %v1245 = vmax.f32 %v1243, %v1244
      %v1246 = vsel %vm1210, %v906, -inf
      %v1247 = vrot.slane %v1246, 4
      %v1248 = vmax.f32 %v1246, %v1247
      %v1249 = vrot.slane %v1248, 2
      %v1250 = vmax.f32 %v1248, %v1249
      %v1251 = vrot.slane %v1250, 1
      %v1252 = vmax.f32 %v1250, %v1251
      %v1253 = vsel %vm1210, %v905, -inf
      %v1254 = vrot.slane %v1253, 4
      %v1255 = vmax.f32 %v1253, %v1254
      %v1256 = vrot.slane %v1255, 2
      %v1257 = vmax.f32 %v1255, %v1256
      %v1258 = vrot.slane %v1257, 1
      %v1259 = vmax.f32 %v1257, %v1258
      %v1260 = vsel %vm1210, %v907, -inf
      %v1261 = vrot.slane %v1260, 4
      %v1262 = vmax.f32 %v1260, %v1261
      %v1263 = vrot.slane %v1262, 2
      %v1264 = vmax.f32 %v1262, %v1263
      %v1265 = vrot.slane %v1264, 1
      %v1266 = vmax.f32 %v1264, %v1265
      %v1267 = vsel %vm1210, %v915, -inf
      %v1268 = vrot.slane %v1267, 4
      %v1269 = vmax.f32 %v1267, %v1268
      %v1270 = vrot.slane %v1269, 2
      %v1271 = vmax.f32 %v1269, %v1270
      %v1272 = vrot.slane %v1271, 1
      %v1273 = vmax.f32 %v1271, %v1272
      %v1274 = vsel %vm1210, %v923, -inf
      %v1275 = vrot.slane %v1274, 4
      %v1276 = vmax.f32 %v1274, %v1275
      %v1277 = vrot.slane %v1276, 2
      %v1278 = vmax.f32 %v1276, %v1277
      %v1279 = vrot.slane %v1278, 1
      %v1280 = vmax.f32 %v1278, %v1279
      %v1281 = vsel %vm1210, %v922, -inf
      %v1282 = vrot.slane %v1281, 4
      %v1283 = vmax.f32 %v1281, %v1282
      %v1284 = vrot.slane %v1283, 2
      %v1285 = vmax.f32 %v1283, %v1284
      %v1286 = vrot.slane %v1285, 1
      %v1287 = vmax.f32 %v1285, %v1286
      %v1288 = vsel %vm1210, %v924, -inf
      %v1289 = vrot.slane %v1288, 4
      %v1290 = vmax.f32 %v1288, %v1289
      %v1291 = vrot.slane %v1290, 2
      %v1292 = vmax.f32 %v1290, %v1291
      %v1293 = vrot.slane %v1292, 1
      %v1294 = vmax.f32 %v1292, %v1293
      %v1295 = vsel %vm1210, %v932, -inf
      %v1296 = vrot.slane %v1295, 4
      %v1297 = vmax.f32 %v1295, %v1296
      %v1298 = vrot.slane %v1297, 2
      %v1299 = vmax.f32 %v1297, %v1298
      %v1300 = vrot.slane %v1299, 1
      %v1301 = vmax.f32 %v1299, %v1300
      %v1302 = vsel %vm1210, %v940, -inf
      %v1303 = vrot.slane %v1302, 4
      %v1304 = vmax.f32 %v1302, %v1303
      %v1305 = vrot.slane %v1304, 2
      %v1306 = vmax.f32 %v1304, %v1305
      %v1307 = vrot.slane %v1306, 1
      %v1308 = vmax.f32 %v1306, %v1307
      %v1309 = vsel %vm1210, %v939, -inf
      %v1310 = vrot.slane %v1309, 4
      %v1311 = vmax.f32 %v1309, %v1310
      %v1312 = vrot.slane %v1311, 2
      %v1313 = vmax.f32 %v1311, %v1312
      %v1314 = vrot.slane %v1313, 1
      %v1315 = vmax.f32 %v1313, %v1314
      %v1316 = vsel %vm1210, %v941, -inf
      %v1317 = vrot.slane %v1316, 4
      %v1318 = vmax.f32 %v1316, %v1317
      %v1319 = vrot.slane %v1318, 2
      %v1320 = vmax.f32 %v1318, %v1319
      %v1321 = vrot.slane %v1320, 1
      %v1322 = vmax.f32 %v1320, %v1321
      %v1323 = vsel %vm1210, %v949, -inf
      %v1324 = vrot.slane %v1323, 4
      %v1325 = vmax.f32 %v1323, %v1324
      %v1326 = vrot.slane %v1325, 2
      %v1327 = vmax.f32 %v1325, %v1326
      %v1328 = vrot.slane %v1327, 1
      %v1329 = vmax.f32 %v1327, %v1328
      %v1330 = vsel %vm1210, %v957, -inf
      %v1331 = vrot.slane %v1330, 4
      %v1332 = vmax.f32 %v1330, %v1331
      %v1333 = vrot.slane %v1332, 2
      %v1334 = vmax.f32 %v1332, %v1333
      %v1335 = vrot.slane %v1334, 1
      %v1336 = vmax.f32 %v1334, %v1335
      %v1337 = vsel %vm1210, %v956, -inf
      %v1338 = vrot.slane %v1337, 4
      %v1339 = vmax.f32 %v1337, %v1338
      %v1340 = vrot.slane %v1339, 2
      %v1341 = vmax.f32 %v1339, %v1340
      %v1342 = vrot.slane %v1341, 1
      %v1343 = vmax.f32 %v1341, %v1342
      %v1344 = vsel %vm1210, %v958, -inf
      %v1345 = vrot.slane %v1344, 4
      %v1346 = vmax.f32 %v1344, %v1345
      %v1347 = vrot.slane %v1346, 2
      %v1348 = vmax.f32 %v1346, %v1347
      %v1349 = vrot.slane %v1348, 1
      %v1350 = vmax.f32 %v1348, %v1349
      %v1351 = vsel %vm1210, %v966, -inf
      %v1352 = vrot.slane %v1351, 4
      %v1353 = vmax.f32 %v1351, %v1352
      %v1354 = vrot.slane %v1353, 2
      %v1355 = vmax.f32 %v1353, %v1354
      %v1356 = vrot.slane %v1355, 1
      %v1357 = vmax.f32 %v1355, %v1356
      %v1358 = vsel %vm1210, %v974, -inf
      %v1359 = vrot.slane %v1358, 4
      %v1360 = vmax.f32 %v1358, %v1359
      %v1361 = vrot.slane %v1360, 2
      %v1362 = vmax.f32 %v1360, %v1361
      %v1363 = vrot.slane %v1362, 1
      %v1364 = vmax.f32 %v1362, %v1363
      %v1365 = vsel %vm1210, %v973, -inf
      %v1366 = vrot.slane %v1365, 4
      %v1367 = vmax.f32 %v1365, %v1366
      %v1368 = vrot.slane %v1367, 2
      %v1369 = vmax.f32 %v1367, %v1368
      %v1370 = vrot.slane %v1369, 1
      %v1371 = vmax.f32 %v1369, %v1370
      %v1372 = vsel %vm1210, %v975, -inf
      %v1373 = vrot.slane %v1372, 4
      %v1374 = vmax.f32 %v1372, %v1373
      %v1375 = vrot.slane %v1374, 2
      %v1376 = vmax.f32 %v1374, %v1375
      %v1377 = vrot.slane %v1376, 1
      %v1378 = vmax.f32 %v1376, %v1377
      %v1379 = vsel %vm1210, %v983, -inf
      %v1380 = vrot.slane %v1379, 4
      %v1381 = vmax.f32 %v1379, %v1380
      %v1382 = vrot.slane %v1381, 2
      %v1383 = vmax.f32 %v1381, %v1382
      %v1384 = vrot.slane %v1383, 1
      %v1385 = vmax.f32 %v1383, %v1384
      %v1386 = vsel %vm1210, %v991, -inf
      %v1387 = vrot.slane %v1386, 4
      %v1388 = vmax.f32 %v1386, %v1387
      %v1389 = vrot.slane %v1388, 2
      %v1390 = vmax.f32 %v1388, %v1389
      %v1391 = vrot.slane %v1390, 1
      %v1392 = vmax.f32 %v1390, %v1391
      %v1393 = vsel %vm1210, %v990, -inf
      %v1394 = vrot.slane %v1393, 4
      %v1395 = vmax.f32 %v1393, %v1394
      %v1396 = vrot.slane %v1395, 2
      %v1397 = vmax.f32 %v1395, %v1396
      %v1398 = vrot.slane %v1397, 1
      %v1399 = vmax.f32 %v1397, %v1398
      %v1400 = vsel %vm1210, %v992, -inf
      %v1401 = vrot.slane %v1400, 4
      %v1402 = vmax.f32 %v1400, %v1401
      %v1403 = vrot.slane %v1402, 2
      %v1404 = vmax.f32 %v1402, %v1403
      %v1405 = vrot.slane %v1404, 1
      %v1406 = vmax.f32 %v1404, %v1405
      %v1407 = vsel %vm1210, %v1000, -inf
      %v1408 = vrot.slane %v1407, 4
      %v1409 = vmax.f32 %v1407, %v1408
      %v1410 = vrot.slane %v1409, 2
      %v1411 = vmax.f32 %v1409, %v1410
      %v1412 = vrot.slane %v1411, 1
      %v1413 = vmax.f32 %v1411, %v1412
      %v1414 = vsel %vm1210, %v1008, -inf
      %v1415 = vrot.slane %v1414, 4
      %v1416 = vmax.f32 %v1414, %v1415
      %v1417 = vrot.slane %v1416, 2
      %v1418 = vmax.f32 %v1416, %v1417
      %v1419 = vrot.slane %v1418, 1
      %v1420 = vmax.f32 %v1418, %v1419
      %v1421 = vsel %vm1210, %v1007, -inf
      %v1422 = vrot.slane %v1421, 4
      %v1423 = vmax.f32 %v1421, %v1422
      %v1424 = vrot.slane %v1423, 2
      %v1425 = vmax.f32 %v1423, %v1424
      %v1426 = vrot.slane %v1425, 1
      %v1427 = vmax.f32 %v1425, %v1426
      %v1428 = vsel %vm1210, %v1009, -inf
      %v1429 = vrot.slane %v1428, 4
      %v1430 = vmax.f32 %v1428, %v1429
      %v1431 = vrot.slane %v1430, 2
      %v1432 = vmax.f32 %v1430, %v1431
      %v1433 = vrot.slane %v1432, 1
      %v1434 = vmax.f32 %v1432, %v1433
      %v1435 = vsel %vm1210, %v1017, -inf
      %v1436 = vrot.slane %v1435, 4
      %v1437 = vmax.f32 %v1435, %v1436
      %v1438 = vrot.slane %v1437, 2
      %v1439 = vmax.f32 %v1437, %v1438
      %v1440 = vrot.slane %v1439, 1
      %v1441 = vmax.f32 %v1439, %v1440
      %v1442 = vsel %vm1210, %v1025, -inf
      %v1443 = vrot.slane %v1442, 4
      %v1444 = vmax.f32 %v1442, %v1443
      %v1445 = vrot.slane %v1444, 2
      %v1446 = vmax.f32 %v1444, %v1445
      %v1447 = vrot.slane %v1446, 1
      %v1448 = vmax.f32 %v1446, %v1447
      %v1449 = vsel %vm1210, %v1024, -inf
      %v1450 = vrot.slane %v1449, 4
      %v1451 = vmax.f32 %v1449, %v1450
      %v1452 = vrot.slane %v1451, 2
      %v1453 = vmax.f32 %v1451, %v1452
      %v1454 = vrot.slane %v1453, 1
      %v1455 = vmax.f32 %v1453, %v1454
      %v1456 = vsel %vm1210, %v1026, -inf
      %v1457 = vrot.slane %v1456, 4
      %v1458 = vmax.f32 %v1456, %v1457
      %v1459 = vrot.slane %v1458, 2
      %v1460 = vmax.f32 %v1458, %v1459
      %v1461 = vrot.slane %v1460, 1
      %v1462 = vmax.f32 %v1460, %v1461
      %v1463 = vsel %vm1210, %v1034, -inf
      %v1464 = vrot.slane %v1463, 4
      %v1465 = vmax.f32 %v1463, %v1464
      %v1466 = vrot.slane %v1465, 2
      %v1467 = vmax.f32 %v1465, %v1466
      %v1468 = vrot.slane %v1467, 1
      %v1469 = vmax.f32 %v1467, %v1468
      %v1470 = vsel %vm1210, %v1042, -inf
      %v1471 = vrot.slane %v1470, 4
      %v1472 = vmax.f32 %v1470, %v1471
      %v1473 = vrot.slane %v1472, 2
      %v1474 = vmax.f32 %v1472, %v1473
      %v1475 = vrot.slane %v1474, 1
      %v1476 = vmax.f32 %v1474, %v1475
      %v1477 = vsel %vm1210, %v1041, -inf
      %v1478 = vrot.slane %v1477, 4
      %v1479 = vmax.f32 %v1477, %v1478
      %v1480 = vrot.slane %v1479, 2
      %v1481 = vmax.f32 %v1479, %v1480
      %v1482 = vrot.slane %v1481, 1
      %v1483 = vmax.f32 %v1481, %v1482
      %v1484 = vsel %vm1210, %v1043, -inf
      %v1485 = vrot.slane %v1484, 4
      %v1486 = vmax.f32 %v1484, %v1485
      %v1487 = vrot.slane %v1486, 2
      %v1488 = vmax.f32 %v1486, %v1487
      %v1489 = vrot.slane %v1488, 1
      %v1490 = vmax.f32 %v1488, %v1489
      %v1491 = vsel %vm1210, %v1051, -inf
      %v1492 = vrot.slane %v1491, 4
      %v1493 = vmax.f32 %v1491, %v1492
      %v1494 = vrot.slane %v1493, 2
      %v1495 = vmax.f32 %v1493, %v1494
      %v1496 = vrot.slane %v1495, 1
      %v1497 = vmax.f32 %v1495, %v1496
      %v1498 = vsel %vm1210, %v1059, -inf
      %v1499 = vrot.slane %v1498, 4
      %v1500 = vmax.f32 %v1498, %v1499
      %v1501 = vrot.slane %v1500, 2
      %v1502 = vmax.f32 %v1500, %v1501
      %v1503 = vrot.slane %v1502, 1
      %v1504 = vmax.f32 %v1502, %v1503
      %v1505 = vsel %vm1210, %v1058, -inf
      %v1506 = vrot.slane %v1505, 4
      %v1507 = vmax.f32 %v1505, %v1506
      %v1508 = vrot.slane %v1507, 2
      %v1509 = vmax.f32 %v1507, %v1508
      %v1510 = vrot.slane %v1509, 1
      %v1511 = vmax.f32 %v1509, %v1510
      %v1512 = vsel %vm1210, %v1060, -inf
      %v1513 = vrot.slane %v1512, 4
      %v1514 = vmax.f32 %v1512, %v1513
      %v1515 = vrot.slane %v1514, 2
      %v1516 = vmax.f32 %v1514, %v1515
      %v1517 = vrot.slane %v1516, 1
      %v1518 = vmax.f32 %v1516, %v1517
      %v1519 = vsel %vm1210, %v1068, -inf
      %v1520 = vrot.slane %v1519, 4
      %v1521 = vmax.f32 %v1519, %v1520
      %v1522 = vrot.slane %v1521, 2
      %v1523 = vmax.f32 %v1521, %v1522
      %v1524 = vrot.slane %v1523, 1
      %v1525 = vmax.f32 %v1523, %v1524
      %v1526 = vsel %vm1210, %v1076, -inf
      %v1527 = vrot.slane %v1526, 4
      %v1528 = vmax.f32 %v1526, %v1527
      %v1529 = vrot.slane %v1528, 2
      %v1530 = vmax.f32 %v1528, %v1529
      %v1531 = vrot.slane %v1530, 1
      %v1532 = vmax.f32 %v1530, %v1531
      %v1533 = vsel %vm1210, %v1075, -inf
      %v1534 = vrot.slane %v1533, 4
      %v1535 = vmax.f32 %v1533, %v1534
      %v1536 = vrot.slane %v1535, 2
      %v1537 = vmax.f32 %v1535, %v1536
      %v1538 = vrot.slane %v1537, 1
      %v1539 = vmax.f32 %v1537, %v1538
      %v1540 = vsel %vm1210, %v1077, -inf
      %v1541 = vrot.slane %v1540, 4
      %v1542 = vmax.f32 %v1540, %v1541
      %v1543 = vrot.slane %v1542, 2
      %v1544 = vmax.f32 %v1542, %v1543
      %v1545 = vrot.slane %v1544, 1
      %v1546 = vmax.f32 %v1544, %v1545
      %v1547 = vsel %vm1210, %v1085, -inf
      %v1548 = vrot.slane %v1547, 4
      %v1549 = vmax.f32 %v1547, %v1548
      %v1550 = vrot.slane %v1549, 2
      %v1551 = vmax.f32 %v1549, %v1550
      %v1552 = vrot.slane %v1551, 1
      %v1553 = vmax.f32 %v1551, %v1552
      %v1554 = vsel %vm1210, %v1093, -inf
      %v1555 = vrot.slane %v1554, 4
      %v1556 = vmax.f32 %v1554, %v1555
      %v1557 = vrot.slane %v1556, 2
      %v1558 = vmax.f32 %v1556, %v1557
      %v1559 = vrot.slane %v1558, 1
      %v1560 = vmax.f32 %v1558, %v1559
      %v1561 = vsel %vm1210, %v1092, -inf
      %v1562 = vrot.slane %v1561, 4
      %v1563 = vmax.f32 %v1561, %v1562
      %v1564 = vrot.slane %v1563, 2
      %v1565 = vmax.f32 %v1563, %v1564
      %v1566 = vrot.slane %v1565, 1
      %v1567 = vmax.f32 %v1565, %v1566
      %v1568 = vsel %vm1210, %v1094, -inf
      %v1569 = vrot.slane %v1568, 4
      %v1570 = vmax.f32 %v1568, %v1569
      %v1571 = vrot.slane %v1570, 2
      %v1572 = vmax.f32 %v1570, %v1571
      %v1573 = vrot.slane %v1572, 1
      %v1574 = vmax.f32 %v1572, %v1573
      %v1575 = vsel %vm1210, %v1102, -inf
      %v1576 = vrot.slane %v1575, 4
      %v1577 = vmax.f32 %v1575, %v1576
      %v1578 = vrot.slane %v1577, 2
      %v1579 = vmax.f32 %v1577, %v1578
      %v1580 = vrot.slane %v1579, 1
      %v1581 = vmax.f32 %v1579, %v1580
      %v1582 = vsel %vm1210, %v1110, -inf
      %v1583 = vrot.slane %v1582, 4
      %v1584 = vmax.f32 %v1582, %v1583
      %v1585 = vrot.slane %v1584, 2
      %v1586 = vmax.f32 %v1584, %v1585
      %v1587 = vrot.slane %v1586, 1
      %v1588 = vmax.f32 %v1586, %v1587
      %v1589 = vsel %vm1210, %v1109, -inf
      %v1590 = vrot.slane %v1589, 4
      %v1591 = vmax.f32 %v1589, %v1590
      %v1592 = vrot.slane %v1591, 2
      %v1593 = vmax.f32 %v1591, %v1592
      %v1594 = vrot.slane %v1593, 1
      %v1595 = vmax.f32 %v1593, %v1594
      %v1596 = vsel %vm1210, %v1111, -inf
      %v1597 = vrot.slane %v1596, 4
      %v1598 = vmax.f32 %v1596, %v1597
      %v1599 = vrot.slane %v1598, 2
      %v1600 = vmax.f32 %v1598, %v1599
      %v1601 = vrot.slane %v1600, 1
      %v1602 = vmax.f32 %v1600, %v1601
      %v1603 = vsel %vm1210, %v1119, -inf
      %v1604 = vrot.slane %v1603, 4
      %v1605 = vmax.f32 %v1603, %v1604
      %v1606 = vrot.slane %v1605, 2
      %v1607 = vmax.f32 %v1605, %v1606
      %v1608 = vrot.slane %v1607, 1
      %v1609 = vmax.f32 %v1607, %v1608
      %v1610 = vsel %vm1210, %v1127, -inf
      %v1611 = vrot.slane %v1610, 4
      %v1612 = vmax.f32 %v1610, %v1611
      %v1613 = vrot.slane %v1612, 2
      %v1614 = vmax.f32 %v1612, %v1613
      %v1615 = vrot.slane %v1614, 1
      %v1616 = vmax.f32 %v1614, %v1615
      %v1617 = vsel %vm1210, %v1126, -inf
      %v1618 = vrot.slane %v1617, 4
      %v1619 = vmax.f32 %v1617, %v1618
      %v1620 = vrot.slane %v1619, 2
      %v1621 = vmax.f32 %v1619, %v1620
      %v1622 = vrot.slane %v1621, 1
      %v1623 = vmax.f32 %v1621, %v1622
      %v1624 = vsel %vm1210, %v1128, -inf
      %v1625 = vrot.slane %v1624, 4
      %v1626 = vmax.f32 %v1624, %v1625
      %v1627 = vrot.slane %v1626, 2
      %v1628 = vmax.f32 %v1626, %v1627
      %v1629 = vrot.slane %v1628, 1
      %v1630 = vmax.f32 %v1628, %v1629
      %v1631 = vsel %vm1210, %v1136, -inf
      %v1632 = vrot.slane %v1631, 4
      %v1633 = vmax.f32 %v1631, %v1632
      %v1634 = vrot.slane %v1633, 2
      %v1635 = vmax.f32 %v1633, %v1634
      %v1636 = vrot.slane %v1635, 1
      %v1637 = vmax.f32 %v1635, %v1636
      %v1638 = vsel %vm1210, %v1144, -inf
      %v1639 = vrot.slane %v1638, 4
      %v1640 = vmax.f32 %v1638, %v1639
      %v1641 = vrot.slane %v1640, 2
      %v1642 = vmax.f32 %v1640, %v1641
      %v1643 = vrot.slane %v1642, 1
      %v1644 = vmax.f32 %v1642, %v1643
      %v1645 = vsel %vm1210, %v1143, -inf
      %v1646 = vrot.slane %v1645, 4
      %v1647 = vmax.f32 %v1645, %v1646
      %v1648 = vrot.slane %v1647, 2
      %v1649 = vmax.f32 %v1647, %v1648
      %v1650 = vrot.slane %v1649, 1
      %v1651 = vmax.f32 %v1649, %v1650
      %v1652 = vsel %vm1210, %v1145, -inf
      %v1653 = vrot.slane %v1652, 4
      %v1654 = vmax.f32 %v1652, %v1653
      %v1655 = vrot.slane %v1654, 2
      %v1656 = vmax.f32 %v1654, %v1655
      %v1657 = vrot.slane %v1656, 1
      %v1658 = vmax.f32 %v1656, %v1657
      %v1659 = vpack.c.bf16 %v1217, %v1217
      %v1660 = vpack.c.bf16 %v1224, %v1224
      %v1661 = vpack.c.bf16 %v1231, %v1231
      %v1662 = vpack.c.bf16 %v1238, %v1238
      %v1663 = vpack.c.bf16 %v1245, %v1245
      %v1664 = vpack.c.bf16 %v1252, %v1252
      %v1665 = vpack.c.bf16 %v1259, %v1259
      %v1666 = vpack.c.bf16 %v1266, %v1266
      %v1667 = vpack.c.bf16 %v1273, %v1273
      %v1668 = vpack.c.bf16 %v1280, %v1280
      %v1669 = vpack.c.bf16 %v1287, %v1287
      %v1670 = vpack.c.bf16 %v1294, %v1294
      %v1671 = vpack.c.bf16 %v1301, %v1301
      %v1672 = vpack.c.bf16 %v1308, %v1308
      %v1673 = vpack.c.bf16 %v1315, %v1315
      %v1674 = vpack.c.bf16 %v1322, %v1322
      %v1675 = vpack.c.bf16 %v1329, %v1329
      %v1676 = vpack.c.bf16 %v1336, %v1336
      %v1677 = vpack.c.bf16 %v1343, %v1343
      %v1678 = vpack.c.bf16 %v1350, %v1350
      %v1679 = vpack.c.bf16 %v1357, %v1357
      %v1680 = vpack.c.bf16 %v1364, %v1364
      %v1681 = vpack.c.bf16 %v1371, %v1371
      %v1682 = vpack.c.bf16 %v1378, %v1378
      %v1683 = vpack.c.bf16 %v1385, %v1385
      %v1684 = vpack.c.bf16 %v1392, %v1392
      %v1685 = vpack.c.bf16 %v1399, %v1399
      %v1686 = vpack.c.bf16 %v1406, %v1406
      %v1687 = vpack.c.bf16 %v1413, %v1413
      %v1688 = vpack.c.bf16 %v1420, %v1420
      %v1689 = vpack.c.bf16 %v1427, %v1427
      %v1690 = vpack.c.bf16 %v1434, %v1434
      %v1691 = vpack.c.bf16 %v1441, %v1441
      %v1692 = vpack.c.bf16 %v1448, %v1448
      %v1693 = vpack.c.bf16 %v1455, %v1455
      %v1694 = vpack.c.bf16 %v1462, %v1462
      %v1695 = vpack.c.bf16 %v1469, %v1469
      %v1696 = vpack.c.bf16 %v1476, %v1476
      %v1697 = vpack.c.bf16 %v1483, %v1483
      %v1698 = vpack.c.bf16 %v1490, %v1490
      %v1699 = vpack.c.bf16 %v1497, %v1497
      %v1700 = vpack.c.bf16 %v1504, %v1504
      %v1701 = vpack.c.bf16 %v1511, %v1511
      %v1702 = vpack.c.bf16 %v1518, %v1518
      %v1703 = vpack.c.bf16 %v1525, %v1525
      %v1704 = vpack.c.bf16 %v1532, %v1532
      %v1705 = vpack.c.bf16 %v1539, %v1539
      %v1706 = vpack.c.bf16 %v1546, %v1546
      %v1707 = vpack.c.bf16 %v1553, %v1553
      %v1708 = vpack.c.bf16 %v1560, %v1560
      %v1709 = vpack.c.bf16 %v1567, %v1567
      %v1710 = vpack.c.bf16 %v1574, %v1574
      %v1711 = vpack.c.bf16 %v1581, %v1581
      %v1712 = vpack.c.bf16 %v1588, %v1588
      %v1713 = vpack.c.bf16 %v1595, %v1595
      %v1714 = vpack.c.bf16 %v1602, %v1602
      %v1715 = vpack.c.bf16 %v1609, %v1609
      %v1716 = vpack.c.bf16 %v1616, %v1616
      %v1717 = vpack.c.bf16 %v1623, %v1623
      %v1718 = vpack.c.bf16 %v1630, %v1630
      %v1719 = vpack.c.bf16 %v1637, %v1637
      %v1720 = vpack.c.bf16 %v1644, %v1644
      %v1721 = vpack.c.bf16 %v1651, %v1651
      %v1722 = vpack.c.bf16 %v1658, %v1658
      %v1787 = vunpack.c.l.b16 %v1659
      %v1788 = vunpack.c.l.b16 %v1660
      %v1789 = vunpack.c.l.b16 %v1661
      %v1790 = vunpack.c.l.b16 %v1662
      %v1791 = vunpack.c.l.b16 %v1663
      %v1792 = vunpack.c.l.b16 %v1664
      %v1793 = vunpack.c.l.b16 %v1665
      %v1794 = vunpack.c.l.b16 %v1666
      %v1795 = vunpack.c.l.b16 %v1667
      %v1796 = vunpack.c.l.b16 %v1668
      %v1797 = vunpack.c.l.b16 %v1669
      %v1798 = vunpack.c.l.b16 %v1670
      %v1799 = vunpack.c.l.b16 %v1671
      %v1800 = vunpack.c.l.b16 %v1672
      %v1801 = vunpack.c.l.b16 %v1673
      %v1802 = vunpack.c.l.b16 %v1674
      %v1803 = vunpack.c.l.b16 %v1675
      %v1804 = vunpack.c.l.b16 %v1676
      %v1805 = vunpack.c.l.b16 %v1677
      %v1806 = vunpack.c.l.b16 %v1678
      %v1807 = vunpack.c.l.b16 %v1679
      %v1808 = vunpack.c.l.b16 %v1680
      %v1809 = vunpack.c.l.b16 %v1681
      %v1810 = vunpack.c.l.b16 %v1682
      %v1811 = vunpack.c.l.b16 %v1683
      %v1812 = vunpack.c.l.b16 %v1684
      %v1813 = vunpack.c.l.b16 %v1685
      %v1814 = vunpack.c.l.b16 %v1686
      %v1815 = vunpack.c.l.b16 %v1687
      %v1816 = vunpack.c.l.b16 %v1688
      %v1817 = vunpack.c.l.b16 %v1689
      %v1818 = vunpack.c.l.b16 %v1690
      %v1819 = vunpack.c.l.b16 %v1691
      %v1820 = vunpack.c.l.b16 %v1692
      %v1821 = vunpack.c.l.b16 %v1693
      %v1822 = vunpack.c.l.b16 %v1694
      %v1823 = vunpack.c.l.b16 %v1695
      %v1824 = vunpack.c.l.b16 %v1696
      %v1825 = vunpack.c.l.b16 %v1697
      %v1826 = vunpack.c.l.b16 %v1698
      %v1827 = vunpack.c.l.b16 %v1699
      %v1828 = vunpack.c.l.b16 %v1700
      %v1829 = vunpack.c.l.b16 %v1701
      %v1830 = vunpack.c.l.b16 %v1702
      %v1831 = vunpack.c.l.b16 %v1703
      %v1832 = vunpack.c.l.b16 %v1704
      %v1833 = vunpack.c.l.b16 %v1705
      %v1834 = vunpack.c.l.b16 %v1706
      %v1835 = vunpack.c.l.b16 %v1707
      %v1836 = vunpack.c.l.b16 %v1708
      %v1837 = vunpack.c.l.b16 %v1709
      %v1838 = vunpack.c.l.b16 %v1710
      %v1839 = vunpack.c.l.b16 %v1711
      %v1840 = vunpack.c.l.b16 %v1712
      %v1841 = vunpack.c.l.b16 %v1713
      %v1842 = vunpack.c.l.b16 %v1714
      %v1843 = vunpack.c.l.b16 %v1715
      %v1844 = vunpack.c.l.b16 %v1716
      %v1845 = vunpack.c.l.b16 %v1717
      %v1846 = vunpack.c.l.b16 %v1718
      %v1847 = vunpack.c.l.b16 %v1719
      %v1848 = vunpack.c.l.b16 %v1720
      %v1849 = vunpack.c.l.b16 %v1721
      %v1850 = vunpack.c.l.b16 %v1722
      %v1851 = vpack.c.b16 %v1787, %v1787
      %v1852 = vpack.c.b16 %v1788, %v1788
      %v1853 = vpack.c.b16 %v1789, %v1789
      %v1854 = vpack.c.b16 %v1790, %v1790
      %v1855 = vpack.c.b16 %v1791, %v1791
      %v1856 = vpack.c.b16 %v1792, %v1792
      %v1857 = vpack.c.b16 %v1793, %v1793
      %v1858 = vpack.c.b16 %v1794, %v1794
      %v1859 = vpack.c.b16 %v1795, %v1795
      %v1860 = vpack.c.b16 %v1796, %v1796
      %v1861 = vpack.c.b16 %v1797, %v1797
      %v1862 = vpack.c.b16 %v1798, %v1798
      %v1863 = vpack.c.b16 %v1799, %v1799
      %v1864 = vpack.c.b16 %v1800, %v1800
      %v1865 = vpack.c.b16 %v1801, %v1801
      %v1866 = vpack.c.b16 %v1802, %v1802
      %v1867 = vpack.c.b16 %v1803, %v1803
      %v1868 = vpack.c.b16 %v1804, %v1804
      %v1869 = vpack.c.b16 %v1805, %v1805
      %v1870 = vpack.c.b16 %v1806, %v1806
      %v1871 = vpack.c.b16 %v1807, %v1807
      %v1872 = vpack.c.b16 %v1808, %v1808
      %v1873 = vpack.c.b16 %v1809, %v1809
      %v1874 = vpack.c.b16 %v1810, %v1810
      %v1875 = vpack.c.b16 %v1811, %v1811
      %v1876 = vpack.c.b16 %v1812, %v1812
      %v1877 = vpack.c.b16 %v1813, %v1813
      %v1878 = vpack.c.b16 %v1814, %v1814
      %v1879 = vpack.c.b16 %v1815, %v1815
      %v1880 = vpack.c.b16 %v1816, %v1816
      %v1881 = vpack.c.b16 %v1817, %v1817
      %v1882 = vpack.c.b16 %v1818, %v1818
      %v1883 = vpack.c.b16 %v1819, %v1819
      %v1884 = vpack.c.b16 %v1820, %v1820
      %v1885 = vpack.c.b16 %v1821, %v1821
      %v1886 = vpack.c.b16 %v1822, %v1822
      %v1887 = vpack.c.b16 %v1823, %v1823
      %v1888 = vpack.c.b16 %v1824, %v1824
      %v1889 = vpack.c.b16 %v1825, %v1825
      %v1890 = vpack.c.b16 %v1826, %v1826
      %v1891 = vpack.c.b16 %v1827, %v1827
      %v1892 = vpack.c.b16 %v1828, %v1828
      %v1893 = vpack.c.b16 %v1829, %v1829
      %v1894 = vpack.c.b16 %v1830, %v1830
      %v1895 = vpack.c.b16 %v1831, %v1831
      %v1896 = vpack.c.b16 %v1832, %v1832
      %v1897 = vpack.c.b16 %v1833, %v1833
      %v1898 = vpack.c.b16 %v1834, %v1834
      %v1899 = vpack.c.b16 %v1835, %v1835
      %v1900 = vpack.c.b16 %v1836, %v1836
      %v1901 = vpack.c.b16 %v1837, %v1837
      %v1902 = vpack.c.b16 %v1838, %v1838
      %v1903 = vpack.c.b16 %v1839, %v1839
      %v1904 = vpack.c.b16 %v1840, %v1840
      %v1905 = vpack.c.b16 %v1841, %v1841
      %v1906 = vpack.c.b16 %v1842, %v1842
      %v1907 = vpack.c.b16 %v1843, %v1843
      %v1908 = vpack.c.b16 %v1844, %v1844
      %v1909 = vpack.c.b16 %v1845, %v1845
      %v1910 = vpack.c.b16 %v1846, %v1846
      %v1911 = vpack.c.b16 %v1847, %v1847
      %v1912 = vpack.c.b16 %v1848, %v1848
      %v1913 = vpack.c.b16 %v1849, %v1849
      %v1914 = vpack.c.b16 %v1850, %v1850
      %v1915 = vunpack.c.l.b16 %v1851
      %v1916 = vunpack.c.l.b16 %v1852
      %v1917 = vunpack.c.l.b16 %v1853
      %v1918 = vunpack.c.l.b16 %v1854
      %v1919 = vunpack.c.l.b16 %v1855
      %v1920 = vunpack.c.l.b16 %v1856
      %v1921 = vunpack.c.l.b16 %v1857
      %v1922 = vunpack.c.l.b16 %v1858
      %v1923 = vunpack.c.l.b16 %v1859
      %v1924 = vunpack.c.l.b16 %v1860
      %v1925 = vunpack.c.l.b16 %v1861
      %v1926 = vunpack.c.l.b16 %v1862
      %v1927 = vunpack.c.l.b16 %v1863
      %v1928 = vunpack.c.l.b16 %v1864
      %v1929 = vunpack.c.l.b16 %v1865
      %v1930 = vunpack.c.l.b16 %v1866
      %v1931 = vunpack.c.l.b16 %v1867
      %v1932 = vunpack.c.l.b16 %v1868
      %v1933 = vunpack.c.l.b16 %v1869
      %v1934 = vunpack.c.l.b16 %v1870
      %v1935 = vunpack.c.l.b16 %v1871
      %v1936 = vunpack.c.l.b16 %v1872
      %v1937 = vunpack.c.l.b16 %v1873
      %v1938 = vunpack.c.l.b16 %v1874
      %v1939 = vunpack.c.l.b16 %v1875
      %v1940 = vunpack.c.l.b16 %v1876
      %v1941 = vunpack.c.l.b16 %v1877
      %v1942 = vunpack.c.l.b16 %v1878
      %v1943 = vunpack.c.l.b16 %v1879
      %v1944 = vunpack.c.l.b16 %v1880
      %v1945 = vunpack.c.l.b16 %v1881
      %v1946 = vunpack.c.l.b16 %v1882
      %v1947 = vunpack.c.l.b16 %v1883
      %v1948 = vunpack.c.l.b16 %v1884
      %v1949 = vunpack.c.l.b16 %v1885
      %v1950 = vunpack.c.l.b16 %v1886
      %v1951 = vunpack.c.l.b16 %v1887
      %v1952 = vunpack.c.l.b16 %v1888
      %v1953 = vunpack.c.l.b16 %v1889
      %v1954 = vunpack.c.l.b16 %v1890
      %v1955 = vunpack.c.l.b16 %v1891
      %v1956 = vunpack.c.l.b16 %v1892
      %v1957 = vunpack.c.l.b16 %v1893
      %v1958 = vunpack.c.l.b16 %v1894
      %v1959 = vunpack.c.l.b16 %v1895
      %v1960 = vunpack.c.l.b16 %v1896
      %v1961 = vunpack.c.l.b16 %v1897
      %v1962 = vunpack.c.l.b16 %v1898
      %v1963 = vunpack.c.l.b16 %v1899
      %v1964 = vunpack.c.l.b16 %v1900
      %v1965 = vunpack.c.l.b16 %v1901
      %v1966 = vunpack.c.l.b16 %v1902
      %v1967 = vunpack.c.l.b16 %v1903
      %v1968 = vunpack.c.l.b16 %v1904
      %v1969 = vunpack.c.l.b16 %v1905
      %v1970 = vunpack.c.l.b16 %v1906
      %v1971 = vunpack.c.l.b16 %v1907
      %v1972 = vunpack.c.l.b16 %v1908
      %v1973 = vunpack.c.l.b16 %v1909
      %v1974 = vunpack.c.l.b16 %v1910
      %v1975 = vunpack.c.l.b16 %v1911
      %v1976 = vunpack.c.l.b16 %v1912
      %v1977 = vunpack.c.l.b16 %v1913
      %v1978 = vunpack.c.l.b16 %v1914
      %vm1979 = vcmask 1041409
      %v1980 = vsel %vm1979, %v1916, %v1915
      %vm1981 = vcmask 1042434
      %v1982 = vsel %vm1981, %v1917, %v1980
      %vm1983 = vcmask 1043459
      %v1984 = vsel %vm1983, %v1918, %v1982
      %vm1985 = vcmask 1044484
      %v1986 = vsel %vm1985, %v1919, %v1984
      %vm1987 = vcmask 1045509
      %v1988 = vsel %vm1987, %v1920, %v1986
      %vm1989 = vcmask 1046534
      %v1990 = vsel %vm1989, %v1921, %v1988
      %vm1991 = vcmask 1047559
      %v1992 = vsel %vm1991, %v1922, %v1990
      %v1993 = vsel %vm1979, %v1924, %v1923
      %v1994 = vsel %vm1981, %v1925, %v1993
      %v1995 = vsel %vm1983, %v1926, %v1994
      %v1996 = vsel %vm1985, %v1927, %v1995
      %v1997 = vsel %vm1987, %v1928, %v1996
      %v1998 = vsel %vm1989, %v1929, %v1997
      %v1999 = vsel %vm1991, %v1930, %v1998
      %v2000 = vsel %vm1979, %v1932, %v1931
      %v2001 = vsel %vm1981, %v1933, %v2000
      %v2002 = vsel %vm1983, %v1934, %v2001
      %v2003 = vsel %vm1985, %v1935, %v2002
      %v2004 = vsel %vm1987, %v1936, %v2003
      %v2005 = vsel %vm1989, %v1937, %v2004
      %v2006 = vsel %vm1991, %v1938, %v2005
      %v2007 = vsel %vm1979, %v1940, %v1939
      %v2008 = vsel %vm1981, %v1941, %v2007
      %v2009 = vsel %vm1983, %v1942, %v2008
      %v2010 = vsel %vm1985, %v1943, %v2009
      %v2011 = vsel %vm1987, %v1944, %v2010
      %v2012 = vsel %vm1989, %v1945, %v2011
      %v2013 = vsel %vm1991, %v1946, %v2012
      %v2014 = vsel %vm1979, %v1948, %v1947
      %v2015 = vsel %vm1981, %v1949, %v2014
      %v2016 = vsel %vm1983, %v1950, %v2015
      %v2017 = vsel %vm1985, %v1951, %v2016
      %v2018 = vsel %vm1987, %v1952, %v2017
      %v2019 = vsel %vm1989, %v1953, %v2018
      %v2020 = vsel %vm1991, %v1954, %v2019
      %v2021 = vsel %vm1979, %v1956, %v1955
      %v2022 = vsel %vm1981, %v1957, %v2021
      %v2023 = vsel %vm1983, %v1958, %v2022
      %v2024 = vsel %vm1985, %v1959, %v2023
      %v2025 = vsel %vm1987, %v1960, %v2024
      %v2026 = vsel %vm1989, %v1961, %v2025
      %v2027 = vsel %vm1991, %v1962, %v2026
      %v2028 = vsel %vm1979, %v1964, %v1963
      %v2029 = vsel %vm1981, %v1965, %v2028
      %v2030 = vsel %vm1983, %v1966, %v2029
      %v2031 = vsel %vm1985, %v1967, %v2030
      %v2032 = vsel %vm1987, %v1968, %v2031
      %v2033 = vsel %vm1989, %v1969, %v2032
      %v2034 = vsel %vm1991, %v1970, %v2033
      %v2035 = vsel %vm1979, %v1972, %v1971
      %v2036 = vsel %vm1981, %v1973, %v2035
      %v2037 = vsel %vm1983, %v1974, %v2036
      %v2038 = vsel %vm1985, %v1975, %v2037
      %v2039 = vsel %vm1987, %v1976, %v2038
      %v2040 = vsel %vm1989, %v1977, %v2039
      %v2041 = vsel %vm1991, %v1978, %v2040
      %v2042 = vpack.c.b16 %v1992, %v1992
      %v2043 = vpack.c.b16 %v1999, %v1999
      %v2044 = vpack.c.b16 %v2006, %v2006
      %v2045 = vpack.c.b16 %v2013, %v2013
      %v2046 = vpack.c.b16 %v2020, %v2020
      %v2047 = vpack.c.b16 %v2027, %v2027
      %v2048 = vpack.c.b16 %v2034, %v2034
      %v2049 = vpack.c.b16 %v2041, %v2041
      %vm2058 = vcmask 257024
      %2059 = vst.msk [vmem:[%s238] sm:$0xf] %vm2058, %v2042
      %2060 = vst.msk [vmem:[%s238 + $0x4] sm:$0xf] %vm2058, %v2043
      %2061 = vst.msk [vmem:[%s238 + $0x8] sm:$0xf] %vm2058, %v2044
      %2062 = vst.msk [vmem:[%s238 + $0xc] sm:$0xf] %vm2058, %v2045
      %2063 = vst.msk [vmem:[%s238 + $0x10] sm:$0xf] %vm2058, %v2046
      %2064 = vst.msk [vmem:[%s238 + $0x14] sm:$0xf] %vm2058, %v2047
      %2065 = vst.msk [vmem:[%s238 + $0x18] sm:$0xf] %vm2058, %v2048
      %2066 = vst.msk [vmem:[%s238 + $0x1c] sm:$0xf] %vm2058, %v2049
      %s2067 = smul.u32 8, %s20
      %p2068 = scmp.lt.s32.totalorder %s19, 1
      %s2069 = scalar_select %p2068, %s19, 1
      %p2070 = scmp.lt.s32.totalorder %s2067, 7
      %s2071 = scalar_select %p2070, %s2067, 7
      %s2072 = smul.addr %s2069, 8
      %s2073 = sadd.s32 %s2071, %s2072
      %s2074 = smul.addr %s2073, 4
      %s2075 = scalar_lea.vmem %s4, %s2074
      // Predicated region
      $region37: #{cnn_forward.4} parent=35 // pred_check
        %p2076 = pneg %p138
      $region38: #{cnn_forward.4} parent=35 // pred_check_branch
        %2078 = sbr.rel (%p2076) target = $region40
      $region39: #{cnn_forward.4} parent=35 // pred_region
        %s2079 = smul.u32 8, %s20
      $region40: #{cnn_forward.4} parent=35 // pred_fallthru
        _
    $region36: #{cnn_forward.4} parent=5 // pred_fallthru
      _
    %p2080 = scmp.le.s32.totalorder 2, %s10
    // Predicated region
    $region41: #{cnn_forward.4} parent=5 // pred_check
      %p2081 = pneg %p2080
    $region42: #{cnn_forward.4} parent=5 // pred_check_branch
      %2083 = sbr.rel (%p2081) target = $region44
    $region43: #{cnn_forward.4} parent=5 // pred_region
      %s2084 = ssub.s32 %s10, 2
      // Predicated region
      $region45: #{cnn_forward.4} parent=43 // pred_check
        %p2085 = pneg %p144
      $region46: #{cnn_forward.4} parent=43 // pred_check_branch
        %2087 = sbr.rel (%p2085) target = $region48
      $region47: #{cnn_forward.4} parent=43 // pred_region
        %s2088 = smul.u32 8, %s22
        %p2089 = scmp.lt.s32.totalorder %s21, 1
        %s2090 = scalar_select %p2089, %s21, 1
        %p2091 = scmp.lt.s32.totalorder %s2088, 7
        %s2092 = scalar_select %p2091, %s2088, 7
        %s2093 = smul.addr %s2090, 8
        %s2094 = sadd.s32 %s2092, %s2093
        %s2095 = smul.addr %s2094, 4
        %s2096 = scalar_lea.vmem %s4, %s2095
      $region48: #{cnn_forward.4} parent=43 // pred_fallthru
        _
    $region44: #{cnn_forward.4} parent=5 // pred_fallthru
      _
  $region6: #{cnn_forward.4} parent=0 // loop_footer
    %s14 = sadd.s32 1, %s10
  $region7: #{cnn_forward.4} parent=0 // loop_footer_branch
    %9 = sbr.rel target = $region3
  $region8: #{cnn_forward.4} parent=0 // loop_exit
    _

// kernel: cnn_forward.5
$region0: #{cnn_forward.5}
  #allocation0 [shape = 'u32[]', space=smem, size = 0x4, offset = 0x4, fixed_abs, tag = 'smem constant byte address 0x4 - core index']
  #allocation1 [shape = 'u32[144,128]{1,0:T(1,128)}', space=vmem, size = 0x12000, scoped, tag = 'internal scratch']
  #allocation2 [shape = 'f32[2,16]{1,0:T(2,128)}', space=vmem, size = 0x400, scoped, tag = 'scratch operand']
  %s0 = inlined_call_operand.vmem [shape: bf16[2,2048], index: 0, kind: input, shape index: {}]
  %s1 = inlined_call_operand.vmem [shape: bf16[16,2048], index: 1, kind: input, shape index: {}]
  %s2 = inlined_call_operand.vmem [shape: f32[1,16], index: 2, kind: input, shape index: {}]
  %s3 = inlined_call_operand.hbm [shape: f32[2,16], index: 3, kind: output, shape index: {}]
  %s4 = sld [smem:[#allocation0]]
  $region30: #{cnn_forward.5} parent=0
    _
  %s6 = ssub.s32 1, %s4
  %s7 = scalar_select 0, %s6, %s4
  $region1: #{cnn_forward.5} parent=0
    #allocation3 [shape = 'u8[1024]{0}', space=vmem, size = 0x400, scoped, tag = 'output window, operand 0, single buffered']
    #allocation4 [shape = 's32[1]{0}', space=sflag, size = 0x4, scoped, tag = 'scoped memory for cnn_forward.5']
    %8 = vsyncpa [#allocation4], 0
    // Predicated region
    $region2: #{cnn_forward.5} parent=1 // pred_check
      _
    $region3: #{cnn_forward.5} parent=1 // pred_check_branch
      %10 = sbr.rel (0) target = $region5
    $region4: #{cnn_forward.5} parent=1 // pred_region
      _
    $region5: #{cnn_forward.5} parent=1 // pred_fallthru
      _
    // Predicated region
    $region6: #{cnn_forward.5} parent=1 // pred_check
      _
    $region7: #{cnn_forward.5} parent=1 // pred_check_branch
      %12 = sbr.rel (0) target = $region9
    $region8: #{cnn_forward.5} parent=1 // pred_region
      _
    $region9: #{cnn_forward.5} parent=1 // pred_fallthru
      _
    // Predicated region
    $region10: #{cnn_forward.5} parent=1 // pred_check
      _
    $region11: #{cnn_forward.5} parent=1 // pred_check_branch
      %14 = sbr.rel (0) target = $region13
    $region12: #{cnn_forward.5} parent=1 // pred_region
      _
    $region13: #{cnn_forward.5} parent=1 // pred_fallthru
      _
    %p16 = scmp.eq.s32.totalorder 0, 0
    // Predicated region
    $region14: #{cnn_forward.5} parent=1 // pred_check
      %p17 = pneg %p16
    $region15: #{cnn_forward.5} parent=1 // pred_check_branch
      %19 = sbr.rel (%p17) target = $region17
    $region16: #{cnn_forward.5} parent=1 // pred_region
      %vm20 = vcmask 123904
      %21 = vst.msk [vmem:[#allocation2] sm:$0x3] %vm20, 0.0
    $region17: #{cnn_forward.5} parent=1 // pred_fallthru
      _
    %v22 = vld [vmem:[#allocation2] sm:$0x3]
    %v23 = vld [vmem:[%s0] sm:$0xff]
    %v24 = vld [vmem:[%s0 + $0x8] sm:$0xff]
    %v25 = vld [vmem:[%s1] sm:$0xff]
    %v26 = vld [vmem:[%s1 + $0x8] sm:$0xff]
    %v27 = vld [vmem:[%s1 + $0x10] sm:$0xff]
    %v28 = vld [vmem:[%s1 + $0x18] sm:$0xff]
    %v29 = vld [vmem:[%s1 + $0x20] sm:$0xff]
    %v30 = vld [vmem:[%s1 + $0x28] sm:$0xff]
    %v31 = vld [vmem:[%s1 + $0x30] sm:$0xff]
    %v32 = vld [vmem:[%s1 + $0x38] sm:$0xff]
    %v33 = vld [vmem:[%s1 + $0x40] sm:$0xff]
    %v34 = vld [vmem:[%s1 + $0x48] sm:$0xff]
    %v35 = vld [vmem:[%s1 + $0x50] sm:$0xff]
    %v36 = vld [vmem:[%s1 + $0x58] sm:$0xff]
    %v37 = vld [vmem:[%s1 + $0x60] sm:$0xff]
    %v38 = vld [vmem:[%s1 + $0x68] sm:$0xff]
    %v39 = vld [vmem:[%s1 + $0x70] sm:$0xff]
    %v40 = vld [vmem:[%s1 + $0x78] sm:$0xff]
    %v43 = vcombine.high %v23, %v23
    %v45 = vunpack.c.l.s4 1966171168
    %v46 = vunpack.c.0.s8 %v45
    %v47 = vlaneseq
    %v48 = vshrl.u32 %v47, 7
    %v49 = vsub.s32 %v46, %v48
    %v50 = vrot.slane %v23, %v49
    %v52 = vunpack.c.l.s4 1966171168
    %v53 = vunpack.c.0.s8 %v52
    %v54 = vlaneseq
    %v55 = vshrl.u32 %v54, 7
    %v56 = vsub.s32 %v53, %v55
    %v57 = vrot.slane %v43, %v56
    %v58 = vcombine.high %v50, %v50
    %v59 = vcombine.high %v57, %v57
    %v61 = vunpack.c.l.s4 1966171168
    %v62 = vunpack.c.0.s8 %v61
    %v63 = vlaneseq
    %v64 = vshrl.u32 %v63, 7
    %v65 = vsub.s32 %v62, %v64
    %v66 = vrot.slane %v50, %v65
    %v68 = vunpack.c.l.s4 1966171168
    %v69 = vunpack.c.0.s8 %v68
    %v70 = vlaneseq
    %v71 = vshrl.u32 %v70, 7
    %v72 = vsub.s32 %v69, %v71
    %v73 = vrot.slane %v57, %v72
    %v75 = vunpack.c.l.s4 1966171168
    %v76 = vunpack.c.0.s8 %v75
    %v77 = vlaneseq
    %v78 = vshrl.u32 %v77, 7
    %v79 = vsub.s32 %v76, %v78
    %v80 = vrot.slane %v58, %v79
    %v82 = vunpack.c.l.s4 1966171168
    %v83 = vunpack.c.0.s8 %v82
    %v84 = vlaneseq
    %v85 = vshrl.u32 %v84, 7
    %v86 = vsub.s32 %v83, %v85
    %v87 = vrot.slane %v59, %v86
    %v88 = vcombine.high %v66, %v66
    %v89 = vcombine.high %v73, %v73
    %v90 = vcombine.high %v80, %v80
    %v91 = vcombine.high %v87, %v87
    %v92 = vcombine.high %v24, %v24
    %v94 = vunpack.c.l.s4 1966171168
    %v95 = vunpack.c.0.s8 %v94
    %v96 = vlaneseq
    %v97 = vshrl.u32 %v96, 7
    %v98 = vsub.s32 %v95, %v97
    %v99 = vrot.slane %v24, %v98
    %v101 = vunpack.c.l.s4 1966171168
    %v102 = vunpack.c.0.s8 %v101
    %v103 = vlaneseq
    %v104 = vshrl.u32 %v103, 7
    %v105 = vsub.s32 %v102, %v104
    %v106 = vrot.slane %v92, %v105
    %v107 = vcombine.high %v99, %v99
    %v108 = vcombine.high %v106, %v106
    %v110 = vunpack.c.l.s4 1966171168
    %v111 = vunpack.c.0.s8 %v110
    %v112 = vlaneseq
    %v113 = vshrl.u32 %v112, 7
    %v114 = vsub.s32 %v111, %v113
    %v115 = vrot.slane %v99, %v114
    %v117 = vunpack.c.l.s4 1966171168
    %v118 = vunpack.c.0.s8 %v117
    %v119 = vlaneseq
    %v120 = vshrl.u32 %v119, 7
    %v121 = vsub.s32 %v118, %v120
    %v122 = vrot.slane %v106, %v121
    %v124 = vunpack.c.l.s4 1966171168
    %v125 = vunpack.c.0.s8 %v124
    %v126 = vlaneseq
    %v127 = vshrl.u32 %v126, 7
    %v128 = vsub.s32 %v125, %v127
    %v129 = vrot.slane %v107, %v128
    %v131 = vunpack.c.l.s4 1966171168
    %v132 = vunpack.c.0.s8 %v131
    %v133 = vlaneseq
    %v134 = vshrl.u32 %v133, 7
    %v135 = vsub.s32 %v132, %v134
    %v136 = vrot.slane %v108, %v135
    %v137 = vcombine.high %v115, %v115
    %v138 = vcombine.high %v122, %v122
    %v139 = vcombine.high %v129, %v129
    %v140 = vcombine.high %v136, %v136
    %v173 = vunpack.c.l.b16 %v25
    %v174 = vunpack.c.h.b16 %v25
    %v175 = vunpack.c.l.b16 %v26
    %v176 = vunpack.c.h.b16 %v26
    %v177 = vunpack.c.l.b16 %v27
    %v178 = vunpack.c.h.b16 %v27
    %v179 = vunpack.c.l.b16 %v28
    %v180 = vunpack.c.h.b16 %v28
    %v181 = vunpack.c.l.b16 %v29
    %v182 = vunpack.c.h.b16 %v29
    %v183 = vunpack.c.l.b16 %v30
    %v184 = vunpack.c.h.b16 %v30
    %v185 = vunpack.c.l.b16 %v31
    %v186 = vunpack.c.h.b16 %v31
    %v187 = vunpack.c.l.b16 %v32
    %v188 = vunpack.c.h.b16 %v32
    %v189 = vunpack.c.l.b16 %v33
    %v190 = vunpack.c.h.b16 %v33
    %v191 = vunpack.c.l.b16 %v34
    %v192 = vunpack.c.h.b16 %v34
    %v193 = vunpack.c.l.b16 %v35
    %v194 = vunpack.c.h.b16 %v35
    %v195 = vunpack.c.l.b16 %v36
    %v196 = vunpack.c.h.b16 %v36
    %v197 = vunpack.c.l.b16 %v37
    %v198 = vunpack.c.h.b16 %v37
    %v199 = vunpack.c.l.b16 %v38
    %v200 = vunpack.c.h.b16 %v38
    %v201 = vunpack.c.l.b16 %v39
    %v202 = vunpack.c.h.b16 %v39
    %v203 = vunpack.c.l.b16 %v40
    %v204 = vunpack.c.h.b16 %v40
    %v205 = vpack.c.b16 %v189, %v173
    %v206 = vpack.c.b16 %v190, %v174
    %v207 = vpack.c.b16 %v191, %v175
    %v208 = vpack.c.b16 %v192, %v176
    %v209 = vpack.c.b16 %v193, %v177
    %v210 = vpack.c.b16 %v194, %v178
    %v211 = vpack.c.b16 %v195, %v179
    %v212 = vpack.c.b16 %v196, %v180
    %v213 = vpack.c.b16 %v197, %v181
    %v214 = vpack.c.b16 %v198, %v182
    %v215 = vpack.c.b16 %v199, %v183
    %v216 = vpack.c.b16 %v200, %v184
    %v217 = vpack.c.b16 %v201, %v185
    %v218 = vpack.c.b16 %v202, %v186
    %v219 = vpack.c.b16 %v203, %v187
    %v220 = vpack.c.b16 %v204, %v188
    %237 = vmatprep.subr.bf16.mxu0 %v206
    %238 = vmatpush1.bf16.xpose.msra.mxu0 %v205
    %239 = vmatprep.subr.bf16.mxu0 0
    %240 = vmatpush1.bf16.xpose.msra.mxu0 0
    %241 = vmatprep.subr.bf16.mxu0 0
    %242 = vmatpush1.bf16.xpose.msra.mxu0 0
    %243 = vmatprep.subr.bf16.mxu0 0
    %244 = vmatpush1.bf16.xpose.msra.mxu0 0
    %245 = vmatprep.subr.bf16.mxu0 0
    %246 = vmatpush1.bf16.xpose.msra.mxu0 0
    %247 = vmatprep.subr.bf16.mxu0 0
    %248 = vmatpush1.bf16.xpose.msra.mxu0 0
    %249 = vmatprep.subr.bf16.mxu0 0
    %250 = vmatpush1.bf16.xpose.msra.mxu0 0
    %251 = vmatprep.subr.bf16.mxu0 0
    %252 = vmatpush1.bf16.xpose.msra.mxu0 0
    %253 = vmatprep.subr.bf16.mxu0 0
    %254 = vmatpush1.bf16.xpose.msra.mxu0 0
    %255 = vmatprep.subr.bf16.mxu0 0
    %256 = vmatpush1.bf16.xpose.msra.mxu0 0
    %257 = vmatprep.subr.bf16.mxu0 0
    %258 = vmatpush1.bf16.xpose.msra.mxu0 0
    %259 = vmatprep.subr.bf16.mxu0 0
    %260 = vmatpush1.bf16.xpose.msra.mxu0 0
    %261 = vmatprep.subr.bf16.mxu0 0
    %262 = vmatpush1.bf16.xpose.msra.mxu0 0
    %263 = vmatprep.subr.bf16.mxu0 0
    %264 = vmatpush1.bf16.xpose.msra.mxu0 0
    %265 = vmatprep.subr.bf16.mxu0 0
    %266 = vmatpush1.bf16.xpose.msra.mxu0 0
    %267 = vmatprep.subr.bf16.mxu0 0
    %268 = vmatpush1.bf16.xpose.msra.mxu0 0
    %269 = vmatprep.mubr.bf16.mxu0 %v80
    %270 = vmatmul.mubr.bf16.gmra.mrb[0].mxu0 %v66
    %v271 = vpop.f32.mrb[0].mxu0
    %v272 = vadd.f32 0.0, %v271
    %v273 = vpop.f32.mrb[0].mxu0
    %v274 = vpop.f32.mrb[0].mxu0
    %v275 = vpop.f32.mrb[0].mxu0
    %276 = vdwg.mxu0
    %277 = vmatprep.subr.bf16.mxu0 %v208
    %278 = vmatpush1.bf16.xpose.msra.mxu0 %v207
    %279 = vmatprep.subr.bf16.mxu0 0
    %280 = vmatpush1.bf16.xpose.msra.mxu0 0
    %281 = vmatprep.subr.bf16.mxu0 0
    %282 = vmatpush1.bf16.xpose.msra.mxu0 0
    %283 = vmatprep.subr.bf16.mxu0 0
    %284 = vmatpush1.bf16.xpose.msra.mxu0 0
    %285 = vmatprep.subr.bf16.mxu0 0
    %286 = vmatpush1.bf16.xpose.msra.mxu0 0
    %287 = vmatprep.subr.bf16.mxu0 0
    %288 = vmatpush1.bf16.xpose.msra.mxu0 0
    %289 = vmatprep.subr.bf16.mxu0 0
    %290 = vmatpush1.bf16.xpose.msra.mxu0 0
    %291 = vmatprep.subr.bf16.mxu0 0
    %292 = vmatpush1.bf16.xpose.msra.mxu0 0
    %293 = vmatprep.subr.bf16.mxu0 0
    %294 = vmatpush1.bf16.xpose.msra.mxu0 0
    %295 = vmatprep.subr.bf16.mxu0 0
    %296 = vmatpush1.bf16.xpose.msra.mxu0 0
    %297 = vmatprep.subr.bf16.mxu0 0
    %298 = vmatpush1.bf16.xpose.msra.mxu0 0
    %299 = vmatprep.subr.bf16.mxu0 0
    %300 = vmatpush1.bf16.xpose.msra.mxu0 0
    %301 = vmatprep.subr.bf16.mxu0 0
    %302 = vmatpush1.bf16.xpose.msra.mxu0 0
    %303 = vmatprep.subr.bf16.mxu0 0
    %304 = vmatpush1.bf16.xpose.msra.mxu0 0
    %305 = vmatprep.subr.bf16.mxu0 0
    %306 = vmatpush1.bf16.xpose.msra.mxu0 0
    %307 = vmatprep.subr.bf16.mxu0 0
    %308 = vmatpush1.bf16.xpose.msra.mxu0 0
    %309 = vmatprep.mubr.bf16.mxu0 %v90
    %310 = vmatmul.mubr.bf16.gmra.mrb[0].mxu0 %v88
    %v311 = vpop.f32.mrb[0].mxu0
    %v312 = vadd.f32 %v272, %v311
    %v313 = vpop.f32.mrb[0].mxu0
    %v314 = vpop.f32.mrb[0].mxu0
    %v315 = vpop.f32.mrb[0].mxu0
    %316 = vdwg.mxu0
    %317 = vmatprep.subr.bf16.mxu0 %v210
    %318 = vmatpush1.bf16.xpose.msra.mxu0 %v209
    %319 = vmatprep.subr.bf16.mxu0 0
    %320 = vmatpush1.bf16.xpose.msra.mxu0 0
    %321 = vmatprep.subr.bf16.mxu0 0
    %322 = vmatpush1.bf16.xpose.msra.mxu0 0
    %323 = vmatprep.subr.bf16.mxu0 0
    %324 = vmatpush1.bf16.xpose.msra.mxu0 0
    %325 = vmatprep.subr.bf16.mxu0 0
    %326 = vmatpush1.bf16.xpose.msra.mxu0 0
    %327 = vmatprep.subr.bf16.mxu0 0
    %328 = vmatpush1.bf16.xpose.msra.mxu0 0
    %329 = vmatprep.subr.bf16.mxu0 0
    %330 = vmatpush1.bf16.xpose.msra.mxu0 0
    %331 = vmatprep.subr.bf16.mxu0 0
    %332 = vmatpush1.bf16.xpose.msra.mxu0 0
    %333 = vmatprep.subr.bf16.mxu0 0
    %334 = vmatpush1.bf16.xpose.msra.mxu0 0
    %335 = vmatprep.subr.bf16.mxu0 0
    %336 = vmatpush1.bf16.xpose.msra.mxu0 0
    %337 = vmatprep.subr.bf16.mxu0 0
    %338 = vmatpush1.bf16.xpose.msra.mxu0 0
    %339 = vmatprep.subr.bf16.mxu0 0
    %340 = vmatpush1.bf16.xpose.msra.mxu0 0
    %341 = vmatprep.subr.bf16.mxu0 0
    %342 = vmatpush1.bf16.xpose.msra.mxu0 0
    %343 = vmatprep.subr.bf16.mxu0 0
    %344 = vmatpush1.bf16.xpose.msra.mxu0 0
    %345 = vmatprep.subr.bf16.mxu0 0
    %346 = vmatpush1.bf16.xpose.msra.mxu0 0
    %347 = vmatprep.subr.bf16.mxu0 0
    %348 = vmatpush1.bf16.xpose.msra.mxu0 0
    %349 = vmatprep.mubr.bf16.mxu0 %v87
    %350 = vmatmul.mubr.bf16.gmra.mrb[0].mxu0 %v73
    %v351 = vpop.f32.mrb[0].mxu0
    %v352 = vadd.f32 %v312, %v351
    %v353 = vpop.f32.mrb[0].mxu0
    %v354 = vpop.f32.mrb[0].mxu0
    %v355 = vpop.f32.mrb[0].mxu0
    %356 = vdwg.mxu0
    %357 = vmatprep.subr.bf16.mxu0 %v212
    %358 = vmatpush1.bf16.xpose.msra.mxu0 %v211
    %359 = vmatprep.subr.bf16.mxu0 0
    %360 = vmatpush1.bf16.xpose.msra.mxu0 0
    %361 = vmatprep.subr.bf16.mxu0 0
    %362 = vmatpush1.bf16.xpose.msra.mxu0 0
    %363 = vmatprep.subr.bf16.mxu0 0
    %364 = vmatpush1.bf16.xpose.msra.mxu0 0
    %365 = vmatprep.subr.bf16.mxu0 0
    %366 = vmatpush1.bf16.xpose.msra.mxu0 0
    %367 = vmatprep.subr.bf16.mxu0 0
    %368 = vmatpush1.bf16.xpose.msra.mxu0 0
    %369 = vmatprep.subr.bf16.mxu0 0
    %370 = vmatpush1.bf16.xpose.msra.mxu0 0
    %371 = vmatprep.subr.bf16.mxu0 0
    %372 = vmatpush1.bf16.xpose.msra.mxu0 0
    %373 = vmatprep.subr.bf16.mxu0 0
    %374 = vmatpush1.bf16.xpose.msra.mxu0 0
    %375 = vmatprep.subr.bf16.mxu0 0
    %376 = vmatpush1.bf16.xpose.msra.mxu0 0
    %377 = vmatprep.subr.bf16.mxu0 0
    %378 = vmatpush1.bf16.xpose.msra.mxu0 0
    %379 = vmatprep.subr.bf16.mxu0 0
    %380 = vmatpush1.bf16.xpose.msra.mxu0 0
    %381 = vmatprep.subr.bf16.mxu0 0
    %382 = vmatpush1.bf16.xpose.msra.mxu0 0
    %383 = vmatprep.subr.bf16.mxu0 0
    %384 = vmatpush1.bf16.xpose.msra.mxu0 0
    %385 = vmatprep.subr.bf16.mxu0 0
    %386 = vmatpush1.bf16.xpose.msra.mxu0 0
    %387 = vmatprep.subr.bf16.mxu0 0
    %388 = vmatpush1.bf16.xpose.msra.mxu0 0
    %389 = vmatprep.mubr.bf16.mxu0 %v91
    %390 = vmatmul.mubr.bf16.gmra.mrb[0].mxu0 %v89
    %v391 = vpop.f32.mrb[0].mxu0
    %v392 = vadd.f32 %v352, %v391
    %v393 = vpop.f32.mrb[0].mxu0
    %v394 = vpop.f32.mrb[0].mxu0
    %v395 = vpop.f32.mrb[0].mxu0
    %396 = vdwg.mxu0
    %397 = vmatprep.subr.bf16.mxu0 %v214
    %398 = vmatpush1.bf16.xpose.msra.mxu0 %v213
    %399 = vmatprep.subr.bf16.mxu0 0
    %400 = vmatpush1.bf16.xpose.msra.mxu0 0
    %401 = vmatprep.subr.bf16.mxu0 0
    %402 = vmatpush1.bf16.xpose.msra.mxu0 0
    %403 = vmatprep.subr.bf16.mxu0 0
    %404 = vmatpush1.bf16.xpose.msra.mxu0 0
    %405 = vmatprep.subr.bf16.mxu0 0
    %406 = vmatpush1.bf16.xpose.msra.mxu0 0
    %407 = vmatprep.subr.bf16.mxu0 0
    %408 = vmatpush1.bf16.xpose.msra.mxu0 0
    %409 = vmatprep.subr.bf16.mxu0 0
    %410 = vmatpush1.bf16.xpose.msra.mxu0 0
    %411 = vmatprep.subr.bf16.mxu0 0
    %412 = vmatpush1.bf16.xpose.msra.mxu0 0
    %413 = vmatprep.subr.bf16.mxu0 0
    %414 = vmatpush1.bf16.xpose.msra.mxu0 0
    %415 = vmatprep.subr.bf16.mxu0 0
    %416 = vmatpush1.bf16.xpose.msra.mxu0 0
    %417 = vmatprep.subr.bf16.mxu0 0
    %418 = vmatpush1.bf16.xpose.msra.mxu0 0
    %419 = vmatprep.subr.bf16.mxu0 0
    %420 = vmatpush1.bf16.xpose.msra.mxu0 0
    %421 = vmatprep.subr.bf16.mxu0 0
    %422 = vmatpush1.bf16.xpose.msra.mxu0 0
    %423 = vmatprep.subr.bf16.mxu0 0
    %424 = vmatpush1.bf16.xpose.msra.mxu0 0
    %425 = vmatprep.subr.bf16.mxu0 0
    %426 = vmatpush1.bf16.xpose.msra.mxu0 0
    %427 = vmatprep.subr.bf16.mxu0 0
    %428 = vmatpush1.bf16.xpose.msra.mxu0 0
    %429 = vmatprep.mubr.bf16.mxu0 %v129
    %430 = vmatmul.mubr.bf16.gmra.mrb[0].mxu0 %v115
    %v431 = vpop.f32.mrb[0].mxu0
    %v432 = vadd.f32 %v392, %v431
    %v433 = vpop.f32.mrb[0].mxu0
    %v434 = vpop.f32.mrb[0].mxu0
    %v435 = vpop.f32.mrb[0].mxu0
    %436 = vdwg.mxu0
    %437 = vmatprep.subr.bf16.mxu0 %v216
    %438 = vmatpush1.bf16.xpose.msra.mxu0 %v215
    %439 = vmatprep.subr.bf16.mxu0 0
    %440 = vmatpush1.bf16.xpose.msra.mxu0 0
    %441 = vmatprep.subr.bf16.mxu0 0
    %442 = vmatpush1.bf16.xpose.msra.mxu0 0
    %443 = vmatprep.subr.bf16.mxu0 0
    %444 = vmatpush1.bf16.xpose.msra.mxu0 0
    %445 = vmatprep.subr.bf16.mxu0 0
    %446 = vmatpush1.bf16.xpose.msra.mxu0 0
    %447 = vmatprep.subr.bf16.mxu0 0
    %448 = vmatpush1.bf16.xpose.msra.mxu0 0
    %449 = vmatprep.subr.bf16.mxu0 0
    %450 = vmatpush1.bf16.xpose.msra.mxu0 0
    %451 = vmatprep.subr.bf16.mxu0 0
    %452 = vmatpush1.bf16.xpose.msra.mxu0 0
    %453 = vmatprep.subr.bf16.mxu0 0
    %454 = vmatpush1.bf16.xpose.msra.mxu0 0
    %455 = vmatprep.subr.bf16.mxu0 0
    %456 = vmatpush1.bf16.xpose.msra.mxu0 0
    %457 = vmatprep.subr.bf16.mxu0 0
    %458 = vmatpush1.bf16.xpose.msra.mxu0 0
    %459 = vmatprep.subr.bf16.mxu0 0
    %460 = vmatpush1.bf16.xpose.msra.mxu0 0
    %461 = vmatprep.subr.bf16.mxu0 0
    %462 = vmatpush1.bf16.xpose.msra.mxu0 0
    %463 = vmatprep.subr.bf16.mxu0 0
    %464 = vmatpush1.bf16.xpose.msra.mxu0 0
    %465 = vmatprep.subr.bf16.mxu0 0
    %466 = vmatpush1.bf16.xpose.msra.mxu0 0
    %467 = vmatprep.subr.bf16.mxu0 0
    %468 = vmatpush1.bf16.xpose.msra.mxu0 0
    %469 = vmatprep.mubr.bf16.mxu0 %v139
    %470 = vmatmul.mubr.bf16.gmra.mrb[0].mxu0 %v137
    %v471 = vpop.f32.mrb[0].mxu0
    %v472 = vadd.f32 %v432, %v471
    %v473 = vpop.f32.mrb[0].mxu0
    %v474 = vpop.f32.mrb[0].mxu0
    %v475 = vpop.f32.mrb[0].mxu0
    %476 = vdwg.mxu0
    %477 = vmatprep.subr.bf16.mxu0 %v218
    %478 = vmatpush1.bf16.xpose.msra.mxu0 %v217
    %479 = vmatprep.subr.bf16.mxu0 0
    %480 = vmatpush1.bf16.xpose.msra.mxu0 0
    %481 = vmatprep.subr.bf16.mxu0 0
    %482 = vmatpush1.bf16.xpose.msra.mxu0 0
    %483 = vmatprep.subr.bf16.mxu0 0
    %484 = vmatpush1.bf16.xpose.msra.mxu0 0
    %485 = vmatprep.subr.bf16.mxu0 0
    %486 = vmatpush1.bf16.xpose.msra.mxu0 0
    %487 = vmatprep.subr.bf16.mxu0 0
    %488 = vmatpush1.bf16.xpose.msra.mxu0 0
    %489 = vmatprep.subr.bf16.mxu0 0
    %490 = vmatpush1.bf16.xpose.msra.mxu0 0
    %491 = vmatprep.subr.bf16.mxu0 0
    %492 = vmatpush1.bf16.xpose.msra.mxu0 0
    %493 = vmatprep.subr.bf16.mxu0 0
    %494 = vmatpush1.bf16.xpose.msra.mxu0 0
    %495 = vmatprep.subr.bf16.mxu0 0
    %496 = vmatpush1.bf16.xpose.msra.mxu0 0
    %497 = vmatprep.subr.bf16.mxu0 0
    %498 = vmatpush1.bf16.xpose.msra.mxu0 0
    %499 = vmatprep.subr.bf16.mxu0 0
    %500 = vmatpush1.bf16.xpose.msra.mxu0 0
    %501 = vmatprep.subr.bf16.mxu0 0
    %502 = vmatpush1.bf16.xpose.msra.mxu0 0
    %503 = vmatprep.subr.bf16.mxu0 0
    %504 = vmatpush1.bf16.xpose.msra.mxu0 0
    %505 = vmatprep.subr.bf16.mxu0 0
    %506 = vmatpush1.bf16.xpose.msra.mxu0 0
    %507 = vmatprep.subr.bf16.mxu0 0
    %508 = vmatpush1.bf16.xpose.msra.mxu0 0
    %509 = vmatprep.mubr.bf16.mxu0 %v136
    %510 = vmatmul.mubr.bf16.gmra.mrb[0].mxu0 %v122
    %v511 = vpop.f32.mrb[0].mxu0
    %v512 = vadd.f32 %v472, %v511
    %v513 = vpop.f32.mrb[0].mxu0
    %v514 = vpop.f32.mrb[0].mxu0
    %v515 = vpop.f32.mrb[0].mxu0
    %516 = vdwg.mxu0
    %517 = vmatprep.subr.bf16.mxu0 %v220
    %518 = vmatpush1.bf16.xpose.msra.mxu0 %v219
    %519 = vmatprep.subr.bf16.mxu0 0
    %520 = vmatpush1.bf16.xpose.msra.mxu0 0
    %521 = vmatprep.subr.bf16.mxu0 0
    %522 = vmatpush1.bf16.xpose.msra.mxu0 0
    %523 = vmatprep.subr.bf16.mxu0 0
    %524 = vmatpush1.bf16.xpose.msra.mxu0 0
    %525 = vmatprep.subr.bf16.mxu0 0
    %526 = vmatpush1.bf16.xpose.msra.mxu0 0
    %527 = vmatprep.subr.bf16.mxu0 0
    %528 = vmatpush1.bf16.xpose.msra.mxu0 0
    %529 = vmatprep.subr.bf16.mxu0 0
    %530 = vmatpush1.bf16.xpose.msra.mxu0 0
    %531 = vmatprep.subr.bf16.mxu0 0
    %532 = vmatpush1.bf16.xpose.msra.mxu0 0
    %533 = vmatprep.subr.bf16.mxu0 0
    %534 = vmatpush1.bf16.xpose.msra.mxu0 0
    %535 = vmatprep.subr.bf16.mxu0 0
    %536 = vmatpush1.bf16.xpose.msra.mxu0 0
    %537 = vmatprep.subr.bf16.mxu0 0
    %538 = vmatpush1.bf16.xpose.msra.mxu0 0
    %539 = vmatprep.subr.bf16.mxu0 0
    %540 = vmatpush1.bf16.xpose.msra.mxu0 0
    %541 = vmatprep.subr.bf16.mxu0 0
    %542 = vmatpush1.bf16.xpose.msra.mxu0 0
    %543 = vmatprep.subr.bf16.mxu0 0
    %544 = vmatpush1.bf16.xpose.msra.mxu0 0
    %545 = vmatprep.subr.bf16.mxu0 0
    %546 = vmatpush1.bf16.xpose.msra.mxu0 0
    %547 = vmatprep.subr.bf16.mxu0 0
    %548 = vmatpush1.bf16.xpose.msra.mxu0 0
    %549 = vmatprep.mubr.bf16.mxu0 %v140
    %550 = vmatmul.mubr.bf16.gmra.mrb[0].mxu0 %v138
    %v551 = vpop.f32.mrb[0].mxu0
    %v552 = vadd.f32 %v512, %v551
    %v553 = vpop.f32.mrb[0].mxu0
    %v554 = vpop.f32.mrb[0].mxu0
    %v555 = vpop.f32.mrb[0].mxu0
    %556 = vdwg.mxu0
    %v557 = vadd.f32 %v22, %v552
    %vm558 = vcmask 123904
    %559 = vst.msk [vmem:[#allocation2] sm:$0x3] %vm558, %v557
    // Predicated region
    $region18: #{cnn_forward.5} parent=1 // pred_check
      %p560 = pneg %p16
    $region19: #{cnn_forward.5} parent=1 // pred_check_branch
      %562 = sbr.rel (%p560) target = $region21
    $region20: #{cnn_forward.5} parent=1 // pred_region
      %v563 = vld [vmem:[#allocation2] sm:$0x3]
      %v564 = vld [vmem:[%s2] sm:$0x1]
      %v566 = vlaneseq
      %v567 = vshrl.u32 %v566, 7
      %v568 = vsub.s32 0, %v567
      %v569 = vrot.slane %v564, %v568
      %v571 = vadd.f32 %v563, %v569
      %572 = vst.msk [vmem:[#allocation3] sm:$0x3] %vm558, %v571
    $region21: #{cnn_forward.5} parent=1 // pred_fallthru
      _
    // Predicated region
    $region22: #{cnn_forward.5} parent=1 // pred_check
      _
    $region23: #{cnn_forward.5} parent=1 // pred_check_branch
      %574 = sbr.rel (0) target = $region25
    $region24: #{cnn_forward.5} parent=1 // pred_region
      %s576 = ssub.s32 32, 32
      %577 = vsyncadd [#allocation4], %s576
      %s579 = sshll.u32 [#allocation3], 4
      %s580 = int_to_ptr.vmem [resolvable:$true] %s579
      %582 = dma.vmem_to_hbm [thread:$0]  %s580, 32, %s3, [#allocation4]
    $region25: #{cnn_forward.5} parent=1 // pred_fallthru
      _
    // Predicated region
    $region26: #{cnn_forward.5} parent=1 // pred_check
      _
    $region27: #{cnn_forward.5} parent=1 // pred_check_branch
      %584 = sbr.rel (0) target = $region29
    $region28: #{cnn_forward.5} parent=1 // pred_region
      %585 = dma.done [#allocation4], 32
    $region29: #{cnn_forward.5} parent=1 // pred_fallthru
      _
    %586 = vsyncpa [#allocation4], 1

</llo_original>
